<compile_context>
chip_gen: v7x
topology: tpu7x:2x2x1
jax: 0.10.0
libtpu: 0.0.40
codegen_flags: <defaults>
</compile_context>

<pallas_src>
import numpy as np
import jax
import jax.numpy as jnp
from jax.experimental import pallas as pl
from jax.experimental.pallas import tpu as pltpu


def _fk_kernel(parents_ref, w_ref, off_ref, root_ref,
               pos_ref, orient_ref, nwq_ref):
    """parents: SMEM (N,) i32; w: VMEM (N,1,4); off: VMEM (N,1,3);
    root: VMEM (1,3); pos (out): VMEM (N,1,3);
    orient (scratch): VMEM (N,1,4) chain state;
    nwq (scratch): VMEM (N,1,4) normalized weights (read-only after prologue)."""
    n = w_ref.shape[0]

    # ---- vectorized prologue: normalize every weight quaternion once --------
    # (off the serial chain; one shared reciprocal per joint instead of four
    #  divides; written to a buffer that is never stored in the loop so the
    #  per-joint read does not alias the orientation-chain stores)
    w_all = w_ref[...]                                           # (N,1,4)
    ss = jnp.sum(w_all * w_all, axis=-1, keepdims=True)          # (N,1,1)
    nwq_ref[...] = w_all * (1.0 / (jnp.sqrt(ss) + 1e-5))

    # ---- loop-invariant hoists ----------------------------------------------
    root_vec = root_ref[...]                                     # (1,3)
    lane4 = jax.lax.broadcasted_iota(jnp.int32, (1, 4), 1)
    lane3 = jax.lax.broadcasted_iota(jnp.int32, (1, 3), 1)
    e0 = (lane4 == 0).astype(jnp.float32)
    e1 = (lane4 == 1).astype(jnp.float32)
    e2 = (lane4 == 2).astype(jnp.float32)
    e3 = (lane4 == 3).astype(jnp.float32)   # also the identity quaternion
    f0 = (lane3 == 0).astype(jnp.float32)
    f1 = (lane3 == 1).astype(jnp.float32)
    f2 = (lane3 == 2).astype(jnp.float32)

    def body(i, carry):
        prev_q, prev_pos = carry            # orientation/position of joint i-1
        parent = parents_ref[i]             # scalar i32 (SMEM)
        is_root = parent < 0
        pidx = jnp.maximum(parent, 0)       # clamp so the (masked) load is in-bounds

        nwq = nwq_ref[i]                    # (1,4) pre-normalized weight[i] (no alias)
        off = off_ref[i]                    # (1,3) joint offset (input, no alias)

        # (review #1) register-carry fast path for chain joints; VMEM loads of
        # parent state (which serialize against the previous store) only happen
        # when parent != i-1.  Relies on topological order parents[i] < i,
        # exactly like the PyTorch reference.
        par_q, par_pos = jax.lax.cond(
            parent == i - 1,
            lambda: (prev_q, prev_pos),
            lambda: (orient_ref[pidx], pos_ref[pidx]),
        )

        px, py, pz, pw = par_q[:, 0:1], par_q[:, 1:2], par_q[:, 2:3], par_q[:, 3:4]
        qx, qy, qz, qw = nwq[:, 0:1], nwq[:, 1:2], nwq[:, 2:3], nwq[:, 3:4]

        # quaternion_mult(parent_orientation, weight[i]); parent is stored
        # pre-normalized, so children consume exactly n(parent_product) as in
        # the reference (normalize-on-use), without re-normalizing here.
        rx = pw * qx + px * qw + py * qz - pz * qy
        ry = pw * qy - px * qz + py * qw + pz * qx
        rz = pw * qz + px * qy - py * qx + pz * qw
        rw = pw * qw - px * qx - py * qy - pz * qz
        nrm2 = rx * rx + ry * ry + rz * rz + rw * rw
        inv = 1.0 / (jnp.sqrt(nrm2) + 1e-5)          # exact, matches reference
        prod_q = (rx * e0 + ry * e1 + rz * e2 + rw * e3) * inv
        new_q = jnp.where(is_root, nwq, prod_q)

        # quaternion_rotate(parent_orientation, offset[i]) + parent_position.
        # Independent of the position chain's VMEM round-trip, so its VALU work
        # hides under the chain latency.
        x2, y2, z2, w2 = px * px, py * py, pz * pz, pw * pw
        xy, zw, xz = px * py, pz * pw, px * pz
        yw, yz, xw = py * pw, py * pz, px * pw
        vx, vy, vz = off[:, 0:1], off[:, 1:2], off[:, 2:3]
        ox = (x2 - y2 - z2 + w2) * vx + 2.0 * (xy - zw) * vy + 2.0 * (xz + yw) * vz
        oy = 2.0 * (xy + zw) * vx + (-x2 + y2 - z2 + w2) * vy + 2.0 * (yz - xw) * vz
        oz = 2.0 * (xz - yw) * vx + 2.0 * (yz + xw) * vy + (-x2 - y2 + z2 + w2) * vz
        delta = ox * f0 + oy * f1 + oz * f2
        new_pos = jnp.where(is_root, root_vec, delta + par_pos)

        # Every row written exactly once; stores are off the fast-path chain
        # (next chain iteration reads the carry, not these rows).
        orient_ref[i] = new_q
        pos_ref[i] = new_pos
        return (new_q, new_pos)

    # (review #12) full unroll for small N so independent per-joint work
    # (nwq/off loads, rotation math) overlaps the dependent quaternion chain.
    unroll = n if n <= 64 else 8
    jax.lax.fori_loop(0, n, body, (e3, root_vec), unroll=unroll)


def forward_kinematic_quat(weight, joint_offsets, joint_parents, root_position):
    """Pallas port of ForwardKinematicQuat.forward. Returns (N, 3) positions.

    Assumes joint_parents is topologically ordered (parents[i] < i), exactly as
    the PyTorch reference requires (it indexes already-built per-joint lists).
    """
    n = weight.shape[0]
    w3 = jnp.asarray(weight, jnp.float32).reshape(n, 1, 4)
    off3 = jnp.asarray(joint_offsets, jnp.float32).reshape(n, 1, 3)
    root2 = jnp.asarray(root_position, jnp.float32).reshape(1, 3)
    parents = jnp.asarray(joint_parents, jnp.int32)

    # Each (1,C) trailing tile pads to one (8,128) f32 tile (4 KiB); five
    # per-joint buffers (weights, offsets, positions, orientations, normalized
    # weights) are resident at once.  (review #9) request ~2x actual need and
    # cap well below v7x's 64 MiB physical VMEM.
    per_joint_bytes = 5 * (8 * 128 * 4)
    vmem_needed = n * per_joint_bytes + (1 << 20)
    vmem_limit = int(min(48 * 1024 * 1024, max(16 * 1024 * 1024, 2 * vmem_needed)))

    out = pl.pallas_call(
        _fk_kernel,
        out_shape=jax.ShapeDtypeStruct((n, 1, 3), jnp.float32),
        in_specs=[
            pl.BlockSpec(memory_space=pltpu.MemorySpace.SMEM),   # parent table
            pl.BlockSpec(memory_space=pltpu.MemorySpace.VMEM),   # weight quats
            pl.BlockSpec(memory_space=pltpu.MemorySpace.VMEM),   # joint offsets
            pl.BlockSpec(memory_space=pltpu.MemorySpace.VMEM),   # root position
        ],
        out_specs=pl.BlockSpec(memory_space=pltpu.MemorySpace.VMEM),
        scratch_shapes=[
            pltpu.VMEM((n, 1, 4), jnp.float32),   # orientation chain state
            pltpu.VMEM((n, 1, 4), jnp.float32),   # normalized weights (read-only in loop)
        ],
        compiler_params=pltpu.CompilerParams(vmem_limit_bytes=vmem_limit),
    )(parents, w3, off3, root2)
    # (n,1,3) and (n,3) are byte-identical row-major; reshape is free here.
    return out.reshape(n, 3)


def _fk_reference(weight, joint_offsets, joint_parents, root_position):
    """NumPy re-implementation of the PyTorch forward for validation."""
    def norm(q):
        return q / (np.linalg.norm(q) + 1e-5)

    positions, orients = [], []
    for i, p in enumerate(joint_parents):
        if p == -1:
            orients.append(weight[i])
            positions.append(root_position)
        else:
            q1 = norm(orients[p])
            q2 = norm(weight[i])
            px, py, pz, pw = q1
            qx, qy, qz, qw = q2
            orients.append(np.array([
                pw * qx + px * qw + py * qz - pz * qy,
                pw * qy - px * qz + py * qw + pz * qx,
                pw * qz + px * qy - py * qx + pz * qw,
                pw * qw - px * qx - py * qy - pz * qz,
            ]))
            x, y, z, w = q1
            x2, y2, z2, w2 = x * x, y * y, z * z, w * w
            xy, zw, xz, yw, yz, xw = x * y, z * w, x * z, y * w, y * z, x * w
            m = np.array([
                [x2 - y2 - z2 + w2, 2 * (xy - zw), 2 * (xz + yw)],
                [2 * (xy + zw), -x2 + y2 - z2 + w2, 2 * (yz - xw)],
                [2 * (xz - yw), 2 * (yz + xw), -x2 - y2 + z2 + w2],
            ])
            positions.append(m @ joint_offsets[i] + positions[p])
    return np.stack(positions, axis=0)


if __name__ == "__main__":
    num_joints = 8
    key = jax.random.PRNGKey(0)
    k_w, k_off, k_root = jax.random.split(key, 3)

    # Module init: identity quaternions (x, y, z, w) = (0, 0, 0, 1); add a small
    # deterministic perturbation so the quaternion math is exercised non-trivially.
    weight = jnp.zeros((num_joints, 4), jnp.float32).at[:, -1].set(1.0)
    weight = weight + 0.2 * jax.random.normal(k_w, (num_joints, 4), jnp.float32)

    joint_offsets = jax.random.normal(k_off, (num_joints, 3), jnp.float32)
    root_position = jax.random.normal(k_root, (3,), jnp.float32)
    # Mix of chain links (parent == i-1) and branch links to exercise both the
    # register-carry fast path and the VMEM-load slow path.
    joint_parents = jnp.array([-1, 0, 1, 2, 1, 4, 0, 6], jnp.int32)

    out = forward_kinematic_quat(weight, joint_offsets, joint_parents, root_position)
    out = jax.block_until_ready(out)

    ref = _fk_reference(np.asarray(weight, np.float64),
                        np.asarray(joint_offsets, np.float64),
                        np.asarray(joint_parents),
                        np.asarray(root_position, np.float64))
    np.testing.assert_allclose(np.asarray(out), ref, rtol=1e-4, atol=1e-4)
    print("KERNEL_OK")
</pallas_src>

<mosaic_0001>
module attributes {stable_mosaic.version = 11 : i64} {
  func.func @_fk_kernel(%arg0: memref<8xi32, #tpu.memory_space<smem>>, %arg1: memref<8x1x4xf32, #tpu.memory_space<vmem>>, %arg2: memref<8x1x3xf32, #tpu.memory_space<vmem>>, %arg3: memref<1x3xf32, #tpu.memory_space<vmem>>, %arg4: memref<8x1x3xf32, #tpu.memory_space<vmem>>, %arg5: memref<8x1x4xf32, #tpu.memory_space<vmem>>, %arg6: memref<8x1x4xf32, #tpu.memory_space<vmem>>) attributes {dimension_semantics = [], scalar_prefetch = 0 : i64, scratch_operands = 2 : i64, tpu.core_type = #tpu.core_type<tc>} {
    %c0 = arith.constant 0 : index
    %c0_0 = arith.constant 0 : index
    %c0_1 = arith.constant 0 : index
    %0 = vector.load %arg1[%c0, %c0_0, %c0_1] : memref<8x1x4xf32, #tpu.memory_space<vmem>>, vector<8x1x4xf32>
    %1 = arith.mulf %0, %0 : vector<8x1x4xf32>
    %cst = arith.constant dense<0.000000e+00> : vector<8x1xf32>
    %2 = vector.multi_reduction <add>, %1, %cst [2] : vector<8x1x4xf32> to vector<8x1xf32>
    %3 = vector.shape_cast %2 : vector<8x1xf32> to vector<8x1x1xf32>
    %4 = math.sqrt %3 : vector<8x1x1xf32>
    %cst_2 = arith.constant 9.99999974E-6 : f32
    %5 = vector.broadcast %cst_2 : f32 to vector<8x1x1xf32>
    %6 = arith.addf %4, %5 : vector<8x1x1xf32>
    %cst_3 = arith.constant 1.000000e+00 : f32
    %7 = vector.broadcast %cst_3 : f32 to vector<8x1x1xf32>
    %8 = arith.divf %7, %6 : vector<8x1x1xf32>
    %9 = vector.broadcast %8 : vector<8x1x1xf32> to vector<8x1x4xf32>
    %10 = arith.mulf %0, %9 : vector<8x1x4xf32>
    %c0_4 = arith.constant 0 : index
    %c0_5 = arith.constant 0 : index
    %c0_6 = arith.constant 0 : index
    %11 = vector.load %arg6[%c0_4, %c0_5, %c0_6] : memref<8x1x4xf32, #tpu.memory_space<vmem>>, vector<8x1x4xf32>
    tpu.vector_store %arg6[%c0_4, %c0_5, %c0_6], %10 {strides = array<i32>} : memref<8x1x4xf32, #tpu.memory_space<vmem>>, vector<8x1x4xf32>,
    %c0_7 = arith.constant 0 : index
    %c0_8 = arith.constant 0 : index
    %12 = vector.load %arg3[%c0_7, %c0_8] : memref<1x3xf32, #tpu.memory_space<vmem>>, vector<1x3xf32>
    %13 = tpu.iota {dimensions = array<i32: 1>} : vector<1x4xi32>
    %14 = tpu.iota {dimensions = array<i32: 1>} : vector<1x3xi32>
    %c0_i32 = arith.constant 0 : i32
    %15 = vector.broadcast %c0_i32 : i32 to vector<1x4xi32>
    %16 = arith.cmpi eq, %13, %15 : vector<1x4xi32>
    %17 = arith.extui %16 : vector<1x4xi1> to vector<1x4xi32>
    %18 = arith.sitofp %17 : vector<1x4xi32> to vector<1x4xf32>
    %c1_i32 = arith.constant 1 : i32
    %19 = vector.broadcast %c1_i32 : i32 to vector<1x4xi32>
    %20 = arith.cmpi eq, %13, %19 : vector<1x4xi32>
    %21 = arith.extui %20 : vector<1x4xi1> to vector<1x4xi32>
    %22 = arith.sitofp %21 : vector<1x4xi32> to vector<1x4xf32>
    %c2_i32 = arith.constant 2 : i32
    %23 = vector.broadcast %c2_i32 : i32 to vector<1x4xi32>
    %24 = arith.cmpi eq, %13, %23 : vector<1x4xi32>
    %25 = arith.extui %24 : vector<1x4xi1> to vector<1x4xi32>
    %26 = arith.sitofp %25 : vector<1x4xi32> to vector<1x4xf32>
    %c3_i32 = arith.constant 3 : i32
    %27 = vector.broadcast %c3_i32 : i32 to vector<1x4xi32>
    %28 = arith.cmpi eq, %13, %27 : vector<1x4xi32>
    %29 = arith.extui %28 : vector<1x4xi1> to vector<1x4xi32>
    %30 = arith.sitofp %29 : vector<1x4xi32> to vector<1x4xf32>
    %c0_i32_9 = arith.constant 0 : i32
    %31 = vector.broadcast %c0_i32_9 : i32 to vector<1x3xi32>
    %32 = arith.cmpi eq, %14, %31 : vector<1x3xi32>
    %33 = arith.extui %32 : vector<1x3xi1> to vector<1x3xi32>
    %34 = arith.sitofp %33 : vector<1x3xi32> to vector<1x3xf32>
    %c1_i32_10 = arith.constant 1 : i32
    %35 = vector.broadcast %c1_i32_10 : i32 to vector<1x3xi32>
    %36 = arith.cmpi eq, %14, %35 : vector<1x3xi32>
    %37 = arith.extui %36 : vector<1x3xi1> to vector<1x3xi32>
    %38 = arith.sitofp %37 : vector<1x3xi32> to vector<1x3xf32>
    %c2_i32_11 = arith.constant 2 : i32
    %39 = vector.broadcast %c2_i32_11 : i32 to vector<1x3xi32>
    %40 = arith.cmpi eq, %14, %39 : vector<1x3xi32>
    %41 = arith.extui %40 : vector<1x3xi1> to vector<1x3xi32>
    %42 = arith.sitofp %41 : vector<1x3xi32> to vector<1x3xf32>
    %c0_i32_12 = arith.constant 0 : i32
    %43 = arith.index_cast %c0_i32_12 : i32 to index
    %44 = memref.load %arg0[%43] : memref<8xi32, #tpu.memory_space<smem>>
    %c0_i32_13 = arith.constant 0 : i32
    %45 = arith.cmpi slt, %44, %c0_i32_13 : i32
    %c0_i32_14 = arith.constant 0 : i32
    %46 = arith.maxsi %44, %c0_i32_14 : i32
    %47 = arith.index_cast %c0_i32_12 : i32 to index
    %c0_15 = arith.constant 0 : index
    %c0_16 = arith.constant 0 : index
    %48 = vector.load %arg6[%47, %c0_15, %c0_16] : memref<8x1x4xf32, #tpu.memory_space<vmem>>, vector<1x1x4xf32>
    %49 = vector.shape_cast %48 : vector<1x1x4xf32> to vector<1x4xf32>
    %50 = arith.index_cast %c0_i32_12 : i32 to index
    %c0_17 = arith.constant 0 : index
    %c0_18 = arith.constant 0 : index
    %51 = vector.load %arg2[%50, %c0_17, %c0_18] : memref<8x1x3xf32, #tpu.memory_space<vmem>>, vector<1x1x3xf32>
    %52 = vector.shape_cast %51 : vector<1x1x3xf32> to vector<1x3xf32>
    %c1_i32_19 = arith.constant 1 : i32
    %53 = arith.subi %c0_i32_12, %c1_i32_19 : i32
    %54 = arith.cmpi eq, %44, %53 : i32
    %55 = arith.extui %54 : i1 to i32
    %c0_i32_20 = arith.constant 0 : i32
    %56 = arith.cmpi ne, %55, %c0_i32_20 : i32
    %57:2 = scf.if %56 -> (vector<1x4xf32>, vector<1x3xf32>) {
      scf.yield %30, %12 : vector<1x4xf32>, vector<1x3xf32>
    } else {
      %1275 = arith.index_cast %46 : i32 to index
      %c0_192 = arith.constant 0 : index
      %c0_193 = arith.constant 0 : index
      %1276 = vector.load %arg5[%1275, %c0_192, %c0_193] : memref<8x1x4xf32, #tpu.memory_space<vmem>>, vector<1x1x4xf32>
      %1277 = vector.shape_cast %1276 : vector<1x1x4xf32> to vector<1x4xf32>
      %1278 = arith.index_cast %46 : i32 to index
      %c0_194 = arith.constant 0 : index
      %c0_195 = arith.constant 0 : index
      %1279 = vector.load %arg4[%1278, %c0_194, %c0_195] : memref<8x1x3xf32, #tpu.memory_space<vmem>>, vector<1x1x3xf32>
      %1280 = vector.shape_cast %1279 : vector<1x1x3xf32> to vector<1x3xf32>
      scf.yield %1277, %1280 : vector<1x4xf32>, vector<1x3xf32>
    }
    %58 = vector.extract_strided_slice %57#0 {offsets = [0, 0], sizes = [1, 1], strides = [1, 1]} : vector<1x4xf32> to vector<1x1xf32>
    %59 = vector.extract_strided_slice %57#0 {offsets = [0, 1], sizes = [1, 1], strides = [1, 1]} : vector<1x4xf32> to vector<1x1xf32>
    %60 = vector.extract_strided_slice %57#0 {offsets = [0, 2], sizes = [1, 1], strides = [1, 1]} : vector<1x4xf32> to vector<1x1xf32>
    %61 = vector.extract_strided_slice %57#0 {offsets = [0, 3], sizes = [1, 1], strides = [1, 1]} : vector<1x4xf32> to vector<1x1xf32>
    %62 = vector.extract_strided_slice %49 {offsets = [0, 0], sizes = [1, 1], strides = [1, 1]} : vector<1x4xf32> to vector<1x1xf32>
    %63 = vector.extract_strided_slice %49 {offsets = [0, 1], sizes = [1, 1], strides = [1, 1]} : vector<1x4xf32> to vector<1x1xf32>
    %64 = vector.extract_strided_slice %49 {offsets = [0, 2], sizes = [1, 1], strides = [1, 1]} : vector<1x4xf32> to vector<1x1xf32>
    %65 = vector.extract_strided_slice %49 {offsets = [0, 3], sizes = [1, 1], strides = [1, 1]} : vector<1x4xf32> to vector<1x1xf32>
    %66 = arith.mulf %61, %62 : vector<1x1xf32>
    %67 = arith.mulf %58, %65 : vector<1x1xf32>
    %68 = arith.addf %66, %67 : vector<1x1xf32>
    %69 = arith.mulf %59, %64 : vector<1x1xf32>
    %70 = arith.addf %68, %69 : vector<1x1xf32>
    %71 = arith.mulf %60, %63 : vector<1x1xf32>
    %72 = arith.subf %70, %71 : vector<1x1xf32>
    %73 = arith.mulf %61, %63 : vector<1x1xf32>
    %74 = arith.mulf %58, %64 : vector<1x1xf32>
    %75 = arith.subf %73, %74 : vector<1x1xf32>
    %76 = arith.mulf %59, %65 : vector<1x1xf32>
    %77 = arith.addf %75, %76 : vector<1x1xf32>
    %78 = arith.mulf %60, %62 : vector<1x1xf32>
    %79 = arith.addf %77, %78 : vector<1x1xf32>
    %80 = arith.mulf %61, %64 : vector<1x1xf32>
    %81 = arith.mulf %58, %63 : vector<1x1xf32>
    %82 = arith.addf %80, %81 : vector<1x1xf32>
    %83 = arith.mulf %59, %62 : vector<1x1xf32>
    %84 = arith.subf %82, %83 : vector<1x1xf32>
    %85 = arith.mulf %60, %65 : vector<1x1xf32>
    %86 = arith.addf %84, %85 : vector<1x1xf32>
    %87 = arith.mulf %61, %65 : vector<1x1xf32>
    %88 = arith.mulf %58, %62 : vector<1x1xf32>
    %89 = arith.subf %87, %88 : vector<1x1xf32>
    %90 = arith.mulf %59, %63 : vector<1x1xf32>
    %91 = arith.subf %89, %90 : vector<1x1xf32>
    %92 = arith.mulf %60, %64 : vector<1x1xf32>
    %93 = arith.subf %91, %92 : vector<1x1xf32>
    %94 = arith.mulf %72, %72 : vector<1x1xf32>
    %95 = arith.mulf %79, %79 : vector<1x1xf32>
    %96 = arith.addf %94, %95 : vector<1x1xf32>
    %97 = arith.mulf %86, %86 : vector<1x1xf32>
    %98 = arith.addf %96, %97 : vector<1x1xf32>
    %99 = arith.mulf %93, %93 : vector<1x1xf32>
    %100 = arith.addf %98, %99 : vector<1x1xf32>
    %101 = math.sqrt %100 : vector<1x1xf32>
    %cst_21 = arith.constant 9.99999974E-6 : f32
    %102 = vector.broadcast %cst_21 : f32 to vector<1x1xf32>
    %103 = arith.addf %101, %102 : vector<1x1xf32>
    %cst_22 = arith.constant 1.000000e+00 : f32
    %104 = vector.broadcast %cst_22 : f32 to vector<1x1xf32>
    %105 = arith.divf %104, %103 : vector<1x1xf32>
    %106 = vector.broadcast %72 : vector<1x1xf32> to vector<1x4xf32>
    %107 = arith.mulf %106, %18 : vector<1x4xf32>
    %108 = vector.broadcast %79 : vector<1x1xf32> to vector<1x4xf32>
    %109 = arith.mulf %108, %22 : vector<1x4xf32>
    %110 = arith.addf %107, %109 : vector<1x4xf32>
    %111 = vector.broadcast %86 : vector<1x1xf32> to vector<1x4xf32>
    %112 = arith.mulf %111, %26 : vector<1x4xf32>
    %113 = arith.addf %110, %112 : vector<1x4xf32>
    %114 = vector.broadcast %93 : vector<1x1xf32> to vector<1x4xf32>
    %115 = arith.mulf %114, %30 : vector<1x4xf32>
    %116 = arith.addf %113, %115 : vector<1x4xf32>
    %117 = vector.broadcast %105 : vector<1x1xf32> to vector<1x4xf32>
    %118 = arith.mulf %116, %117 : vector<1x4xf32>
    %119 = arith.select %45, %49, %118 : vector<1x4xf32>
    %120 = arith.mulf %58, %58 : vector<1x1xf32>
    %121 = arith.mulf %59, %59 : vector<1x1xf32>
    %122 = arith.mulf %60, %60 : vector<1x1xf32>
    %123 = arith.mulf %61, %61 : vector<1x1xf32>
    %124 = arith.mulf %58, %59 : vector<1x1xf32>
    %125 = arith.mulf %60, %61 : vector<1x1xf32>
    %126 = arith.mulf %58, %60 : vector<1x1xf32>
    %127 = arith.mulf %59, %61 : vector<1x1xf32>
    %128 = arith.mulf %59, %60 : vector<1x1xf32>
    %129 = arith.mulf %58, %61 : vector<1x1xf32>
    %130 = vector.extract_strided_slice %52 {offsets = [0, 0], sizes = [1, 1], strides = [1, 1]} : vector<1x3xf32> to vector<1x1xf32>
    %131 = vector.extract_strided_slice %52 {offsets = [0, 1], sizes = [1, 1], strides = [1, 1]} : vector<1x3xf32> to vector<1x1xf32>
    %132 = vector.extract_strided_slice %52 {offsets = [0, 2], sizes = [1, 1], strides = [1, 1]} : vector<1x3xf32> to vector<1x1xf32>
    %133 = arith.subf %120, %121 : vector<1x1xf32>
    %134 = arith.subf %133, %122 : vector<1x1xf32>
    %135 = arith.addf %134, %123 : vector<1x1xf32>
    %136 = arith.mulf %135, %130 : vector<1x1xf32>
    %137 = arith.subf %124, %125 : vector<1x1xf32>
    %cst_23 = arith.constant 2.000000e+00 : f32
    %138 = vector.broadcast %cst_23 : f32 to vector<1x1xf32>
    %139 = arith.mulf %138, %137 : vector<1x1xf32>
    %140 = arith.mulf %139, %131 : vector<1x1xf32>
    %141 = arith.addf %136, %140 : vector<1x1xf32>
    %142 = arith.addf %126, %127 : vector<1x1xf32>
    %cst_24 = arith.constant 2.000000e+00 : f32
    %143 = vector.broadcast %cst_24 : f32 to vector<1x1xf32>
    %144 = arith.mulf %143, %142 : vector<1x1xf32>
    %145 = arith.mulf %144, %132 : vector<1x1xf32>
    %146 = arith.addf %141, %145 : vector<1x1xf32>
    %147 = arith.addf %124, %125 : vector<1x1xf32>
    %cst_25 = arith.constant 2.000000e+00 : f32
    %148 = vector.broadcast %cst_25 : f32 to vector<1x1xf32>
    %149 = arith.mulf %148, %147 : vector<1x1xf32>
    %150 = arith.mulf %149, %130 : vector<1x1xf32>
    %cst_26 = arith.constant 0.000000e+00 : f32
    %151 = vector.broadcast %cst_26 : f32 to vector<1x1xf32>
    %152 = arith.subf %151, %120 : vector<1x1xf32>
    %153 = arith.addf %152, %121 : vector<1x1xf32>
    %154 = arith.subf %153, %122 : vector<1x1xf32>
    %155 = arith.addf %154, %123 : vector<1x1xf32>
    %156 = arith.mulf %155, %131 : vector<1x1xf32>
    %157 = arith.addf %150, %156 : vector<1x1xf32>
    %158 = arith.subf %128, %129 : vector<1x1xf32>
    %cst_27 = arith.constant 2.000000e+00 : f32
    %159 = vector.broadcast %cst_27 : f32 to vector<1x1xf32>
    %160 = arith.mulf %159, %158 : vector<1x1xf32>
    %161 = arith.mulf %160, %132 : vector<1x1xf32>
    %162 = arith.addf %157, %161 : vector<1x1xf32>
    %163 = arith.subf %126, %127 : vector<1x1xf32>
    %cst_28 = arith.constant 2.000000e+00 : f32
    %164 = vector.broadcast %cst_28 : f32 to vector<1x1xf32>
    %165 = arith.mulf %164, %163 : vector<1x1xf32>
    %166 = arith.mulf %165, %130 : vector<1x1xf32>
    %167 = arith.addf %128, %129 : vector<1x1xf32>
    %cst_29 = arith.constant 2.000000e+00 : f32
    %168 = vector.broadcast %cst_29 : f32 to vector<1x1xf32>
    %169 = arith.mulf %168, %167 : vector<1x1xf32>
    %170 = arith.mulf %169, %131 : vector<1x1xf32>
    %171 = arith.addf %166, %170 : vector<1x1xf32>
    %cst_30 = arith.constant 0.000000e+00 : f32
    %172 = vector.broadcast %cst_30 : f32 to vector<1x1xf32>
    %173 = arith.subf %172, %120 : vector<1x1xf32>
    %174 = arith.subf %173, %121 : vector<1x1xf32>
    %175 = arith.addf %174, %122 : vector<1x1xf32>
    %176 = arith.addf %175, %123 : vector<1x1xf32>
    %177 = arith.mulf %176, %132 : vector<1x1xf32>
    %178 = arith.addf %171, %177 : vector<1x1xf32>
    %179 = vector.broadcast %146 : vector<1x1xf32> to vector<1x3xf32>
    %180 = arith.mulf %179, %34 : vector<1x3xf32>
    %181 = vector.broadcast %162 : vector<1x1xf32> to vector<1x3xf32>
    %182 = arith.mulf %181, %38 : vector<1x3xf32>
    %183 = arith.addf %180, %182 : vector<1x3xf32>
    %184 = vector.broadcast %178 : vector<1x1xf32> to vector<1x3xf32>
    %185 = arith.mulf %184, %42 : vector<1x3xf32>
    %186 = arith.addf %183, %185 : vector<1x3xf32>
    %187 = arith.addf %186, %57#1 : vector<1x3xf32>
    %188 = arith.select %45, %12, %187 : vector<1x3xf32>
    %189 = arith.index_cast %c0_i32_12 : i32 to index
    %c0_31 = arith.constant 0 : index
    %c0_32 = arith.constant 0 : index
    %190 = vector.load %arg5[%189, %c0_31, %c0_32] : memref<8x1x4xf32, #tpu.memory_space<vmem>>, vector<1x1x4xf32>
    %191 = vector.shape_cast %190 : vector<1x1x4xf32> to vector<1x4xf32>
    %192 = vector.shape_cast %119 : vector<1x4xf32> to vector<1x1x4xf32>
    tpu.vector_store %arg5[%189, %c0_31, %c0_32], %192 {strides = array<i32>} : memref<8x1x4xf32, #tpu.memory_space<vmem>>, vector<1x1x4xf32>,
    %193 = arith.index_cast %c0_i32_12 : i32 to index
    %c0_33 = arith.constant 0 : index
    %c0_34 = arith.constant 0 : index
    %194 = vector.load %arg4[%193, %c0_33, %c0_34] : memref<8x1x3xf32, #tpu.memory_space<vmem>>, vector<1x1x3xf32>
    %195 = vector.shape_cast %194 : vector<1x1x3xf32> to vector<1x3xf32>
    %196 = vector.shape_cast %188 : vector<1x3xf32> to vector<1x1x3xf32>
    tpu.vector_store %arg4[%193, %c0_33, %c0_34], %196 {strides = array<i32>} : memref<8x1x3xf32, #tpu.memory_space<vmem>>, vector<1x1x3xf32>,
    %c1_i32_35 = arith.constant 1 : i32
    %197 = arith.index_cast %c1_i32_35 : i32 to index
    %198 = memref.load %arg0[%197] : memref<8xi32, #tpu.memory_space<smem>>
    %c0_i32_36 = arith.constant 0 : i32
    %199 = arith.cmpi slt, %198, %c0_i32_36 : i32
    %c0_i32_37 = arith.constant 0 : i32
    %200 = arith.maxsi %198, %c0_i32_37 : i32
    %201 = arith.index_cast %c1_i32_35 : i32 to index
    %c0_38 = arith.constant 0 : index
    %c0_39 = arith.constant 0 : index
    %202 = vector.load %arg6[%201, %c0_38, %c0_39] : memref<8x1x4xf32, #tpu.memory_space<vmem>>, vector<1x1x4xf32>
    %203 = vector.shape_cast %202 : vector<1x1x4xf32> to vector<1x4xf32>
    %204 = arith.index_cast %c1_i32_35 : i32 to index
    %c0_40 = arith.constant 0 : index
    %c0_41 = arith.constant 0 : index
    %205 = vector.load %arg2[%204, %c0_40, %c0_41] : memref<8x1x3xf32, #tpu.memory_space<vmem>>, vector<1x1x3xf32>
    %206 = vector.shape_cast %205 : vector<1x1x3xf32> to vector<1x3xf32>
    %c1_i32_42 = arith.constant 1 : i32
    %207 = arith.subi %c1_i32_35, %c1_i32_42 : i32
    %208 = arith.cmpi eq, %198, %207 : i32
    %209 = arith.extui %208 : i1 to i32
    %c0_i32_43 = arith.constant 0 : i32
    %210 = arith.cmpi ne, %209, %c0_i32_43 : i32
    %211:2 = scf.if %210 -> (vector<1x4xf32>, vector<1x3xf32>) {
      scf.yield %119, %188 : vector<1x4xf32>, vector<1x3xf32>
    } else {
      %1275 = arith.index_cast %200 : i32 to index
      %c0_192 = arith.constant 0 : index
      %c0_193 = arith.constant 0 : index
      %1276 = vector.load %arg5[%1275, %c0_192, %c0_193] : memref<8x1x4xf32, #tpu.memory_space<vmem>>, vector<1x1x4xf32>
      %1277 = vector.shape_cast %1276 : vector<1x1x4xf32> to vector<1x4xf32>
      %1278 = arith.index_cast %200 : i32 to index
      %c0_194 = arith.constant 0 : index
      %c0_195 = arith.constant 0 : index
      %1279 = vector.load %arg4[%1278, %c0_194, %c0_195] : memref<8x1x3xf32, #tpu.memory_space<vmem>>, vector<1x1x3xf32>
      %1280 = vector.shape_cast %1279 : vector<1x1x3xf32> to vector<1x3xf32>
      scf.yield %1277, %1280 : vector<1x4xf32>, vector<1x3xf32>
    }
    %212 = vector.extract_strided_slice %211#0 {offsets = [0, 0], sizes = [1, 1], strides = [1, 1]} : vector<1x4xf32> to vector<1x1xf32>
    %213 = vector.extract_strided_slice %211#0 {offsets = [0, 1], sizes = [1, 1], strides = [1, 1]} : vector<1x4xf32> to vector<1x1xf32>
    %214 = vector.extract_strided_slice %211#0 {offsets = [0, 2], sizes = [1, 1], strides = [1, 1]} : vector<1x4xf32> to vector<1x1xf32>
    %215 = vector.extract_strided_slice %211#0 {offsets = [0, 3], sizes = [1, 1], strides = [1, 1]} : vector<1x4xf32> to vector<1x1xf32>
    %216 = vector.extract_strided_slice %203 {offsets = [0, 0], sizes = [1, 1], strides = [1, 1]} : vector<1x4xf32> to vector<1x1xf32>
    %217 = vector.extract_strided_slice %203 {offsets = [0, 1], sizes = [1, 1], strides = [1, 1]} : vector<1x4xf32> to vector<1x1xf32>
    %218 = vector.extract_strided_slice %203 {offsets = [0, 2], sizes = [1, 1], strides = [1, 1]} : vector<1x4xf32> to vector<1x1xf32>
    %219 = vector.extract_strided_slice %203 {offsets = [0, 3], sizes = [1, 1], strides = [1, 1]} : vector<1x4xf32> to vector<1x1xf32>
    %220 = arith.mulf %215, %216 : vector<1x1xf32>
    %221 = arith.mulf %212, %219 : vector<1x1xf32>
    %222 = arith.addf %220, %221 : vector<1x1xf32>
    %223 = arith.mulf %213, %218 : vector<1x1xf32>
    %224 = arith.addf %222, %223 : vector<1x1xf32>
    %225 = arith.mulf %214, %217 : vector<1x1xf32>
    %226 = arith.subf %224, %225 : vector<1x1xf32>
    %227 = arith.mulf %215, %217 : vector<1x1xf32>
    %228 = arith.mulf %212, %218 : vector<1x1xf32>
    %229 = arith.subf %227, %228 : vector<1x1xf32>
    %230 = arith.mulf %213, %219 : vector<1x1xf32>
    %231 = arith.addf %229, %230 : vector<1x1xf32>
    %232 = arith.mulf %214, %216 : vector<1x1xf32>
    %233 = arith.addf %231, %232 : vector<1x1xf32>
    %234 = arith.mulf %215, %218 : vector<1x1xf32>
    %235 = arith.mulf %212, %217 : vector<1x1xf32>
    %236 = arith.addf %234, %235 : vector<1x1xf32>
    %237 = arith.mulf %213, %216 : vector<1x1xf32>
    %238 = arith.subf %236, %237 : vector<1x1xf32>
    %239 = arith.mulf %214, %219 : vector<1x1xf32>
    %240 = arith.addf %238, %239 : vector<1x1xf32>
    %241 = arith.mulf %215, %219 : vector<1x1xf32>
    %242 = arith.mulf %212, %216 : vector<1x1xf32>
    %243 = arith.subf %241, %242 : vector<1x1xf32>
    %244 = arith.mulf %213, %217 : vector<1x1xf32>
    %245 = arith.subf %243, %244 : vector<1x1xf32>
    %246 = arith.mulf %214, %218 : vector<1x1xf32>
    %247 = arith.subf %245, %246 : vector<1x1xf32>
    %248 = arith.mulf %226, %226 : vector<1x1xf32>
    %249 = arith.mulf %233, %233 : vector<1x1xf32>
    %250 = arith.addf %248, %249 : vector<1x1xf32>
    %251 = arith.mulf %240, %240 : vector<1x1xf32>
    %252 = arith.addf %250, %251 : vector<1x1xf32>
    %253 = arith.mulf %247, %247 : vector<1x1xf32>
    %254 = arith.addf %252, %253 : vector<1x1xf32>
    %255 = math.sqrt %254 : vector<1x1xf32>
    %cst_44 = arith.constant 9.99999974E-6 : f32
    %256 = vector.broadcast %cst_44 : f32 to vector<1x1xf32>
    %257 = arith.addf %255, %256 : vector<1x1xf32>
    %cst_45 = arith.constant 1.000000e+00 : f32
    %258 = vector.broadcast %cst_45 : f32 to vector<1x1xf32>
    %259 = arith.divf %258, %257 : vector<1x1xf32>
    %260 = vector.broadcast %226 : vector<1x1xf32> to vector<1x4xf32>
    %261 = arith.mulf %260, %18 : vector<1x4xf32>
    %262 = vector.broadcast %233 : vector<1x1xf32> to vector<1x4xf32>
    %263 = arith.mulf %262, %22 : vector<1x4xf32>
    %264 = arith.addf %261, %263 : vector<1x4xf32>
    %265 = vector.broadcast %240 : vector<1x1xf32> to vector<1x4xf32>
    %266 = arith.mulf %265, %26 : vector<1x4xf32>
    %267 = arith.addf %264, %266 : vector<1x4xf32>
    %268 = vector.broadcast %247 : vector<1x1xf32> to vector<1x4xf32>
    %269 = arith.mulf %268, %30 : vector<1x4xf32>
    %270 = arith.addf %267, %269 : vector<1x4xf32>
    %271 = vector.broadcast %259 : vector<1x1xf32> to vector<1x4xf32>
    %272 = arith.mulf %270, %271 : vector<1x4xf32>
    %273 = arith.select %199, %203, %272 : vector<1x4xf32>
    %274 = arith.mulf %212, %212 : vector<1x1xf32>
    %275 = arith.mulf %213, %213 : vector<1x1xf32>
    %276 = arith.mulf %214, %214 : vector<1x1xf32>
    %277 = arith.mulf %215, %215 : vector<1x1xf32>
    %278 = arith.mulf %212, %213 : vector<1x1xf32>
    %279 = arith.mulf %214, %215 : vector<1x1xf32>
    %280 = arith.mulf %212, %214 : vector<1x1xf32>
    %281 = arith.mulf %213, %215 : vector<1x1xf32>
    %282 = arith.mulf %213, %214 : vector<1x1xf32>
    %283 = arith.mulf %212, %215 : vector<1x1xf32>
    %284 = vector.extract_strided_slice %206 {offsets = [0, 0], sizes = [1, 1], strides = [1, 1]} : vector<1x3xf32> to vector<1x1xf32>
    %285 = vector.extract_strided_slice %206 {offsets = [0, 1], sizes = [1, 1], strides = [1, 1]} : vector<1x3xf32> to vector<1x1xf32>
    %286 = vector.extract_strided_slice %206 {offsets = [0, 2], sizes = [1, 1], strides = [1, 1]} : vector<1x3xf32> to vector<1x1xf32>
    %287 = arith.subf %274, %275 : vector<1x1xf32>
    %288 = arith.subf %287, %276 : vector<1x1xf32>
    %289 = arith.addf %288, %277 : vector<1x1xf32>
    %290 = arith.mulf %289, %284 : vector<1x1xf32>
    %291 = arith.subf %278, %279 : vector<1x1xf32>
    %cst_46 = arith.constant 2.000000e+00 : f32
    %292 = vector.broadcast %cst_46 : f32 to vector<1x1xf32>
    %293 = arith.mulf %292, %291 : vector<1x1xf32>
    %294 = arith.mulf %293, %285 : vector<1x1xf32>
    %295 = arith.addf %290, %294 : vector<1x1xf32>
    %296 = arith.addf %280, %281 : vector<1x1xf32>
    %cst_47 = arith.constant 2.000000e+00 : f32
    %297 = vector.broadcast %cst_47 : f32 to vector<1x1xf32>
    %298 = arith.mulf %297, %296 : vector<1x1xf32>
    %299 = arith.mulf %298, %286 : vector<1x1xf32>
    %300 = arith.addf %295, %299 : vector<1x1xf32>
    %301 = arith.addf %278, %279 : vector<1x1xf32>
    %cst_48 = arith.constant 2.000000e+00 : f32
    %302 = vector.broadcast %cst_48 : f32 to vector<1x1xf32>
    %303 = arith.mulf %302, %301 : vector<1x1xf32>
    %304 = arith.mulf %303, %284 : vector<1x1xf32>
    %cst_49 = arith.constant 0.000000e+00 : f32
    %305 = vector.broadcast %cst_49 : f32 to vector<1x1xf32>
    %306 = arith.subf %305, %274 : vector<1x1xf32>
    %307 = arith.addf %306, %275 : vector<1x1xf32>
    %308 = arith.subf %307, %276 : vector<1x1xf32>
    %309 = arith.addf %308, %277 : vector<1x1xf32>
    %310 = arith.mulf %309, %285 : vector<1x1xf32>
    %311 = arith.addf %304, %310 : vector<1x1xf32>
    %312 = arith.subf %282, %283 : vector<1x1xf32>
    %cst_50 = arith.constant 2.000000e+00 : f32
    %313 = vector.broadcast %cst_50 : f32 to vector<1x1xf32>
    %314 = arith.mulf %313, %312 : vector<1x1xf32>
    %315 = arith.mulf %314, %286 : vector<1x1xf32>
    %316 = arith.addf %311, %315 : vector<1x1xf32>
    %317 = arith.subf %280, %281 : vector<1x1xf32>
    %cst_51 = arith.constant 2.000000e+00 : f32
    %318 = vector.broadcast %cst_51 : f32 to vector<1x1xf32>
    %319 = arith.mulf %318, %317 : vector<1x1xf32>
    %320 = arith.mulf %319, %284 : vector<1x1xf32>
    %321 = arith.addf %282, %283 : vector<1x1xf32>
    %cst_52 = arith.constant 2.000000e+00 : f32
    %322 = vector.broadcast %cst_52 : f32 to vector<1x1xf32>
    %323 = arith.mulf %322, %321 : vector<1x1xf32>
    %324 = arith.mulf %323, %285 : vector<1x1xf32>
    %325 = arith.addf %320, %324 : vector<1x1xf32>
    %cst_53 = arith.constant 0.000000e+00 : f32
    %326 = vector.broadcast %cst_53 : f32 to vector<1x1xf32>
    %327 = arith.subf %326, %274 : vector<1x1xf32>
    %328 = arith.subf %327, %275 : vector<1x1xf32>
    %329 = arith.addf %328, %276 : vector<1x1xf32>
    %330 = arith.addf %329, %277 : vector<1x1xf32>
    %331 = arith.mulf %330, %286 : vector<1x1xf32>
    %332 = arith.addf %325, %331 : vector<1x1xf32>
    %333 = vector.broadcast %300 : vector<1x1xf32> to vector<1x3xf32>
    %334 = arith.mulf %333, %34 : vector<1x3xf32>
    %335 = vector.broadcast %316 : vector<1x1xf32> to vector<1x3xf32>
    %336 = arith.mulf %335, %38 : vector<1x3xf32>
    %337 = arith.addf %334, %336 : vector<1x3xf32>
    %338 = vector.broadcast %332 : vector<1x1xf32> to vector<1x3xf32>
    %339 = arith.mulf %338, %42 : vector<1x3xf32>
    %340 = arith.addf %337, %339 : vector<1x3xf32>
    %341 = arith.addf %340, %211#1 : vector<1x3xf32>
    %342 = arith.select %199, %12, %341 : vector<1x3xf32>
    %343 = arith.index_cast %c1_i32_35 : i32 to index
    %c0_54 = arith.constant 0 : index
    %c0_55 = arith.constant 0 : index
    %344 = vector.load %arg5[%343, %c0_54, %c0_55] : memref<8x1x4xf32, #tpu.memory_space<vmem>>, vector<1x1x4xf32>
    %345 = vector.shape_cast %344 : vector<1x1x4xf32> to vector<1x4xf32>
    %346 = vector.shape_cast %273 : vector<1x4xf32> to vector<1x1x4xf32>
    tpu.vector_store %arg5[%343, %c0_54, %c0_55], %346 {strides = array<i32>} : memref<8x1x4xf32, #tpu.memory_space<vmem>>, vector<1x1x4xf32>,
    %347 = arith.index_cast %c1_i32_35 : i32 to index
    %c0_56 = arith.constant 0 : index
    %c0_57 = arith.constant 0 : index
    %348 = vector.load %arg4[%347, %c0_56, %c0_57] : memref<8x1x3xf32, #tpu.memory_space<vmem>>, vector<1x1x3xf32>
    %349 = vector.shape_cast %348 : vector<1x1x3xf32> to vector<1x3xf32>
    %350 = vector.shape_cast %342 : vector<1x3xf32> to vector<1x1x3xf32>
    tpu.vector_store %arg4[%347, %c0_56, %c0_57], %350 {strides = array<i32>} : memref<8x1x3xf32, #tpu.memory_space<vmem>>, vector<1x1x3xf32>,
    %c2_i32_58 = arith.constant 2 : i32
    %351 = arith.index_cast %c2_i32_58 : i32 to index
    %352 = memref.load %arg0[%351] : memref<8xi32, #tpu.memory_space<smem>>
    %c0_i32_59 = arith.constant 0 : i32
    %353 = arith.cmpi slt, %352, %c0_i32_59 : i32
    %c0_i32_60 = arith.constant 0 : i32
    %354 = arith.maxsi %352, %c0_i32_60 : i32
    %355 = arith.index_cast %c2_i32_58 : i32 to index
    %c0_61 = arith.constant 0 : index
    %c0_62 = arith.constant 0 : index
    %356 = vector.load %arg6[%355, %c0_61, %c0_62] : memref<8x1x4xf32, #tpu.memory_space<vmem>>, vector<1x1x4xf32>
    %357 = vector.shape_cast %356 : vector<1x1x4xf32> to vector<1x4xf32>
    %358 = arith.index_cast %c2_i32_58 : i32 to index
    %c0_63 = arith.constant 0 : index
    %c0_64 = arith.constant 0 : index
    %359 = vector.load %arg2[%358, %c0_63, %c0_64] : memref<8x1x3xf32, #tpu.memory_space<vmem>>, vector<1x1x3xf32>
    %360 = vector.shape_cast %359 : vector<1x1x3xf32> to vector<1x3xf32>
    %c1_i32_65 = arith.constant 1 : i32
    %361 = arith.subi %c2_i32_58, %c1_i32_65 : i32
    %362 = arith.cmpi eq, %352, %361 : i32
    %363 = arith.extui %362 : i1 to i32
    %c0_i32_66 = arith.constant 0 : i32
    %364 = arith.cmpi ne, %363, %c0_i32_66 : i32
    %365:2 = scf.if %364 -> (vector<1x4xf32>, vector<1x3xf32>) {
      scf.yield %273, %342 : vector<1x4xf32>, vector<1x3xf32>
    } else {
      %1275 = arith.index_cast %354 : i32 to index
      %c0_192 = arith.constant 0 : index
      %c0_193 = arith.constant 0 : index
      %1276 = vector.load %arg5[%1275, %c0_192, %c0_193] : memref<8x1x4xf32, #tpu.memory_space<vmem>>, vector<1x1x4xf32>
      %1277 = vector.shape_cast %1276 : vector<1x1x4xf32> to vector<1x4xf32>
      %1278 = arith.index_cast %354 : i32 to index
      %c0_194 = arith.constant 0 : index
      %c0_195 = arith.constant 0 : index
      %1279 = vector.load %arg4[%1278, %c0_194, %c0_195] : memref<8x1x3xf32, #tpu.memory_space<vmem>>, vector<1x1x3xf32>
      %1280 = vector.shape_cast %1279 : vector<1x1x3xf32> to vector<1x3xf32>
      scf.yield %1277, %1280 : vector<1x4xf32>, vector<1x3xf32>
    }
    %366 = vector.extract_strided_slice %365#0 {offsets = [0, 0], sizes = [1, 1], strides = [1, 1]} : vector<1x4xf32> to vector<1x1xf32>
    %367 = vector.extract_strided_slice %365#0 {offsets = [0, 1], sizes = [1, 1], strides = [1, 1]} : vector<1x4xf32> to vector<1x1xf32>
    %368 = vector.extract_strided_slice %365#0 {offsets = [0, 2], sizes = [1, 1], strides = [1, 1]} : vector<1x4xf32> to vector<1x1xf32>
    %369 = vector.extract_strided_slice %365#0 {offsets = [0, 3], sizes = [1, 1], strides = [1, 1]} : vector<1x4xf32> to vector<1x1xf32>
    %370 = vector.extract_strided_slice %357 {offsets = [0, 0], sizes = [1, 1], strides = [1, 1]} : vector<1x4xf32> to vector<1x1xf32>
    %371 = vector.extract_strided_slice %357 {offsets = [0, 1], sizes = [1, 1], strides = [1, 1]} : vector<1x4xf32> to vector<1x1xf32>
    %372 = vector.extract_strided_slice %357 {offsets = [0, 2], sizes = [1, 1], strides = [1, 1]} : vector<1x4xf32> to vector<1x1xf32>
    %373 = vector.extract_strided_slice %357 {offsets = [0, 3], sizes = [1, 1], strides = [1, 1]} : vector<1x4xf32> to vector<1x1xf32>
    %374 = arith.mulf %369, %370 : vector<1x1xf32>
    %375 = arith.mulf %366, %373 : vector<1x1xf32>
    %376 = arith.addf %374, %375 : vector<1x1xf32>
    %377 = arith.mulf %367, %372 : vector<1x1xf32>
    %378 = arith.addf %376, %377 : vector<1x1xf32>
    %379 = arith.mulf %368, %371 : vector<1x1xf32>
    %380 = arith.subf %378, %379 : vector<1x1xf32>
    %381 = arith.mulf %369, %371 : vector<1x1xf32>
    %382 = arith.mulf %366, %372 : vector<1x1xf32>
    %383 = arith.subf %381, %382 : vector<1x1xf32>
    %384 = arith.mulf %367, %373 : vector<1x1xf32>
    %385 = arith.addf %383, %384 : vector<1x1xf32>
    %386 = arith.mulf %368, %370 : vector<1x1xf32>
    %387 = arith.addf %385, %386 : vector<1x1xf32>
    %388 = arith.mulf %369, %372 : vector<1x1xf32>
    %389 = arith.mulf %366, %371 : vector<1x1xf32>
    %390 = arith.addf %388, %389 : vector<1x1xf32>
    %391 = arith.mulf %367, %370 : vector<1x1xf32>
    %392 = arith.subf %390, %391 : vector<1x1xf32>
    %393 = arith.mulf %368, %373 : vector<1x1xf32>
    %394 = arith.addf %392, %393 : vector<1x1xf32>
    %395 = arith.mulf %369, %373 : vector<1x1xf32>
    %396 = arith.mulf %366, %370 : vector<1x1xf32>
    %397 = arith.subf %395, %396 : vector<1x1xf32>
    %398 = arith.mulf %367, %371 : vector<1x1xf32>
    %399 = arith.subf %397, %398 : vector<1x1xf32>
    %400 = arith.mulf %368, %372 : vector<1x1xf32>
    %401 = arith.subf %399, %400 : vector<1x1xf32>
    %402 = arith.mulf %380, %380 : vector<1x1xf32>
    %403 = arith.mulf %387, %387 : vector<1x1xf32>
    %404 = arith.addf %402, %403 : vector<1x1xf32>
    %405 = arith.mulf %394, %394 : vector<1x1xf32>
    %406 = arith.addf %404, %405 : vector<1x1xf32>
    %407 = arith.mulf %401, %401 : vector<1x1xf32>
    %408 = arith.addf %406, %407 : vector<1x1xf32>
    %409 = math.sqrt %408 : vector<1x1xf32>
    %cst_67 = arith.constant 9.99999974E-6 : f32
    %410 = vector.broadcast %cst_67 : f32 to vector<1x1xf32>
    %411 = arith.addf %409, %410 : vector<1x1xf32>
    %cst_68 = arith.constant 1.000000e+00 : f32
    %412 = vector.broadcast %cst_68 : f32 to vector<1x1xf32>
    %413 = arith.divf %412, %411 : vector<1x1xf32>
    %414 = vector.broadcast %380 : vector<1x1xf32> to vector<1x4xf32>
    %415 = arith.mulf %414, %18 : vector<1x4xf32>
    %416 = vector.broadcast %387 : vector<1x1xf32> to vector<1x4xf32>
    %417 = arith.mulf %416, %22 : vector<1x4xf32>
    %418 = arith.addf %415, %417 : vector<1x4xf32>
    %419 = vector.broadcast %394 : vector<1x1xf32> to vector<1x4xf32>
    %420 = arith.mulf %419, %26 : vector<1x4xf32>
    %421 = arith.addf %418, %420 : vector<1x4xf32>
    %422 = vector.broadcast %401 : vector<1x1xf32> to vector<1x4xf32>
    %423 = arith.mulf %422, %30 : vector<1x4xf32>
    %424 = arith.addf %421, %423 : vector<1x4xf32>
    %425 = vector.broadcast %413 : vector<1x1xf32> to vector<1x4xf32>
    %426 = arith.mulf %424, %425 : vector<1x4xf32>
    %427 = arith.select %353, %357, %426 : vector<1x4xf32>
    %428 = arith.mulf %366, %366 : vector<1x1xf32>
    %429 = arith.mulf %367, %367 : vector<1x1xf32>
    %430 = arith.mulf %368, %368 : vector<1x1xf32>
    %431 = arith.mulf %369, %369 : vector<1x1xf32>
    %432 = arith.mulf %366, %367 : vector<1x1xf32>
    %433 = arith.mulf %368, %369 : vector<1x1xf32>
    %434 = arith.mulf %366, %368 : vector<1x1xf32>
    %435 = arith.mulf %367, %369 : vector<1x1xf32>
    %436 = arith.mulf %367, %368 : vector<1x1xf32>
    %437 = arith.mulf %366, %369 : vector<1x1xf32>
    %438 = vector.extract_strided_slice %360 {offsets = [0, 0], sizes = [1, 1], strides = [1, 1]} : vector<1x3xf32> to vector<1x1xf32>
    %439 = vector.extract_strided_slice %360 {offsets = [0, 1], sizes = [1, 1], strides = [1, 1]} : vector<1x3xf32> to vector<1x1xf32>
    %440 = vector.extract_strided_slice %360 {offsets = [0, 2], sizes = [1, 1], strides = [1, 1]} : vector<1x3xf32> to vector<1x1xf32>
    %441 = arith.subf %428, %429 : vector<1x1xf32>
    %442 = arith.subf %441, %430 : vector<1x1xf32>
    %443 = arith.addf %442, %431 : vector<1x1xf32>
    %444 = arith.mulf %443, %438 : vector<1x1xf32>
    %445 = arith.subf %432, %433 : vector<1x1xf32>
    %cst_69 = arith.constant 2.000000e+00 : f32
    %446 = vector.broadcast %cst_69 : f32 to vector<1x1xf32>
    %447 = arith.mulf %446, %445 : vector<1x1xf32>
    %448 = arith.mulf %447, %439 : vector<1x1xf32>
    %449 = arith.addf %444, %448 : vector<1x1xf32>
    %450 = arith.addf %434, %435 : vector<1x1xf32>
    %cst_70 = arith.constant 2.000000e+00 : f32
    %451 = vector.broadcast %cst_70 : f32 to vector<1x1xf32>
    %452 = arith.mulf %451, %450 : vector<1x1xf32>
    %453 = arith.mulf %452, %440 : vector<1x1xf32>
    %454 = arith.addf %449, %453 : vector<1x1xf32>
    %455 = arith.addf %432, %433 : vector<1x1xf32>
    %cst_71 = arith.constant 2.000000e+00 : f32
    %456 = vector.broadcast %cst_71 : f32 to vector<1x1xf32>
    %457 = arith.mulf %456, %455 : vector<1x1xf32>
    %458 = arith.mulf %457, %438 : vector<1x1xf32>
    %cst_72 = arith.constant 0.000000e+00 : f32
    %459 = vector.broadcast %cst_72 : f32 to vector<1x1xf32>
    %460 = arith.subf %459, %428 : vector<1x1xf32>
    %461 = arith.addf %460, %429 : vector<1x1xf32>
    %462 = arith.subf %461, %430 : vector<1x1xf32>
    %463 = arith.addf %462, %431 : vector<1x1xf32>
    %464 = arith.mulf %463, %439 : vector<1x1xf32>
    %465 = arith.addf %458, %464 : vector<1x1xf32>
    %466 = arith.subf %436, %437 : vector<1x1xf32>
    %cst_73 = arith.constant 2.000000e+00 : f32
    %467 = vector.broadcast %cst_73 : f32 to vector<1x1xf32>
    %468 = arith.mulf %467, %466 : vector<1x1xf32>
    %469 = arith.mulf %468, %440 : vector<1x1xf32>
    %470 = arith.addf %465, %469 : vector<1x1xf32>
    %471 = arith.subf %434, %435 : vector<1x1xf32>
    %cst_74 = arith.constant 2.000000e+00 : f32
    %472 = vector.broadcast %cst_74 : f32 to vector<1x1xf32>
    %473 = arith.mulf %472, %471 : vector<1x1xf32>
    %474 = arith.mulf %473, %438 : vector<1x1xf32>
    %475 = arith.addf %436, %437 : vector<1x1xf32>
    %cst_75 = arith.constant 2.000000e+00 : f32
    %476 = vector.broadcast %cst_75 : f32 to vector<1x1xf32>
    %477 = arith.mulf %476, %475 : vector<1x1xf32>
    %478 = arith.mulf %477, %439 : vector<1x1xf32>
    %479 = arith.addf %474, %478 : vector<1x1xf32>
    %cst_76 = arith.constant 0.000000e+00 : f32
    %480 = vector.broadcast %cst_76 : f32 to vector<1x1xf32>
    %481 = arith.subf %480, %428 : vector<1x1xf32>
    %482 = arith.subf %481, %429 : vector<1x1xf32>
    %483 = arith.addf %482, %430 : vector<1x1xf32>
    %484 = arith.addf %483, %431 : vector<1x1xf32>
    %485 = arith.mulf %484, %440 : vector<1x1xf32>
    %486 = arith.addf %479, %485 : vector<1x1xf32>
    %487 = vector.broadcast %454 : vector<1x1xf32> to vector<1x3xf32>
    %488 = arith.mulf %487, %34 : vector<1x3xf32>
    %489 = vector.broadcast %470 : vector<1x1xf32> to vector<1x3xf32>
    %490 = arith.mulf %489, %38 : vector<1x3xf32>
    %491 = arith.addf %488, %490 : vector<1x3xf32>
    %492 = vector.broadcast %486 : vector<1x1xf32> to vector<1x3xf32>
    %493 = arith.mulf %492, %42 : vector<1x3xf32>
    %494 = arith.addf %491, %493 : vector<1x3xf32>
    %495 = arith.addf %494, %365#1 : vector<1x3xf32>
    %496 = arith.select %353, %12, %495 : vector<1x3xf32>
    %497 = arith.index_cast %c2_i32_58 : i32 to index
    %c0_77 = arith.constant 0 : index
    %c0_78 = arith.constant 0 : index
    %498 = vector.load %arg5[%497, %c0_77, %c0_78] : memref<8x1x4xf32, #tpu.memory_space<vmem>>, vector<1x1x4xf32>
    %499 = vector.shape_cast %498 : vector<1x1x4xf32> to vector<1x4xf32>
    %500 = vector.shape_cast %427 : vector<1x4xf32> to vector<1x1x4xf32>
    tpu.vector_store %arg5[%497, %c0_77, %c0_78], %500 {strides = array<i32>} : memref<8x1x4xf32, #tpu.memory_space<vmem>>, vector<1x1x4xf32>,
    %501 = arith.index_cast %c2_i32_58 : i32 to index
    %c0_79 = arith.constant 0 : index
    %c0_80 = arith.constant 0 : index
    %502 = vector.load %arg4[%501, %c0_79, %c0_80] : memref<8x1x3xf32, #tpu.memory_space<vmem>>, vector<1x1x3xf32>
    %503 = vector.shape_cast %502 : vector<1x1x3xf32> to vector<1x3xf32>
    %504 = vector.shape_cast %496 : vector<1x3xf32> to vector<1x1x3xf32>
    tpu.vector_store %arg4[%501, %c0_79, %c0_80], %504 {strides = array<i32>} : memref<8x1x3xf32, #tpu.memory_space<vmem>>, vector<1x1x3xf32>,
    %c3_i32_81 = arith.constant 3 : i32
    %505 = arith.index_cast %c3_i32_81 : i32 to index
    %506 = memref.load %arg0[%505] : memref<8xi32, #tpu.memory_space<smem>>
    %c0_i32_82 = arith.constant 0 : i32
    %507 = arith.cmpi slt, %506, %c0_i32_82 : i32
    %c0_i32_83 = arith.constant 0 : i32
    %508 = arith.maxsi %506, %c0_i32_83 : i32
    %509 = arith.index_cast %c3_i32_81 : i32 to index
    %c0_84 = arith.constant 0 : index
    %c0_85 = arith.constant 0 : index
    %510 = vector.load %arg6[%509, %c0_84, %c0_85] : memref<8x1x4xf32, #tpu.memory_space<vmem>>, vector<1x1x4xf32>
    %511 = vector.shape_cast %510 : vector<1x1x4xf32> to vector<1x4xf32>
    %512 = arith.index_cast %c3_i32_81 : i32 to index
    %c0_86 = arith.constant 0 : index
    %c0_87 = arith.constant 0 : index
    %513 = vector.load %arg2[%512, %c0_86, %c0_87] : memref<8x1x3xf32, #tpu.memory_space<vmem>>, vector<1x1x3xf32>
    %514 = vector.shape_cast %513 : vector<1x1x3xf32> to vector<1x3xf32>
    %c1_i32_88 = arith.constant 1 : i32
    %515 = arith.subi %c3_i32_81, %c1_i32_88 : i32
    %516 = arith.cmpi eq, %506, %515 : i32
    %517 = arith.extui %516 : i1 to i32
    %c0_i32_89 = arith.constant 0 : i32
    %518 = arith.cmpi ne, %517, %c0_i32_89 : i32
    %519:2 = scf.if %518 -> (vector<1x4xf32>, vector<1x3xf32>) {
      scf.yield %427, %496 : vector<1x4xf32>, vector<1x3xf32>
    } else {
      %1275 = arith.index_cast %508 : i32 to index
      %c0_192 = arith.constant 0 : index
      %c0_193 = arith.constant 0 : index
      %1276 = vector.load %arg5[%1275, %c0_192, %c0_193] : memref<8x1x4xf32, #tpu.memory_space<vmem>>, vector<1x1x4xf32>
      %1277 = vector.shape_cast %1276 : vector<1x1x4xf32> to vector<1x4xf32>
      %1278 = arith.index_cast %508 : i32 to index
      %c0_194 = arith.constant 0 : index
      %c0_195 = arith.constant 0 : index
      %1279 = vector.load %arg4[%1278, %c0_194, %c0_195] : memref<8x1x3xf32, #tpu.memory_space<vmem>>, vector<1x1x3xf32>
      %1280 = vector.shape_cast %1279 : vector<1x1x3xf32> to vector<1x3xf32>
      scf.yield %1277, %1280 : vector<1x4xf32>, vector<1x3xf32>
    }
    %520 = vector.extract_strided_slice %519#0 {offsets = [0, 0], sizes = [1, 1], strides = [1, 1]} : vector<1x4xf32> to vector<1x1xf32>
    %521 = vector.extract_strided_slice %519#0 {offsets = [0, 1], sizes = [1, 1], strides = [1, 1]} : vector<1x4xf32> to vector<1x1xf32>
    %522 = vector.extract_strided_slice %519#0 {offsets = [0, 2], sizes = [1, 1], strides = [1, 1]} : vector<1x4xf32> to vector<1x1xf32>
    %523 = vector.extract_strided_slice %519#0 {offsets = [0, 3], sizes = [1, 1], strides = [1, 1]} : vector<1x4xf32> to vector<1x1xf32>
    %524 = vector.extract_strided_slice %511 {offsets = [0, 0], sizes = [1, 1], strides = [1, 1]} : vector<1x4xf32> to vector<1x1xf32>
    %525 = vector.extract_strided_slice %511 {offsets = [0, 1], sizes = [1, 1], strides = [1, 1]} : vector<1x4xf32> to vector<1x1xf32>
    %526 = vector.extract_strided_slice %511 {offsets = [0, 2], sizes = [1, 1], strides = [1, 1]} : vector<1x4xf32> to vector<1x1xf32>
    %527 = vector.extract_strided_slice %511 {offsets = [0, 3], sizes = [1, 1], strides = [1, 1]} : vector<1x4xf32> to vector<1x1xf32>
    %528 = arith.mulf %523, %524 : vector<1x1xf32>
    %529 = arith.mulf %520, %527 : vector<1x1xf32>
    %530 = arith.addf %528, %529 : vector<1x1xf32>
    %531 = arith.mulf %521, %526 : vector<1x1xf32>
    %532 = arith.addf %530, %531 : vector<1x1xf32>
    %533 = arith.mulf %522, %525 : vector<1x1xf32>
    %534 = arith.subf %532, %533 : vector<1x1xf32>
    %535 = arith.mulf %523, %525 : vector<1x1xf32>
    %536 = arith.mulf %520, %526 : vector<1x1xf32>
    %537 = arith.subf %535, %536 : vector<1x1xf32>
    %538 = arith.mulf %521, %527 : vector<1x1xf32>
    %539 = arith.addf %537, %538 : vector<1x1xf32>
    %540 = arith.mulf %522, %524 : vector<1x1xf32>
    %541 = arith.addf %539, %540 : vector<1x1xf32>
    %542 = arith.mulf %523, %526 : vector<1x1xf32>
    %543 = arith.mulf %520, %525 : vector<1x1xf32>
    %544 = arith.addf %542, %543 : vector<1x1xf32>
    %545 = arith.mulf %521, %524 : vector<1x1xf32>
    %546 = arith.subf %544, %545 : vector<1x1xf32>
    %547 = arith.mulf %522, %527 : vector<1x1xf32>
    %548 = arith.addf %546, %547 : vector<1x1xf32>
    %549 = arith.mulf %523, %527 : vector<1x1xf32>
    %550 = arith.mulf %520, %524 : vector<1x1xf32>
    %551 = arith.subf %549, %550 : vector<1x1xf32>
    %552 = arith.mulf %521, %525 : vector<1x1xf32>
    %553 = arith.subf %551, %552 : vector<1x1xf32>
    %554 = arith.mulf %522, %526 : vector<1x1xf32>
    %555 = arith.subf %553, %554 : vector<1x1xf32>
    %556 = arith.mulf %534, %534 : vector<1x1xf32>
    %557 = arith.mulf %541, %541 : vector<1x1xf32>
    %558 = arith.addf %556, %557 : vector<1x1xf32>
    %559 = arith.mulf %548, %548 : vector<1x1xf32>
    %560 = arith.addf %558, %559 : vector<1x1xf32>
    %561 = arith.mulf %555, %555 : vector<1x1xf32>
    %562 = arith.addf %560, %561 : vector<1x1xf32>
    %563 = math.sqrt %562 : vector<1x1xf32>
    %cst_90 = arith.constant 9.99999974E-6 : f32
    %564 = vector.broadcast %cst_90 : f32 to vector<1x1xf32>
    %565 = arith.addf %563, %564 : vector<1x1xf32>
    %cst_91 = arith.constant 1.000000e+00 : f32
    %566 = vector.broadcast %cst_91 : f32 to vector<1x1xf32>
    %567 = arith.divf %566, %565 : vector<1x1xf32>
    %568 = vector.broadcast %534 : vector<1x1xf32> to vector<1x4xf32>
    %569 = arith.mulf %568, %18 : vector<1x4xf32>
    %570 = vector.broadcast %541 : vector<1x1xf32> to vector<1x4xf32>
    %571 = arith.mulf %570, %22 : vector<1x4xf32>
    %572 = arith.addf %569, %571 : vector<1x4xf32>
    %573 = vector.broadcast %548 : vector<1x1xf32> to vector<1x4xf32>
    %574 = arith.mulf %573, %26 : vector<1x4xf32>
    %575 = arith.addf %572, %574 : vector<1x4xf32>
    %576 = vector.broadcast %555 : vector<1x1xf32> to vector<1x4xf32>
    %577 = arith.mulf %576, %30 : vector<1x4xf32>
    %578 = arith.addf %575, %577 : vector<1x4xf32>
    %579 = vector.broadcast %567 : vector<1x1xf32> to vector<1x4xf32>
    %580 = arith.mulf %578, %579 : vector<1x4xf32>
    %581 = arith.select %507, %511, %580 : vector<1x4xf32>
    %582 = arith.mulf %520, %520 : vector<1x1xf32>
    %583 = arith.mulf %521, %521 : vector<1x1xf32>
    %584 = arith.mulf %522, %522 : vector<1x1xf32>
    %585 = arith.mulf %523, %523 : vector<1x1xf32>
    %586 = arith.mulf %520, %521 : vector<1x1xf32>
    %587 = arith.mulf %522, %523 : vector<1x1xf32>
    %588 = arith.mulf %520, %522 : vector<1x1xf32>
    %589 = arith.mulf %521, %523 : vector<1x1xf32>
    %590 = arith.mulf %521, %522 : vector<1x1xf32>
    %591 = arith.mulf %520, %523 : vector<1x1xf32>
    %592 = vector.extract_strided_slice %514 {offsets = [0, 0], sizes = [1, 1], strides = [1, 1]} : vector<1x3xf32> to vector<1x1xf32>
    %593 = vector.extract_strided_slice %514 {offsets = [0, 1], sizes = [1, 1], strides = [1, 1]} : vector<1x3xf32> to vector<1x1xf32>
    %594 = vector.extract_strided_slice %514 {offsets = [0, 2], sizes = [1, 1], strides = [1, 1]} : vector<1x3xf32> to vector<1x1xf32>
    %595 = arith.subf %582, %583 : vector<1x1xf32>
    %596 = arith.subf %595, %584 : vector<1x1xf32>
    %597 = arith.addf %596, %585 : vector<1x1xf32>
    %598 = arith.mulf %597, %592 : vector<1x1xf32>
    %599 = arith.subf %586, %587 : vector<1x1xf32>
    %cst_92 = arith.constant 2.000000e+00 : f32
    %600 = vector.broadcast %cst_92 : f32 to vector<1x1xf32>
    %601 = arith.mulf %600, %599 : vector<1x1xf32>
    %602 = arith.mulf %601, %593 : vector<1x1xf32>
    %603 = arith.addf %598, %602 : vector<1x1xf32>
    %604 = arith.addf %588, %589 : vector<1x1xf32>
    %cst_93 = arith.constant 2.000000e+00 : f32
    %605 = vector.broadcast %cst_93 : f32 to vector<1x1xf32>
    %606 = arith.mulf %605, %604 : vector<1x1xf32>
    %607 = arith.mulf %606, %594 : vector<1x1xf32>
    %608 = arith.addf %603, %607 : vector<1x1xf32>
    %609 = arith.addf %586, %587 : vector<1x1xf32>
    %cst_94 = arith.constant 2.000000e+00 : f32
    %610 = vector.broadcast %cst_94 : f32 to vector<1x1xf32>
    %611 = arith.mulf %610, %609 : vector<1x1xf32>
    %612 = arith.mulf %611, %592 : vector<1x1xf32>
    %cst_95 = arith.constant 0.000000e+00 : f32
    %613 = vector.broadcast %cst_95 : f32 to vector<1x1xf32>
    %614 = arith.subf %613, %582 : vector<1x1xf32>
    %615 = arith.addf %614, %583 : vector<1x1xf32>
    %616 = arith.subf %615, %584 : vector<1x1xf32>
    %617 = arith.addf %616, %585 : vector<1x1xf32>
    %618 = arith.mulf %617, %593 : vector<1x1xf32>
    %619 = arith.addf %612, %618 : vector<1x1xf32>
    %620 = arith.subf %590, %591 : vector<1x1xf32>
    %cst_96 = arith.constant 2.000000e+00 : f32
    %621 = vector.broadcast %cst_96 : f32 to vector<1x1xf32>
    %622 = arith.mulf %621, %620 : vector<1x1xf32>
    %623 = arith.mulf %622, %594 : vector<1x1xf32>
    %624 = arith.addf %619, %623 : vector<1x1xf32>
    %625 = arith.subf %588, %589 : vector<1x1xf32>
    %cst_97 = arith.constant 2.000000e+00 : f32
    %626 = vector.broadcast %cst_97 : f32 to vector<1x1xf32>
    %627 = arith.mulf %626, %625 : vector<1x1xf32>
    %628 = arith.mulf %627, %592 : vector<1x1xf32>
    %629 = arith.addf %590, %591 : vector<1x1xf32>
    %cst_98 = arith.constant 2.000000e+00 : f32
    %630 = vector.broadcast %cst_98 : f32 to vector<1x1xf32>
    %631 = arith.mulf %630, %629 : vector<1x1xf32>
    %632 = arith.mulf %631, %593 : vector<1x1xf32>
    %633 = arith.addf %628, %632 : vector<1x1xf32>
    %cst_99 = arith.constant 0.000000e+00 : f32
    %634 = vector.broadcast %cst_99 : f32 to vector<1x1xf32>
    %635 = arith.subf %634, %582 : vector<1x1xf32>
    %636 = arith.subf %635, %583 : vector<1x1xf32>
    %637 = arith.addf %636, %584 : vector<1x1xf32>
    %638 = arith.addf %637, %585 : vector<1x1xf32>
    %639 = arith.mulf %638, %594 : vector<1x1xf32>
    %640 = arith.addf %633, %639 : vector<1x1xf32>
    %641 = vector.broadcast %608 : vector<1x1xf32> to vector<1x3xf32>
    %642 = arith.mulf %641, %34 : vector<1x3xf32>
    %643 = vector.broadcast %624 : vector<1x1xf32> to vector<1x3xf32>
    %644 = arith.mulf %643, %38 : vector<1x3xf32>
    %645 = arith.addf %642, %644 : vector<1x3xf32>
    %646 = vector.broadcast %640 : vector<1x1xf32> to vector<1x3xf32>
    %647 = arith.mulf %646, %42 : vector<1x3xf32>
    %648 = arith.addf %645, %647 : vector<1x3xf32>
    %649 = arith.addf %648, %519#1 : vector<1x3xf32>
    %650 = arith.select %507, %12, %649 : vector<1x3xf32>
    %651 = arith.index_cast %c3_i32_81 : i32 to index
    %c0_100 = arith.constant 0 : index
    %c0_101 = arith.constant 0 : index
    %652 = vector.load %arg5[%651, %c0_100, %c0_101] : memref<8x1x4xf32, #tpu.memory_space<vmem>>, vector<1x1x4xf32>
    %653 = vector.shape_cast %652 : vector<1x1x4xf32> to vector<1x4xf32>
    %654 = vector.shape_cast %581 : vector<1x4xf32> to vector<1x1x4xf32>
    tpu.vector_store %arg5[%651, %c0_100, %c0_101], %654 {strides = array<i32>} : memref<8x1x4xf32, #tpu.memory_space<vmem>>, vector<1x1x4xf32>,
    %655 = arith.index_cast %c3_i32_81 : i32 to index
    %c0_102 = arith.constant 0 : index
    %c0_103 = arith.constant 0 : index
    %656 = vector.load %arg4[%655, %c0_102, %c0_103] : memref<8x1x3xf32, #tpu.memory_space<vmem>>, vector<1x1x3xf32>
    %657 = vector.shape_cast %656 : vector<1x1x3xf32> to vector<1x3xf32>
    %658 = vector.shape_cast %650 : vector<1x3xf32> to vector<1x1x3xf32>
    tpu.vector_store %arg4[%655, %c0_102, %c0_103], %658 {strides = array<i32>} : memref<8x1x3xf32, #tpu.memory_space<vmem>>, vector<1x1x3xf32>,
    %c4_i32 = arith.constant 4 : i32
    %659 = arith.index_cast %c4_i32 : i32 to index
    %660 = memref.load %arg0[%659] : memref<8xi32, #tpu.memory_space<smem>>
    %c0_i32_104 = arith.constant 0 : i32
    %661 = arith.cmpi slt, %660, %c0_i32_104 : i32
    %c0_i32_105 = arith.constant 0 : i32
    %662 = arith.maxsi %660, %c0_i32_105 : i32
    %663 = arith.index_cast %c4_i32 : i32 to index
    %c0_106 = arith.constant 0 : index
    %c0_107 = arith.constant 0 : index
    %664 = vector.load %arg6[%663, %c0_106, %c0_107] : memref<8x1x4xf32, #tpu.memory_space<vmem>>, vector<1x1x4xf32>
    %665 = vector.shape_cast %664 : vector<1x1x4xf32> to vector<1x4xf32>
    %666 = arith.index_cast %c4_i32 : i32 to index
    %c0_108 = arith.constant 0 : index
    %c0_109 = arith.constant 0 : index
    %667 = vector.load %arg2[%666, %c0_108, %c0_109] : memref<8x1x3xf32, #tpu.memory_space<vmem>>, vector<1x1x3xf32>
    %668 = vector.shape_cast %667 : vector<1x1x3xf32> to vector<1x3xf32>
    %c1_i32_110 = arith.constant 1 : i32
    %669 = arith.subi %c4_i32, %c1_i32_110 : i32
    %670 = arith.cmpi eq, %660, %669 : i32
    %671 = arith.extui %670 : i1 to i32
    %c0_i32_111 = arith.constant 0 : i32
    %672 = arith.cmpi ne, %671, %c0_i32_111 : i32
    %673:2 = scf.if %672 -> (vector<1x4xf32>, vector<1x3xf32>) {
      scf.yield %581, %650 : vector<1x4xf32>, vector<1x3xf32>
    } else {
      %1275 = arith.index_cast %662 : i32 to index
      %c0_192 = arith.constant 0 : index
      %c0_193 = arith.constant 0 : index
      %1276 = vector.load %arg5[%1275, %c0_192, %c0_193] : memref<8x1x4xf32, #tpu.memory_space<vmem>>, vector<1x1x4xf32>
      %1277 = vector.shape_cast %1276 : vector<1x1x4xf32> to vector<1x4xf32>
      %1278 = arith.index_cast %662 : i32 to index
      %c0_194 = arith.constant 0 : index
      %c0_195 = arith.constant 0 : index
      %1279 = vector.load %arg4[%1278, %c0_194, %c0_195] : memref<8x1x3xf32, #tpu.memory_space<vmem>>, vector<1x1x3xf32>
      %1280 = vector.shape_cast %1279 : vector<1x1x3xf32> to vector<1x3xf32>
      scf.yield %1277, %1280 : vector<1x4xf32>, vector<1x3xf32>
    }
    %674 = vector.extract_strided_slice %673#0 {offsets = [0, 0], sizes = [1, 1], strides = [1, 1]} : vector<1x4xf32> to vector<1x1xf32>
    %675 = vector.extract_strided_slice %673#0 {offsets = [0, 1], sizes = [1, 1], strides = [1, 1]} : vector<1x4xf32> to vector<1x1xf32>
    %676 = vector.extract_strided_slice %673#0 {offsets = [0, 2], sizes = [1, 1], strides = [1, 1]} : vector<1x4xf32> to vector<1x1xf32>
    %677 = vector.extract_strided_slice %673#0 {offsets = [0, 3], sizes = [1, 1], strides = [1, 1]} : vector<1x4xf32> to vector<1x1xf32>
    %678 = vector.extract_strided_slice %665 {offsets = [0, 0], sizes = [1, 1], strides = [1, 1]} : vector<1x4xf32> to vector<1x1xf32>
    %679 = vector.extract_strided_slice %665 {offsets = [0, 1], sizes = [1, 1], strides = [1, 1]} : vector<1x4xf32> to vector<1x1xf32>
    %680 = vector.extract_strided_slice %665 {offsets = [0, 2], sizes = [1, 1], strides = [1, 1]} : vector<1x4xf32> to vector<1x1xf32>
    %681 = vector.extract_strided_slice %665 {offsets = [0, 3], sizes = [1, 1], strides = [1, 1]} : vector<1x4xf32> to vector<1x1xf32>
    %682 = arith.mulf %677, %678 : vector<1x1xf32>
    %683 = arith.mulf %674, %681 : vector<1x1xf32>
    %684 = arith.addf %682, %683 : vector<1x1xf32>
    %685 = arith.mulf %675, %680 : vector<1x1xf32>
    %686 = arith.addf %684, %685 : vector<1x1xf32>
    %687 = arith.mulf %676, %679 : vector<1x1xf32>
    %688 = arith.subf %686, %687 : vector<1x1xf32>
    %689 = arith.mulf %677, %679 : vector<1x1xf32>
    %690 = arith.mulf %674, %680 : vector<1x1xf32>
    %691 = arith.subf %689, %690 : vector<1x1xf32>
    %692 = arith.mulf %675, %681 : vector<1x1xf32>
    %693 = arith.addf %691, %692 : vector<1x1xf32>
    %694 = arith.mulf %676, %678 : vector<1x1xf32>
    %695 = arith.addf %693, %694 : vector<1x1xf32>
    %696 = arith.mulf %677, %680 : vector<1x1xf32>
    %697 = arith.mulf %674, %679 : vector<1x1xf32>
    %698 = arith.addf %696, %697 : vector<1x1xf32>
    %699 = arith.mulf %675, %678 : vector<1x1xf32>
    %700 = arith.subf %698, %699 : vector<1x1xf32>
    %701 = arith.mulf %676, %681 : vector<1x1xf32>
    %702 = arith.addf %700, %701 : vector<1x1xf32>
    %703 = arith.mulf %677, %681 : vector<1x1xf32>
    %704 = arith.mulf %674, %678 : vector<1x1xf32>
    %705 = arith.subf %703, %704 : vector<1x1xf32>
    %706 = arith.mulf %675, %679 : vector<1x1xf32>
    %707 = arith.subf %705, %706 : vector<1x1xf32>
    %708 = arith.mulf %676, %680 : vector<1x1xf32>
    %709 = arith.subf %707, %708 : vector<1x1xf32>
    %710 = arith.mulf %688, %688 : vector<1x1xf32>
    %711 = arith.mulf %695, %695 : vector<1x1xf32>
    %712 = arith.addf %710, %711 : vector<1x1xf32>
    %713 = arith.mulf %702, %702 : vector<1x1xf32>
    %714 = arith.addf %712, %713 : vector<1x1xf32>
    %715 = arith.mulf %709, %709 : vector<1x1xf32>
    %716 = arith.addf %714, %715 : vector<1x1xf32>
    %717 = math.sqrt %716 : vector<1x1xf32>
    %cst_112 = arith.constant 9.99999974E-6 : f32
    %718 = vector.broadcast %cst_112 : f32 to vector<1x1xf32>
    %719 = arith.addf %717, %718 : vector<1x1xf32>
    %cst_113 = arith.constant 1.000000e+00 : f32
    %720 = vector.broadcast %cst_113 : f32 to vector<1x1xf32>
    %721 = arith.divf %720, %719 : vector<1x1xf32>
    %722 = vector.broadcast %688 : vector<1x1xf32> to vector<1x4xf32>
    %723 = arith.mulf %722, %18 : vector<1x4xf32>
    %724 = vector.broadcast %695 : vector<1x1xf32> to vector<1x4xf32>
    %725 = arith.mulf %724, %22 : vector<1x4xf32>
    %726 = arith.addf %723, %725 : vector<1x4xf32>
    %727 = vector.broadcast %702 : vector<1x1xf32> to vector<1x4xf32>
    %728 = arith.mulf %727, %26 : vector<1x4xf32>
    %729 = arith.addf %726, %728 : vector<1x4xf32>
    %730 = vector.broadcast %709 : vector<1x1xf32> to vector<1x4xf32>
    %731 = arith.mulf %730, %30 : vector<1x4xf32>
    %732 = arith.addf %729, %731 : vector<1x4xf32>
    %733 = vector.broadcast %721 : vector<1x1xf32> to vector<1x4xf32>
    %734 = arith.mulf %732, %733 : vector<1x4xf32>
    %735 = arith.select %661, %665, %734 : vector<1x4xf32>
    %736 = arith.mulf %674, %674 : vector<1x1xf32>
    %737 = arith.mulf %675, %675 : vector<1x1xf32>
    %738 = arith.mulf %676, %676 : vector<1x1xf32>
    %739 = arith.mulf %677, %677 : vector<1x1xf32>
    %740 = arith.mulf %674, %675 : vector<1x1xf32>
    %741 = arith.mulf %676, %677 : vector<1x1xf32>
    %742 = arith.mulf %674, %676 : vector<1x1xf32>
    %743 = arith.mulf %675, %677 : vector<1x1xf32>
    %744 = arith.mulf %675, %676 : vector<1x1xf32>
    %745 = arith.mulf %674, %677 : vector<1x1xf32>
    %746 = vector.extract_strided_slice %668 {offsets = [0, 0], sizes = [1, 1], strides = [1, 1]} : vector<1x3xf32> to vector<1x1xf32>
    %747 = vector.extract_strided_slice %668 {offsets = [0, 1], sizes = [1, 1], strides = [1, 1]} : vector<1x3xf32> to vector<1x1xf32>
    %748 = vector.extract_strided_slice %668 {offsets = [0, 2], sizes = [1, 1], strides = [1, 1]} : vector<1x3xf32> to vector<1x1xf32>
    %749 = arith.subf %736, %737 : vector<1x1xf32>
    %750 = arith.subf %749, %738 : vector<1x1xf32>
    %751 = arith.addf %750, %739 : vector<1x1xf32>
    %752 = arith.mulf %751, %746 : vector<1x1xf32>
    %753 = arith.subf %740, %741 : vector<1x1xf32>
    %cst_114 = arith.constant 2.000000e+00 : f32
    %754 = vector.broadcast %cst_114 : f32 to vector<1x1xf32>
    %755 = arith.mulf %754, %753 : vector<1x1xf32>
    %756 = arith.mulf %755, %747 : vector<1x1xf32>
    %757 = arith.addf %752, %756 : vector<1x1xf32>
    %758 = arith.addf %742, %743 : vector<1x1xf32>
    %cst_115 = arith.constant 2.000000e+00 : f32
    %759 = vector.broadcast %cst_115 : f32 to vector<1x1xf32>
    %760 = arith.mulf %759, %758 : vector<1x1xf32>
    %761 = arith.mulf %760, %748 : vector<1x1xf32>
    %762 = arith.addf %757, %761 : vector<1x1xf32>
    %763 = arith.addf %740, %741 : vector<1x1xf32>
    %cst_116 = arith.constant 2.000000e+00 : f32
    %764 = vector.broadcast %cst_116 : f32 to vector<1x1xf32>
    %765 = arith.mulf %764, %763 : vector<1x1xf32>
    %766 = arith.mulf %765, %746 : vector<1x1xf32>
    %cst_117 = arith.constant 0.000000e+00 : f32
    %767 = vector.broadcast %cst_117 : f32 to vector<1x1xf32>
    %768 = arith.subf %767, %736 : vector<1x1xf32>
    %769 = arith.addf %768, %737 : vector<1x1xf32>
    %770 = arith.subf %769, %738 : vector<1x1xf32>
    %771 = arith.addf %770, %739 : vector<1x1xf32>
    %772 = arith.mulf %771, %747 : vector<1x1xf32>
    %773 = arith.addf %766, %772 : vector<1x1xf32>
    %774 = arith.subf %744, %745 : vector<1x1xf32>
    %cst_118 = arith.constant 2.000000e+00 : f32
    %775 = vector.broadcast %cst_118 : f32 to vector<1x1xf32>
    %776 = arith.mulf %775, %774 : vector<1x1xf32>
    %777 = arith.mulf %776, %748 : vector<1x1xf32>
    %778 = arith.addf %773, %777 : vector<1x1xf32>
    %779 = arith.subf %742, %743 : vector<1x1xf32>
    %cst_119 = arith.constant 2.000000e+00 : f32
    %780 = vector.broadcast %cst_119 : f32 to vector<1x1xf32>
    %781 = arith.mulf %780, %779 : vector<1x1xf32>
    %782 = arith.mulf %781, %746 : vector<1x1xf32>
    %783 = arith.addf %744, %745 : vector<1x1xf32>
    %cst_120 = arith.constant 2.000000e+00 : f32
    %784 = vector.broadcast %cst_120 : f32 to vector<1x1xf32>
    %785 = arith.mulf %784, %783 : vector<1x1xf32>
    %786 = arith.mulf %785, %747 : vector<1x1xf32>
    %787 = arith.addf %782, %786 : vector<1x1xf32>
    %cst_121 = arith.constant 0.000000e+00 : f32
    %788 = vector.broadcast %cst_121 : f32 to vector<1x1xf32>
    %789 = arith.subf %788, %736 : vector<1x1xf32>
    %790 = arith.subf %789, %737 : vector<1x1xf32>
    %791 = arith.addf %790, %738 : vector<1x1xf32>
    %792 = arith.addf %791, %739 : vector<1x1xf32>
    %793 = arith.mulf %792, %748 : vector<1x1xf32>
    %794 = arith.addf %787, %793 : vector<1x1xf32>
    %795 = vector.broadcast %762 : vector<1x1xf32> to vector<1x3xf32>
    %796 = arith.mulf %795, %34 : vector<1x3xf32>
    %797 = vector.broadcast %778 : vector<1x1xf32> to vector<1x3xf32>
    %798 = arith.mulf %797, %38 : vector<1x3xf32>
    %799 = arith.addf %796, %798 : vector<1x3xf32>
    %800 = vector.broadcast %794 : vector<1x1xf32> to vector<1x3xf32>
    %801 = arith.mulf %800, %42 : vector<1x3xf32>
    %802 = arith.addf %799, %801 : vector<1x3xf32>
    %803 = arith.addf %802, %673#1 : vector<1x3xf32>
    %804 = arith.select %661, %12, %803 : vector<1x3xf32>
    %805 = arith.index_cast %c4_i32 : i32 to index
    %c0_122 = arith.constant 0 : index
    %c0_123 = arith.constant 0 : index
    %806 = vector.load %arg5[%805, %c0_122, %c0_123] : memref<8x1x4xf32, #tpu.memory_space<vmem>>, vector<1x1x4xf32>
    %807 = vector.shape_cast %806 : vector<1x1x4xf32> to vector<1x4xf32>
    %808 = vector.shape_cast %735 : vector<1x4xf32> to vector<1x1x4xf32>
    tpu.vector_store %arg5[%805, %c0_122, %c0_123], %808 {strides = array<i32>} : memref<8x1x4xf32, #tpu.memory_space<vmem>>, vector<1x1x4xf32>,
    %809 = arith.index_cast %c4_i32 : i32 to index
    %c0_124 = arith.constant 0 : index
    %c0_125 = arith.constant 0 : index
    %810 = vector.load %arg4[%809, %c0_124, %c0_125] : memref<8x1x3xf32, #tpu.memory_space<vmem>>, vector<1x1x3xf32>
    %811 = vector.shape_cast %810 : vector<1x1x3xf32> to vector<1x3xf32>
    %812 = vector.shape_cast %804 : vector<1x3xf32> to vector<1x1x3xf32>
    tpu.vector_store %arg4[%809, %c0_124, %c0_125], %812 {strides = array<i32>} : memref<8x1x3xf32, #tpu.memory_space<vmem>>, vector<1x1x3xf32>,
    %c5_i32 = arith.constant 5 : i32
    %813 = arith.index_cast %c5_i32 : i32 to index
    %814 = memref.load %arg0[%813] : memref<8xi32, #tpu.memory_space<smem>>
    %c0_i32_126 = arith.constant 0 : i32
    %815 = arith.cmpi slt, %814, %c0_i32_126 : i32
    %c0_i32_127 = arith.constant 0 : i32
    %816 = arith.maxsi %814, %c0_i32_127 : i32
    %817 = arith.index_cast %c5_i32 : i32 to index
    %c0_128 = arith.constant 0 : index
    %c0_129 = arith.constant 0 : index
    %818 = vector.load %arg6[%817, %c0_128, %c0_129] : memref<8x1x4xf32, #tpu.memory_space<vmem>>, vector<1x1x4xf32>
    %819 = vector.shape_cast %818 : vector<1x1x4xf32> to vector<1x4xf32>
    %820 = arith.index_cast %c5_i32 : i32 to index
    %c0_130 = arith.constant 0 : index
    %c0_131 = arith.constant 0 : index
    %821 = vector.load %arg2[%820, %c0_130, %c0_131] : memref<8x1x3xf32, #tpu.memory_space<vmem>>, vector<1x1x3xf32>
    %822 = vector.shape_cast %821 : vector<1x1x3xf32> to vector<1x3xf32>
    %c1_i32_132 = arith.constant 1 : i32
    %823 = arith.subi %c5_i32, %c1_i32_132 : i32
    %824 = arith.cmpi eq, %814, %823 : i32
    %825 = arith.extui %824 : i1 to i32
    %c0_i32_133 = arith.constant 0 : i32
    %826 = arith.cmpi ne, %825, %c0_i32_133 : i32
    %827:2 = scf.if %826 -> (vector<1x4xf32>, vector<1x3xf32>) {
      scf.yield %735, %804 : vector<1x4xf32>, vector<1x3xf32>
    } else {
      %1275 = arith.index_cast %816 : i32 to index
      %c0_192 = arith.constant 0 : index
      %c0_193 = arith.constant 0 : index
      %1276 = vector.load %arg5[%1275, %c0_192, %c0_193] : memref<8x1x4xf32, #tpu.memory_space<vmem>>, vector<1x1x4xf32>
      %1277 = vector.shape_cast %1276 : vector<1x1x4xf32> to vector<1x4xf32>
      %1278 = arith.index_cast %816 : i32 to index
      %c0_194 = arith.constant 0 : index
      %c0_195 = arith.constant 0 : index
      %1279 = vector.load %arg4[%1278, %c0_194, %c0_195] : memref<8x1x3xf32, #tpu.memory_space<vmem>>, vector<1x1x3xf32>
      %1280 = vector.shape_cast %1279 : vector<1x1x3xf32> to vector<1x3xf32>
      scf.yield %1277, %1280 : vector<1x4xf32>, vector<1x3xf32>
    }
    %828 = vector.extract_strided_slice %827#0 {offsets = [0, 0], sizes = [1, 1], strides = [1, 1]} : vector<1x4xf32> to vector<1x1xf32>
    %829 = vector.extract_strided_slice %827#0 {offsets = [0, 1], sizes = [1, 1], strides = [1, 1]} : vector<1x4xf32> to vector<1x1xf32>
    %830 = vector.extract_strided_slice %827#0 {offsets = [0, 2], sizes = [1, 1], strides = [1, 1]} : vector<1x4xf32> to vector<1x1xf32>
    %831 = vector.extract_strided_slice %827#0 {offsets = [0, 3], sizes = [1, 1], strides = [1, 1]} : vector<1x4xf32> to vector<1x1xf32>
    %832 = vector.extract_strided_slice %819 {offsets = [0, 0], sizes = [1, 1], strides = [1, 1]} : vector<1x4xf32> to vector<1x1xf32>
    %833 = vector.extract_strided_slice %819 {offsets = [0, 1], sizes = [1, 1], strides = [1, 1]} : vector<1x4xf32> to vector<1x1xf32>
    %834 = vector.extract_strided_slice %819 {offsets = [0, 2], sizes = [1, 1], strides = [1, 1]} : vector<1x4xf32> to vector<1x1xf32>
    %835 = vector.extract_strided_slice %819 {offsets = [0, 3], sizes = [1, 1], strides = [1, 1]} : vector<1x4xf32> to vector<1x1xf32>
    %836 = arith.mulf %831, %832 : vector<1x1xf32>
    %837 = arith.mulf %828, %835 : vector<1x1xf32>
    %838 = arith.addf %836, %837 : vector<1x1xf32>
    %839 = arith.mulf %829, %834 : vector<1x1xf32>
    %840 = arith.addf %838, %839 : vector<1x1xf32>
    %841 = arith.mulf %830, %833 : vector<1x1xf32>
    %842 = arith.subf %840, %841 : vector<1x1xf32>
    %843 = arith.mulf %831, %833 : vector<1x1xf32>
    %844 = arith.mulf %828, %834 : vector<1x1xf32>
    %845 = arith.subf %843, %844 : vector<1x1xf32>
    %846 = arith.mulf %829, %835 : vector<1x1xf32>
    %847 = arith.addf %845, %846 : vector<1x1xf32>
    %848 = arith.mulf %830, %832 : vector<1x1xf32>
    %849 = arith.addf %847, %848 : vector<1x1xf32>
    %850 = arith.mulf %831, %834 : vector<1x1xf32>
    %851 = arith.mulf %828, %833 : vector<1x1xf32>
    %852 = arith.addf %850, %851 : vector<1x1xf32>
    %853 = arith.mulf %829, %832 : vector<1x1xf32>
    %854 = arith.subf %852, %853 : vector<1x1xf32>
    %855 = arith.mulf %830, %835 : vector<1x1xf32>
    %856 = arith.addf %854, %855 : vector<1x1xf32>
    %857 = arith.mulf %831, %835 : vector<1x1xf32>
    %858 = arith.mulf %828, %832 : vector<1x1xf32>
    %859 = arith.subf %857, %858 : vector<1x1xf32>
    %860 = arith.mulf %829, %833 : vector<1x1xf32>
    %861 = arith.subf %859, %860 : vector<1x1xf32>
    %862 = arith.mulf %830, %834 : vector<1x1xf32>
    %863 = arith.subf %861, %862 : vector<1x1xf32>
    %864 = arith.mulf %842, %842 : vector<1x1xf32>
    %865 = arith.mulf %849, %849 : vector<1x1xf32>
    %866 = arith.addf %864, %865 : vector<1x1xf32>
    %867 = arith.mulf %856, %856 : vector<1x1xf32>
    %868 = arith.addf %866, %867 : vector<1x1xf32>
    %869 = arith.mulf %863, %863 : vector<1x1xf32>
    %870 = arith.addf %868, %869 : vector<1x1xf32>
    %871 = math.sqrt %870 : vector<1x1xf32>
    %cst_134 = arith.constant 9.99999974E-6 : f32
    %872 = vector.broadcast %cst_134 : f32 to vector<1x1xf32>
    %873 = arith.addf %871, %872 : vector<1x1xf32>
    %cst_135 = arith.constant 1.000000e+00 : f32
    %874 = vector.broadcast %cst_135 : f32 to vector<1x1xf32>
    %875 = arith.divf %874, %873 : vector<1x1xf32>
    %876 = vector.broadcast %842 : vector<1x1xf32> to vector<1x4xf32>
    %877 = arith.mulf %876, %18 : vector<1x4xf32>
    %878 = vector.broadcast %849 : vector<1x1xf32> to vector<1x4xf32>
    %879 = arith.mulf %878, %22 : vector<1x4xf32>
    %880 = arith.addf %877, %879 : vector<1x4xf32>
    %881 = vector.broadcast %856 : vector<1x1xf32> to vector<1x4xf32>
    %882 = arith.mulf %881, %26 : vector<1x4xf32>
    %883 = arith.addf %880, %882 : vector<1x4xf32>
    %884 = vector.broadcast %863 : vector<1x1xf32> to vector<1x4xf32>
    %885 = arith.mulf %884, %30 : vector<1x4xf32>
    %886 = arith.addf %883, %885 : vector<1x4xf32>
    %887 = vector.broadcast %875 : vector<1x1xf32> to vector<1x4xf32>
    %888 = arith.mulf %886, %887 : vector<1x4xf32>
    %889 = arith.select %815, %819, %888 : vector<1x4xf32>
    %890 = arith.mulf %828, %828 : vector<1x1xf32>
    %891 = arith.mulf %829, %829 : vector<1x1xf32>
    %892 = arith.mulf %830, %830 : vector<1x1xf32>
    %893 = arith.mulf %831, %831 : vector<1x1xf32>
    %894 = arith.mulf %828, %829 : vector<1x1xf32>
    %895 = arith.mulf %830, %831 : vector<1x1xf32>
    %896 = arith.mulf %828, %830 : vector<1x1xf32>
    %897 = arith.mulf %829, %831 : vector<1x1xf32>
    %898 = arith.mulf %829, %830 : vector<1x1xf32>
    %899 = arith.mulf %828, %831 : vector<1x1xf32>
    %900 = vector.extract_strided_slice %822 {offsets = [0, 0], sizes = [1, 1], strides = [1, 1]} : vector<1x3xf32> to vector<1x1xf32>
    %901 = vector.extract_strided_slice %822 {offsets = [0, 1], sizes = [1, 1], strides = [1, 1]} : vector<1x3xf32> to vector<1x1xf32>
    %902 = vector.extract_strided_slice %822 {offsets = [0, 2], sizes = [1, 1], strides = [1, 1]} : vector<1x3xf32> to vector<1x1xf32>
    %903 = arith.subf %890, %891 : vector<1x1xf32>
    %904 = arith.subf %903, %892 : vector<1x1xf32>
    %905 = arith.addf %904, %893 : vector<1x1xf32>
    %906 = arith.mulf %905, %900 : vector<1x1xf32>
    %907 = arith.subf %894, %895 : vector<1x1xf32>
    %cst_136 = arith.constant 2.000000e+00 : f32
    %908 = vector.broadcast %cst_136 : f32 to vector<1x1xf32>
    %909 = arith.mulf %908, %907 : vector<1x1xf32>
    %910 = arith.mulf %909, %901 : vector<1x1xf32>
    %911 = arith.addf %906, %910 : vector<1x1xf32>
    %912 = arith.addf %896, %897 : vector<1x1xf32>
    %cst_137 = arith.constant 2.000000e+00 : f32
    %913 = vector.broadcast %cst_137 : f32 to vector<1x1xf32>
    %914 = arith.mulf %913, %912 : vector<1x1xf32>
    %915 = arith.mulf %914, %902 : vector<1x1xf32>
    %916 = arith.addf %911, %915 : vector<1x1xf32>
    %917 = arith.addf %894, %895 : vector<1x1xf32>
    %cst_138 = arith.constant 2.000000e+00 : f32
    %918 = vector.broadcast %cst_138 : f32 to vector<1x1xf32>
    %919 = arith.mulf %918, %917 : vector<1x1xf32>
    %920 = arith.mulf %919, %900 : vector<1x1xf32>
    %cst_139 = arith.constant 0.000000e+00 : f32
    %921 = vector.broadcast %cst_139 : f32 to vector<1x1xf32>
    %922 = arith.subf %921, %890 : vector<1x1xf32>
    %923 = arith.addf %922, %891 : vector<1x1xf32>
    %924 = arith.subf %923, %892 : vector<1x1xf32>
    %925 = arith.addf %924, %893 : vector<1x1xf32>
    %926 = arith.mulf %925, %901 : vector<1x1xf32>
    %927 = arith.addf %920, %926 : vector<1x1xf32>
    %928 = arith.subf %898, %899 : vector<1x1xf32>
    %cst_140 = arith.constant 2.000000e+00 : f32
    %929 = vector.broadcast %cst_140 : f32 to vector<1x1xf32>
    %930 = arith.mulf %929, %928 : vector<1x1xf32>
    %931 = arith.mulf %930, %902 : vector<1x1xf32>
    %932 = arith.addf %927, %931 : vector<1x1xf32>
    %933 = arith.subf %896, %897 : vector<1x1xf32>
    %cst_141 = arith.constant 2.000000e+00 : f32
    %934 = vector.broadcast %cst_141 : f32 to vector<1x1xf32>
    %935 = arith.mulf %934, %933 : vector<1x1xf32>
    %936 = arith.mulf %935, %900 : vector<1x1xf32>
    %937 = arith.addf %898, %899 : vector<1x1xf32>
    %cst_142 = arith.constant 2.000000e+00 : f32
    %938 = vector.broadcast %cst_142 : f32 to vector<1x1xf32>
    %939 = arith.mulf %938, %937 : vector<1x1xf32>
    %940 = arith.mulf %939, %901 : vector<1x1xf32>
    %941 = arith.addf %936, %940 : vector<1x1xf32>
    %cst_143 = arith.constant 0.000000e+00 : f32
    %942 = vector.broadcast %cst_143 : f32 to vector<1x1xf32>
    %943 = arith.subf %942, %890 : vector<1x1xf32>
    %944 = arith.subf %943, %891 : vector<1x1xf32>
    %945 = arith.addf %944, %892 : vector<1x1xf32>
    %946 = arith.addf %945, %893 : vector<1x1xf32>
    %947 = arith.mulf %946, %902 : vector<1x1xf32>
    %948 = arith.addf %941, %947 : vector<1x1xf32>
    %949 = vector.broadcast %916 : vector<1x1xf32> to vector<1x3xf32>
    %950 = arith.mulf %949, %34 : vector<1x3xf32>
    %951 = vector.broadcast %932 : vector<1x1xf32> to vector<1x3xf32>
    %952 = arith.mulf %951, %38 : vector<1x3xf32>
    %953 = arith.addf %950, %952 : vector<1x3xf32>
    %954 = vector.broadcast %948 : vector<1x1xf32> to vector<1x3xf32>
    %955 = arith.mulf %954, %42 : vector<1x3xf32>
    %956 = arith.addf %953, %955 : vector<1x3xf32>
    %957 = arith.addf %956, %827#1 : vector<1x3xf32>
    %958 = arith.select %815, %12, %957 : vector<1x3xf32>
    %959 = arith.index_cast %c5_i32 : i32 to index
    %c0_144 = arith.constant 0 : index
    %c0_145 = arith.constant 0 : index
    %960 = vector.load %arg5[%959, %c0_144, %c0_145] : memref<8x1x4xf32, #tpu.memory_space<vmem>>, vector<1x1x4xf32>
    %961 = vector.shape_cast %960 : vector<1x1x4xf32> to vector<1x4xf32>
    %962 = vector.shape_cast %889 : vector<1x4xf32> to vector<1x1x4xf32>
    tpu.vector_store %arg5[%959, %c0_144, %c0_145], %962 {strides = array<i32>} : memref<8x1x4xf32, #tpu.memory_space<vmem>>, vector<1x1x4xf32>,
    %963 = arith.index_cast %c5_i32 : i32 to index
    %c0_146 = arith.constant 0 : index
    %c0_147 = arith.constant 0 : index
    %964 = vector.load %arg4[%963, %c0_146, %c0_147] : memref<8x1x3xf32, #tpu.memory_space<vmem>>, vector<1x1x3xf32>
    %965 = vector.shape_cast %964 : vector<1x1x3xf32> to vector<1x3xf32>
    %966 = vector.shape_cast %958 : vector<1x3xf32> to vector<1x1x3xf32>
    tpu.vector_store %arg4[%963, %c0_146, %c0_147], %966 {strides = array<i32>} : memref<8x1x3xf32, #tpu.memory_space<vmem>>, vector<1x1x3xf32>,
    %c6_i32 = arith.constant 6 : i32
    %967 = arith.index_cast %c6_i32 : i32 to index
    %968 = memref.load %arg0[%967] : memref<8xi32, #tpu.memory_space<smem>>
    %c0_i32_148 = arith.constant 0 : i32
    %969 = arith.cmpi slt, %968, %c0_i32_148 : i32
    %c0_i32_149 = arith.constant 0 : i32
    %970 = arith.maxsi %968, %c0_i32_149 : i32
    %971 = arith.index_cast %c6_i32 : i32 to index
    %c0_150 = arith.constant 0 : index
    %c0_151 = arith.constant 0 : index
    %972 = vector.load %arg6[%971, %c0_150, %c0_151] : memref<8x1x4xf32, #tpu.memory_space<vmem>>, vector<1x1x4xf32>
    %973 = vector.shape_cast %972 : vector<1x1x4xf32> to vector<1x4xf32>
    %974 = arith.index_cast %c6_i32 : i32 to index
    %c0_152 = arith.constant 0 : index
    %c0_153 = arith.constant 0 : index
    %975 = vector.load %arg2[%974, %c0_152, %c0_153] : memref<8x1x3xf32, #tpu.memory_space<vmem>>, vector<1x1x3xf32>
    %976 = vector.shape_cast %975 : vector<1x1x3xf32> to vector<1x3xf32>
    %c1_i32_154 = arith.constant 1 : i32
    %977 = arith.subi %c6_i32, %c1_i32_154 : i32
    %978 = arith.cmpi eq, %968, %977 : i32
    %979 = arith.extui %978 : i1 to i32
    %c0_i32_155 = arith.constant 0 : i32
    %980 = arith.cmpi ne, %979, %c0_i32_155 : i32
    %981:2 = scf.if %980 -> (vector<1x4xf32>, vector<1x3xf32>) {
      scf.yield %889, %958 : vector<1x4xf32>, vector<1x3xf32>
    } else {
      %1275 = arith.index_cast %970 : i32 to index
      %c0_192 = arith.constant 0 : index
      %c0_193 = arith.constant 0 : index
      %1276 = vector.load %arg5[%1275, %c0_192, %c0_193] : memref<8x1x4xf32, #tpu.memory_space<vmem>>, vector<1x1x4xf32>
      %1277 = vector.shape_cast %1276 : vector<1x1x4xf32> to vector<1x4xf32>
      %1278 = arith.index_cast %970 : i32 to index
      %c0_194 = arith.constant 0 : index
      %c0_195 = arith.constant 0 : index
      %1279 = vector.load %arg4[%1278, %c0_194, %c0_195] : memref<8x1x3xf32, #tpu.memory_space<vmem>>, vector<1x1x3xf32>
      %1280 = vector.shape_cast %1279 : vector<1x1x3xf32> to vector<1x3xf32>
      scf.yield %1277, %1280 : vector<1x4xf32>, vector<1x3xf32>
    }
    %982 = vector.extract_strided_slice %981#0 {offsets = [0, 0], sizes = [1, 1], strides = [1, 1]} : vector<1x4xf32> to vector<1x1xf32>
    %983 = vector.extract_strided_slice %981#0 {offsets = [0, 1], sizes = [1, 1], strides = [1, 1]} : vector<1x4xf32> to vector<1x1xf32>
    %984 = vector.extract_strided_slice %981#0 {offsets = [0, 2], sizes = [1, 1], strides = [1, 1]} : vector<1x4xf32> to vector<1x1xf32>
    %985 = vector.extract_strided_slice %981#0 {offsets = [0, 3], sizes = [1, 1], strides = [1, 1]} : vector<1x4xf32> to vector<1x1xf32>
    %986 = vector.extract_strided_slice %973 {offsets = [0, 0], sizes = [1, 1], strides = [1, 1]} : vector<1x4xf32> to vector<1x1xf32>
    %987 = vector.extract_strided_slice %973 {offsets = [0, 1], sizes = [1, 1], strides = [1, 1]} : vector<1x4xf32> to vector<1x1xf32>
    %988 = vector.extract_strided_slice %973 {offsets = [0, 2], sizes = [1, 1], strides = [1, 1]} : vector<1x4xf32> to vector<1x1xf32>
    %989 = vector.extract_strided_slice %973 {offsets = [0, 3], sizes = [1, 1], strides = [1, 1]} : vector<1x4xf32> to vector<1x1xf32>
    %990 = arith.mulf %985, %986 : vector<1x1xf32>
    %991 = arith.mulf %982, %989 : vector<1x1xf32>
    %992 = arith.addf %990, %991 : vector<1x1xf32>
    %993 = arith.mulf %983, %988 : vector<1x1xf32>
    %994 = arith.addf %992, %993 : vector<1x1xf32>
    %995 = arith.mulf %984, %987 : vector<1x1xf32>
    %996 = arith.subf %994, %995 : vector<1x1xf32>
    %997 = arith.mulf %985, %987 : vector<1x1xf32>
    %998 = arith.mulf %982, %988 : vector<1x1xf32>
    %999 = arith.subf %997, %998 : vector<1x1xf32>
    %1000 = arith.mulf %983, %989 : vector<1x1xf32>
    %1001 = arith.addf %999, %1000 : vector<1x1xf32>
    %1002 = arith.mulf %984, %986 : vector<1x1xf32>
    %1003 = arith.addf %1001, %1002 : vector<1x1xf32>
    %1004 = arith.mulf %985, %988 : vector<1x1xf32>
    %1005 = arith.mulf %982, %987 : vector<1x1xf32>
    %1006 = arith.addf %1004, %1005 : vector<1x1xf32>
    %1007 = arith.mulf %983, %986 : vector<1x1xf32>
    %1008 = arith.subf %1006, %1007 : vector<1x1xf32>
    %1009 = arith.mulf %984, %989 : vector<1x1xf32>
    %1010 = arith.addf %1008, %1009 : vector<1x1xf32>
    %1011 = arith.mulf %985, %989 : vector<1x1xf32>
    %1012 = arith.mulf %982, %986 : vector<1x1xf32>
    %1013 = arith.subf %1011, %1012 : vector<1x1xf32>
    %1014 = arith.mulf %983, %987 : vector<1x1xf32>
    %1015 = arith.subf %1013, %1014 : vector<1x1xf32>
    %1016 = arith.mulf %984, %988 : vector<1x1xf32>
    %1017 = arith.subf %1015, %1016 : vector<1x1xf32>
    %1018 = arith.mulf %996, %996 : vector<1x1xf32>
    %1019 = arith.mulf %1003, %1003 : vector<1x1xf32>
    %1020 = arith.addf %1018, %1019 : vector<1x1xf32>
    %1021 = arith.mulf %1010, %1010 : vector<1x1xf32>
    %1022 = arith.addf %1020, %1021 : vector<1x1xf32>
    %1023 = arith.mulf %1017, %1017 : vector<1x1xf32>
    %1024 = arith.addf %1022, %1023 : vector<1x1xf32>
    %1025 = math.sqrt %1024 : vector<1x1xf32>
    %cst_156 = arith.constant 9.99999974E-6 : f32
    %1026 = vector.broadcast %cst_156 : f32 to vector<1x1xf32>
    %1027 = arith.addf %1025, %1026 : vector<1x1xf32>
    %cst_157 = arith.constant 1.000000e+00 : f32
    %1028 = vector.broadcast %cst_157 : f32 to vector<1x1xf32>
    %1029 = arith.divf %1028, %1027 : vector<1x1xf32>
    %1030 = vector.broadcast %996 : vector<1x1xf32> to vector<1x4xf32>
    %1031 = arith.mulf %1030, %18 : vector<1x4xf32>
    %1032 = vector.broadcast %1003 : vector<1x1xf32> to vector<1x4xf32>
    %1033 = arith.mulf %1032, %22 : vector<1x4xf32>
    %1034 = arith.addf %1031, %1033 : vector<1x4xf32>
    %1035 = vector.broadcast %1010 : vector<1x1xf32> to vector<1x4xf32>
    %1036 = arith.mulf %1035, %26 : vector<1x4xf32>
    %1037 = arith.addf %1034, %1036 : vector<1x4xf32>
    %1038 = vector.broadcast %1017 : vector<1x1xf32> to vector<1x4xf32>
    %1039 = arith.mulf %1038, %30 : vector<1x4xf32>
    %1040 = arith.addf %1037, %1039 : vector<1x4xf32>
    %1041 = vector.broadcast %1029 : vector<1x1xf32> to vector<1x4xf32>
    %1042 = arith.mulf %1040, %1041 : vector<1x4xf32>
    %1043 = arith.select %969, %973, %1042 : vector<1x4xf32>
    %1044 = arith.mulf %982, %982 : vector<1x1xf32>
    %1045 = arith.mulf %983, %983 : vector<1x1xf32>
    %1046 = arith.mulf %984, %984 : vector<1x1xf32>
    %1047 = arith.mulf %985, %985 : vector<1x1xf32>
    %1048 = arith.mulf %982, %983 : vector<1x1xf32>
    %1049 = arith.mulf %984, %985 : vector<1x1xf32>
    %1050 = arith.mulf %982, %984 : vector<1x1xf32>
    %1051 = arith.mulf %983, %985 : vector<1x1xf32>
    %1052 = arith.mulf %983, %984 : vector<1x1xf32>
    %1053 = arith.mulf %982, %985 : vector<1x1xf32>
    %1054 = vector.extract_strided_slice %976 {offsets = [0, 0], sizes = [1, 1], strides = [1, 1]} : vector<1x3xf32> to vector<1x1xf32>
    %1055 = vector.extract_strided_slice %976 {offsets = [0, 1], sizes = [1, 1], strides = [1, 1]} : vector<1x3xf32> to vector<1x1xf32>
    %1056 = vector.extract_strided_slice %976 {offsets = [0, 2], sizes = [1, 1], strides = [1, 1]} : vector<1x3xf32> to vector<1x1xf32>
    %1057 = arith.subf %1044, %1045 : vector<1x1xf32>
    %1058 = arith.subf %1057, %1046 : vector<1x1xf32>
    %1059 = arith.addf %1058, %1047 : vector<1x1xf32>
    %1060 = arith.mulf %1059, %1054 : vector<1x1xf32>
    %1061 = arith.subf %1048, %1049 : vector<1x1xf32>
    %cst_158 = arith.constant 2.000000e+00 : f32
    %1062 = vector.broadcast %cst_158 : f32 to vector<1x1xf32>
    %1063 = arith.mulf %1062, %1061 : vector<1x1xf32>
    %1064 = arith.mulf %1063, %1055 : vector<1x1xf32>
    %1065 = arith.addf %1060, %1064 : vector<1x1xf32>
    %1066 = arith.addf %1050, %1051 : vector<1x1xf32>
    %cst_159 = arith.constant 2.000000e+00 : f32
    %1067 = vector.broadcast %cst_159 : f32 to vector<1x1xf32>
    %1068 = arith.mulf %1067, %1066 : vector<1x1xf32>
    %1069 = arith.mulf %1068, %1056 : vector<1x1xf32>
    %1070 = arith.addf %1065, %1069 : vector<1x1xf32>
    %1071 = arith.addf %1048, %1049 : vector<1x1xf32>
    %cst_160 = arith.constant 2.000000e+00 : f32
    %1072 = vector.broadcast %cst_160 : f32 to vector<1x1xf32>
    %1073 = arith.mulf %1072, %1071 : vector<1x1xf32>
    %1074 = arith.mulf %1073, %1054 : vector<1x1xf32>
    %cst_161 = arith.constant 0.000000e+00 : f32
    %1075 = vector.broadcast %cst_161 : f32 to vector<1x1xf32>
    %1076 = arith.subf %1075, %1044 : vector<1x1xf32>
    %1077 = arith.addf %1076, %1045 : vector<1x1xf32>
    %1078 = arith.subf %1077, %1046 : vector<1x1xf32>
    %1079 = arith.addf %1078, %1047 : vector<1x1xf32>
    %1080 = arith.mulf %1079, %1055 : vector<1x1xf32>
    %1081 = arith.addf %1074, %1080 : vector<1x1xf32>
    %1082 = arith.subf %1052, %1053 : vector<1x1xf32>
    %cst_162 = arith.constant 2.000000e+00 : f32
    %1083 = vector.broadcast %cst_162 : f32 to vector<1x1xf32>
    %1084 = arith.mulf %1083, %1082 : vector<1x1xf32>
    %1085 = arith.mulf %1084, %1056 : vector<1x1xf32>
    %1086 = arith.addf %1081, %1085 : vector<1x1xf32>
    %1087 = arith.subf %1050, %1051 : vector<1x1xf32>
    %cst_163 = arith.constant 2.000000e+00 : f32
    %1088 = vector.broadcast %cst_163 : f32 to vector<1x1xf32>
    %1089 = arith.mulf %1088, %1087 : vector<1x1xf32>
    %1090 = arith.mulf %1089, %1054 : vector<1x1xf32>
    %1091 = arith.addf %1052, %1053 : vector<1x1xf32>
    %cst_164 = arith.constant 2.000000e+00 : f32
    %1092 = vector.broadcast %cst_164 : f32 to vector<1x1xf32>
    %1093 = arith.mulf %1092, %1091 : vector<1x1xf32>
    %1094 = arith.mulf %1093, %1055 : vector<1x1xf32>
    %1095 = arith.addf %1090, %1094 : vector<1x1xf32>
    %cst_165 = arith.constant 0.000000e+00 : f32
    %1096 = vector.broadcast %cst_165 : f32 to vector<1x1xf32>
    %1097 = arith.subf %1096, %1044 : vector<1x1xf32>
    %1098 = arith.subf %1097, %1045 : vector<1x1xf32>
    %1099 = arith.addf %1098, %1046 : vector<1x1xf32>
    %1100 = arith.addf %1099, %1047 : vector<1x1xf32>
    %1101 = arith.mulf %1100, %1056 : vector<1x1xf32>
    %1102 = arith.addf %1095, %1101 : vector<1x1xf32>
    %1103 = vector.broadcast %1070 : vector<1x1xf32> to vector<1x3xf32>
    %1104 = arith.mulf %1103, %34 : vector<1x3xf32>
    %1105 = vector.broadcast %1086 : vector<1x1xf32> to vector<1x3xf32>
    %1106 = arith.mulf %1105, %38 : vector<1x3xf32>
    %1107 = arith.addf %1104, %1106 : vector<1x3xf32>
    %1108 = vector.broadcast %1102 : vector<1x1xf32> to vector<1x3xf32>
    %1109 = arith.mulf %1108, %42 : vector<1x3xf32>
    %1110 = arith.addf %1107, %1109 : vector<1x3xf32>
    %1111 = arith.addf %1110, %981#1 : vector<1x3xf32>
    %1112 = arith.select %969, %12, %1111 : vector<1x3xf32>
    %1113 = arith.index_cast %c6_i32 : i32 to index
    %c0_166 = arith.constant 0 : index
    %c0_167 = arith.constant 0 : index
    %1114 = vector.load %arg5[%1113, %c0_166, %c0_167] : memref<8x1x4xf32, #tpu.memory_space<vmem>>, vector<1x1x4xf32>
    %1115 = vector.shape_cast %1114 : vector<1x1x4xf32> to vector<1x4xf32>
    %1116 = vector.shape_cast %1043 : vector<1x4xf32> to vector<1x1x4xf32>
    tpu.vector_store %arg5[%1113, %c0_166, %c0_167], %1116 {strides = array<i32>} : memref<8x1x4xf32, #tpu.memory_space<vmem>>, vector<1x1x4xf32>,
    %1117 = arith.index_cast %c6_i32 : i32 to index
    %c0_168 = arith.constant 0 : index
    %c0_169 = arith.constant 0 : index
    %1118 = vector.load %arg4[%1117, %c0_168, %c0_169] : memref<8x1x3xf32, #tpu.memory_space<vmem>>, vector<1x1x3xf32>
    %1119 = vector.shape_cast %1118 : vector<1x1x3xf32> to vector<1x3xf32>
    %1120 = vector.shape_cast %1112 : vector<1x3xf32> to vector<1x1x3xf32>
    tpu.vector_store %arg4[%1117, %c0_168, %c0_169], %1120 {strides = array<i32>} : memref<8x1x3xf32, #tpu.memory_space<vmem>>, vector<1x1x3xf32>,
    %c7_i32 = arith.constant 7 : i32
    %1121 = arith.index_cast %c7_i32 : i32 to index
    %1122 = memref.load %arg0[%1121] : memref<8xi32, #tpu.memory_space<smem>>
    %c0_i32_170 = arith.constant 0 : i32
    %1123 = arith.cmpi slt, %1122, %c0_i32_170 : i32
    %c0_i32_171 = arith.constant 0 : i32
    %1124 = arith.maxsi %1122, %c0_i32_171 : i32
    %1125 = arith.index_cast %c7_i32 : i32 to index
    %c0_172 = arith.constant 0 : index
    %c0_173 = arith.constant 0 : index
    %1126 = vector.load %arg6[%1125, %c0_172, %c0_173] : memref<8x1x4xf32, #tpu.memory_space<vmem>>, vector<1x1x4xf32>
    %1127 = vector.shape_cast %1126 : vector<1x1x4xf32> to vector<1x4xf32>
    %1128 = arith.index_cast %c7_i32 : i32 to index
    %c0_174 = arith.constant 0 : index
    %c0_175 = arith.constant 0 : index
    %1129 = vector.load %arg2[%1128, %c0_174, %c0_175] : memref<8x1x3xf32, #tpu.memory_space<vmem>>, vector<1x1x3xf32>
    %1130 = vector.shape_cast %1129 : vector<1x1x3xf32> to vector<1x3xf32>
    %c1_i32_176 = arith.constant 1 : i32
    %1131 = arith.subi %c7_i32, %c1_i32_176 : i32
    %1132 = arith.cmpi eq, %1122, %1131 : i32
    %1133 = arith.extui %1132 : i1 to i32
    %c0_i32_177 = arith.constant 0 : i32
    %1134 = arith.cmpi ne, %1133, %c0_i32_177 : i32
    %1135:2 = scf.if %1134 -> (vector<1x4xf32>, vector<1x3xf32>) {
      scf.yield %1043, %1112 : vector<1x4xf32>, vector<1x3xf32>
    } else {
      %1275 = arith.index_cast %1124 : i32 to index
      %c0_192 = arith.constant 0 : index
      %c0_193 = arith.constant 0 : index
      %1276 = vector.load %arg5[%1275, %c0_192, %c0_193] : memref<8x1x4xf32, #tpu.memory_space<vmem>>, vector<1x1x4xf32>
      %1277 = vector.shape_cast %1276 : vector<1x1x4xf32> to vector<1x4xf32>
      %1278 = arith.index_cast %1124 : i32 to index
      %c0_194 = arith.constant 0 : index
      %c0_195 = arith.constant 0 : index
      %1279 = vector.load %arg4[%1278, %c0_194, %c0_195] : memref<8x1x3xf32, #tpu.memory_space<vmem>>, vector<1x1x3xf32>
      %1280 = vector.shape_cast %1279 : vector<1x1x3xf32> to vector<1x3xf32>
      scf.yield %1277, %1280 : vector<1x4xf32>, vector<1x3xf32>
    }
    %1136 = vector.extract_strided_slice %1135#0 {offsets = [0, 0], sizes = [1, 1], strides = [1, 1]} : vector<1x4xf32> to vector<1x1xf32>
    %1137 = vector.extract_strided_slice %1135#0 {offsets = [0, 1], sizes = [1, 1], strides = [1, 1]} : vector<1x4xf32> to vector<1x1xf32>
    %1138 = vector.extract_strided_slice %1135#0 {offsets = [0, 2], sizes = [1, 1], strides = [1, 1]} : vector<1x4xf32> to vector<1x1xf32>
    %1139 = vector.extract_strided_slice %1135#0 {offsets = [0, 3], sizes = [1, 1], strides = [1, 1]} : vector<1x4xf32> to vector<1x1xf32>
    %1140 = vector.extract_strided_slice %1127 {offsets = [0, 0], sizes = [1, 1], strides = [1, 1]} : vector<1x4xf32> to vector<1x1xf32>
    %1141 = vector.extract_strided_slice %1127 {offsets = [0, 1], sizes = [1, 1], strides = [1, 1]} : vector<1x4xf32> to vector<1x1xf32>
    %1142 = vector.extract_strided_slice %1127 {offsets = [0, 2], sizes = [1, 1], strides = [1, 1]} : vector<1x4xf32> to vector<1x1xf32>
    %1143 = vector.extract_strided_slice %1127 {offsets = [0, 3], sizes = [1, 1], strides = [1, 1]} : vector<1x4xf32> to vector<1x1xf32>
    %1144 = arith.mulf %1139, %1140 : vector<1x1xf32>
    %1145 = arith.mulf %1136, %1143 : vector<1x1xf32>
    %1146 = arith.addf %1144, %1145 : vector<1x1xf32>
    %1147 = arith.mulf %1137, %1142 : vector<1x1xf32>
    %1148 = arith.addf %1146, %1147 : vector<1x1xf32>
    %1149 = arith.mulf %1138, %1141 : vector<1x1xf32>
    %1150 = arith.subf %1148, %1149 : vector<1x1xf32>
    %1151 = arith.mulf %1139, %1141 : vector<1x1xf32>
    %1152 = arith.mulf %1136, %1142 : vector<1x1xf32>
    %1153 = arith.subf %1151, %1152 : vector<1x1xf32>
    %1154 = arith.mulf %1137, %1143 : vector<1x1xf32>
    %1155 = arith.addf %1153, %1154 : vector<1x1xf32>
    %1156 = arith.mulf %1138, %1140 : vector<1x1xf32>
    %1157 = arith.addf %1155, %1156 : vector<1x1xf32>
    %1158 = arith.mulf %1139, %1142 : vector<1x1xf32>
    %1159 = arith.mulf %1136, %1141 : vector<1x1xf32>
    %1160 = arith.addf %1158, %1159 : vector<1x1xf32>
    %1161 = arith.mulf %1137, %1140 : vector<1x1xf32>
    %1162 = arith.subf %1160, %1161 : vector<1x1xf32>
    %1163 = arith.mulf %1138, %1143 : vector<1x1xf32>
    %1164 = arith.addf %1162, %1163 : vector<1x1xf32>
    %1165 = arith.mulf %1139, %1143 : vector<1x1xf32>
    %1166 = arith.mulf %1136, %1140 : vector<1x1xf32>
    %1167 = arith.subf %1165, %1166 : vector<1x1xf32>
    %1168 = arith.mulf %1137, %1141 : vector<1x1xf32>
    %1169 = arith.subf %1167, %1168 : vector<1x1xf32>
    %1170 = arith.mulf %1138, %1142 : vector<1x1xf32>
    %1171 = arith.subf %1169, %1170 : vector<1x1xf32>
    %1172 = arith.mulf %1150, %1150 : vector<1x1xf32>
    %1173 = arith.mulf %1157, %1157 : vector<1x1xf32>
    %1174 = arith.addf %1172, %1173 : vector<1x1xf32>
    %1175 = arith.mulf %1164, %1164 : vector<1x1xf32>
    %1176 = arith.addf %1174, %1175 : vector<1x1xf32>
    %1177 = arith.mulf %1171, %1171 : vector<1x1xf32>
    %1178 = arith.addf %1176, %1177 : vector<1x1xf32>
    %1179 = math.sqrt %1178 : vector<1x1xf32>
    %cst_178 = arith.constant 9.99999974E-6 : f32
    %1180 = vector.broadcast %cst_178 : f32 to vector<1x1xf32>
    %1181 = arith.addf %1179, %1180 : vector<1x1xf32>
    %cst_179 = arith.constant 1.000000e+00 : f32
    %1182 = vector.broadcast %cst_179 : f32 to vector<1x1xf32>
    %1183 = arith.divf %1182, %1181 : vector<1x1xf32>
    %1184 = vector.broadcast %1150 : vector<1x1xf32> to vector<1x4xf32>
    %1185 = arith.mulf %1184, %18 : vector<1x4xf32>
    %1186 = vector.broadcast %1157 : vector<1x1xf32> to vector<1x4xf32>
    %1187 = arith.mulf %1186, %22 : vector<1x4xf32>
    %1188 = arith.addf %1185, %1187 : vector<1x4xf32>
    %1189 = vector.broadcast %1164 : vector<1x1xf32> to vector<1x4xf32>
    %1190 = arith.mulf %1189, %26 : vector<1x4xf32>
    %1191 = arith.addf %1188, %1190 : vector<1x4xf32>
    %1192 = vector.broadcast %1171 : vector<1x1xf32> to vector<1x4xf32>
    %1193 = arith.mulf %1192, %30 : vector<1x4xf32>
    %1194 = arith.addf %1191, %1193 : vector<1x4xf32>
    %1195 = vector.broadcast %1183 : vector<1x1xf32> to vector<1x4xf32>
    %1196 = arith.mulf %1194, %1195 : vector<1x4xf32>
    %1197 = arith.select %1123, %1127, %1196 : vector<1x4xf32>
    %1198 = arith.mulf %1136, %1136 : vector<1x1xf32>
    %1199 = arith.mulf %1137, %1137 : vector<1x1xf32>
    %1200 = arith.mulf %1138, %1138 : vector<1x1xf32>
    %1201 = arith.mulf %1139, %1139 : vector<1x1xf32>
    %1202 = arith.mulf %1136, %1137 : vector<1x1xf32>
    %1203 = arith.mulf %1138, %1139 : vector<1x1xf32>
    %1204 = arith.mulf %1136, %1138 : vector<1x1xf32>
    %1205 = arith.mulf %1137, %1139 : vector<1x1xf32>
    %1206 = arith.mulf %1137, %1138 : vector<1x1xf32>
    %1207 = arith.mulf %1136, %1139 : vector<1x1xf32>
    %1208 = vector.extract_strided_slice %1130 {offsets = [0, 0], sizes = [1, 1], strides = [1, 1]} : vector<1x3xf32> to vector<1x1xf32>
    %1209 = vector.extract_strided_slice %1130 {offsets = [0, 1], sizes = [1, 1], strides = [1, 1]} : vector<1x3xf32> to vector<1x1xf32>
    %1210 = vector.extract_strided_slice %1130 {offsets = [0, 2], sizes = [1, 1], strides = [1, 1]} : vector<1x3xf32> to vector<1x1xf32>
    %1211 = arith.subf %1198, %1199 : vector<1x1xf32>
    %1212 = arith.subf %1211, %1200 : vector<1x1xf32>
    %1213 = arith.addf %1212, %1201 : vector<1x1xf32>
    %1214 = arith.mulf %1213, %1208 : vector<1x1xf32>
    %1215 = arith.subf %1202, %1203 : vector<1x1xf32>
    %cst_180 = arith.constant 2.000000e+00 : f32
    %1216 = vector.broadcast %cst_180 : f32 to vector<1x1xf32>
    %1217 = arith.mulf %1216, %1215 : vector<1x1xf32>
    %1218 = arith.mulf %1217, %1209 : vector<1x1xf32>
    %1219 = arith.addf %1214, %1218 : vector<1x1xf32>
    %1220 = arith.addf %1204, %1205 : vector<1x1xf32>
    %cst_181 = arith.constant 2.000000e+00 : f32
    %1221 = vector.broadcast %cst_181 : f32 to vector<1x1xf32>
    %1222 = arith.mulf %1221, %1220 : vector<1x1xf32>
    %1223 = arith.mulf %1222, %1210 : vector<1x1xf32>
    %1224 = arith.addf %1219, %1223 : vector<1x1xf32>
    %1225 = arith.addf %1202, %1203 : vector<1x1xf32>
    %cst_182 = arith.constant 2.000000e+00 : f32
    %1226 = vector.broadcast %cst_182 : f32 to vector<1x1xf32>
    %1227 = arith.mulf %1226, %1225 : vector<1x1xf32>
    %1228 = arith.mulf %1227, %1208 : vector<1x1xf32>
    %cst_183 = arith.constant 0.000000e+00 : f32
    %1229 = vector.broadcast %cst_183 : f32 to vector<1x1xf32>
    %1230 = arith.subf %1229, %1198 : vector<1x1xf32>
    %1231 = arith.addf %1230, %1199 : vector<1x1xf32>
    %1232 = arith.subf %1231, %1200 : vector<1x1xf32>
    %1233 = arith.addf %1232, %1201 : vector<1x1xf32>
    %1234 = arith.mulf %1233, %1209 : vector<1x1xf32>
    %1235 = arith.addf %1228, %1234 : vector<1x1xf32>
    %1236 = arith.subf %1206, %1207 : vector<1x1xf32>
    %cst_184 = arith.constant 2.000000e+00 : f32
    %1237 = vector.broadcast %cst_184 : f32 to vector<1x1xf32>
    %1238 = arith.mulf %1237, %1236 : vector<1x1xf32>
    %1239 = arith.mulf %1238, %1210 : vector<1x1xf32>
    %1240 = arith.addf %1235, %1239 : vector<1x1xf32>
    %1241 = arith.subf %1204, %1205 : vector<1x1xf32>
    %cst_185 = arith.constant 2.000000e+00 : f32
    %1242 = vector.broadcast %cst_185 : f32 to vector<1x1xf32>
    %1243 = arith.mulf %1242, %1241 : vector<1x1xf32>
    %1244 = arith.mulf %1243, %1208 : vector<1x1xf32>
    %1245 = arith.addf %1206, %1207 : vector<1x1xf32>
    %cst_186 = arith.constant 2.000000e+00 : f32
    %1246 = vector.broadcast %cst_186 : f32 to vector<1x1xf32>
    %1247 = arith.mulf %1246, %1245 : vector<1x1xf32>
    %1248 = arith.mulf %1247, %1209 : vector<1x1xf32>
    %1249 = arith.addf %1244, %1248 : vector<1x1xf32>
    %cst_187 = arith.constant 0.000000e+00 : f32
    %1250 = vector.broadcast %cst_187 : f32 to vector<1x1xf32>
    %1251 = arith.subf %1250, %1198 : vector<1x1xf32>
    %1252 = arith.subf %1251, %1199 : vector<1x1xf32>
    %1253 = arith.addf %1252, %1200 : vector<1x1xf32>
    %1254 = arith.addf %1253, %1201 : vector<1x1xf32>
    %1255 = arith.mulf %1254, %1210 : vector<1x1xf32>
    %1256 = arith.addf %1249, %1255 : vector<1x1xf32>
    %1257 = vector.broadcast %1224 : vector<1x1xf32> to vector<1x3xf32>
    %1258 = arith.mulf %1257, %34 : vector<1x3xf32>
    %1259 = vector.broadcast %1240 : vector<1x1xf32> to vector<1x3xf32>
    %1260 = arith.mulf %1259, %38 : vector<1x3xf32>
    %1261 = arith.addf %1258, %1260 : vector<1x3xf32>
    %1262 = vector.broadcast %1256 : vector<1x1xf32> to vector<1x3xf32>
    %1263 = arith.mulf %1262, %42 : vector<1x3xf32>
    %1264 = arith.addf %1261, %1263 : vector<1x3xf32>
    %1265 = arith.addf %1264, %1135#1 : vector<1x3xf32>
    %1266 = arith.select %1123, %12, %1265 : vector<1x3xf32>
    %1267 = arith.index_cast %c7_i32 : i32 to index
    %c0_188 = arith.constant 0 : index
    %c0_189 = arith.constant 0 : index
    %1268 = vector.load %arg5[%1267, %c0_188, %c0_189] : memref<8x1x4xf32, #tpu.memory_space<vmem>>, vector<1x1x4xf32>
    %1269 = vector.shape_cast %1268 : vector<1x1x4xf32> to vector<1x4xf32>
    %1270 = vector.shape_cast %1197 : vector<1x4xf32> to vector<1x1x4xf32>
    tpu.vector_store %arg5[%1267, %c0_188, %c0_189], %1270 {strides = array<i32>} : memref<8x1x4xf32, #tpu.memory_space<vmem>>, vector<1x1x4xf32>,
    %1271 = arith.index_cast %c7_i32 : i32 to index
    %c0_190 = arith.constant 0 : index
    %c0_191 = arith.constant 0 : index
    %1272 = vector.load %arg4[%1271, %c0_190, %c0_191] : memref<8x1x3xf32, #tpu.memory_space<vmem>>, vector<1x1x3xf32>
    %1273 = vector.shape_cast %1272 : vector<1x1x3xf32> to vector<1x3xf32>
    %1274 = vector.shape_cast %1266 : vector<1x3xf32> to vector<1x1x3xf32>
    tpu.vector_store %arg4[%1271, %c0_190, %c0_191], %1274 {strides = array<i32>} : memref<8x1x3xf32, #tpu.memory_space<vmem>>, vector<1x1x3xf32>,
    %c8_i32 = arith.constant 8 : i32
    return
  }
}

</mosaic_0001>

<llo_original>
// kernel: tpu_custom_call.1
$region0: #{tpu_custom_call.1}
  #allocation0 [shape = 'u32[]', space=smem, size = 0x4, offset = 0x4, fixed_abs, tag = 'smem constant byte address 0x4 - core index']
  #allocation1 [shape = 'u32[144,128]{1,0:T(1,128)}', space=vmem, size = 0x12000, scoped, tag = 'internal scratch']
  #allocation2 [shape = 'f32[8,1,4]{2,1,0:T(1,128)}', space=vmem, size = 0x1000, scoped, tag = 'scratch operand']
  #allocation3 [shape = 'f32[8,1,4]{2,1,0:T(1,128)}', space=vmem, size = 0x1000, scoped, tag = 'scratch operand']
  %s0 = inlined_call_operand.vmem [shape: s32[8], index: 0, kind: input, shape index: {}]
  %s1 = inlined_call_operand.vmem [shape: f32[8,1,4], index: 1, kind: input, shape index: {}]
  %s2 = inlined_call_operand.vmem [shape: f32[8,1,3], index: 2, kind: input, shape index: {}]
  %s3 = inlined_call_operand.vmem [shape: f32[1,3], index: 3, kind: input, shape index: {}]
  %s4 = inlined_call_operand.vmem [shape: f32[8,1,3], index: 4, kind: output, shape index: {}]
  %s5 = sld [smem:[#allocation0]]
  $region94: #{tpu_custom_call.1} parent=0
    _
  %s7 = ssub.s32 1, %s5
  %s8 = scalar_select 0, %s7, %s5
  $region1: #{tpu_custom_call.1} parent=0
    #allocation4 [shape = 'u8[512]{0}', space=smem, size = 0x200, scoped, tag = 'input window, operand 0, single buffered']
    #allocation5 [shape = 's32[1]{0}', space=sflag, size = 0x4, scoped, tag = 'scoped memory for tpu_custom_call.1']
    %9 = vsyncpa [#allocation5], 0
    // Predicated region
    $region2: #{tpu_custom_call.1} parent=1 // pred_check
      _
    $region3: #{tpu_custom_call.1} parent=1 // pred_check_branch
      %11 = sbr.rel (0) target = $region5
    $region4: #{tpu_custom_call.1} parent=1 // pred_region
      %s13 = ssub.s32 16, 16
      %14 = vsyncadd [#allocation5], %s13
      %s16 = sshll.u32 %s0, 4
      %s17 = int_to_ptr.vmem [resolvable:$true] %s16
      %19 = dma.vmem_to_smem %s17, 16, [#allocation4], [#allocation5]
    $region5: #{tpu_custom_call.1} parent=1 // pred_fallthru
      _
    // Predicated region
    $region6: #{tpu_custom_call.1} parent=1 // pred_check
      _
    $region7: #{tpu_custom_call.1} parent=1 // pred_check_branch
      %21 = sbr.rel (0) target = $region9
    $region8: #{tpu_custom_call.1} parent=1 // pred_region
      _
    $region9: #{tpu_custom_call.1} parent=1 // pred_fallthru
      _
    // Predicated region
    $region10: #{tpu_custom_call.1} parent=1 // pred_check
      _
    $region11: #{tpu_custom_call.1} parent=1 // pred_check_branch
      %23 = sbr.rel (0) target = $region13
    $region12: #{tpu_custom_call.1} parent=1 // pred_region
      _
    $region13: #{tpu_custom_call.1} parent=1 // pred_fallthru
      _
    // Predicated region
    $region14: #{tpu_custom_call.1} parent=1 // pred_check
      _
    $region15: #{tpu_custom_call.1} parent=1 // pred_check_branch
      %25 = sbr.rel (0) target = $region17
    $region16: #{tpu_custom_call.1} parent=1 // pred_region
      _
    $region17: #{tpu_custom_call.1} parent=1 // pred_fallthru
      _
    // Predicated region
    $region18: #{tpu_custom_call.1} parent=1 // pred_check
      _
    $region19: #{tpu_custom_call.1} parent=1 // pred_check_branch
      %27 = sbr.rel (0) target = $region21
    $region20: #{tpu_custom_call.1} parent=1 // pred_region
      %28 = dma.done [#allocation5], 16
    $region21: #{tpu_custom_call.1} parent=1 // pred_fallthru
      _
    %29 = sfence
    %v30 = vld [vmem:[%s1] sm:$0x1]
    %v31 = vld [vmem:[%s1 + $0x1] sm:$0x1]
    %v32 = vld [vmem:[%s1 + $0x2] sm:$0x1]
    %v33 = vld [vmem:[%s1 + $0x3] sm:$0x1]
    %v34 = vld [vmem:[%s1 + $0x4] sm:$0x1]
    %v35 = vld [vmem:[%s1 + $0x5] sm:$0x1]
    %v36 = vld [vmem:[%s1 + $0x6] sm:$0x1]
    %v37 = vld [vmem:[%s1 + $0x7] sm:$0x1]
    %v38 = vmul.f32 %v30, %v30
    %v39 = vmul.f32 %v31, %v31
    %v40 = vmul.f32 %v32, %v32
    %v41 = vmul.f32 %v33, %v33
    %v42 = vmul.f32 %v34, %v34
    %v43 = vmul.f32 %v35, %v35
    %v44 = vmul.f32 %v36, %v36
    %v45 = vmul.f32 %v37, %v37
    %vm46 = vcmask 24576
    %v47 = vsel %vm46, %v38, 0.0
    %48 = vadd.xlane.f32.xlu0 %v47
    %v49 = vpop.xlane.xlu0 %48
    %v50 = vsel %vm46, %v39, 0.0
    %51 = vadd.xlane.f32.xlu0 %v50
    %v52 = vpop.xlane.xlu0 %51
    %v53 = vsel %vm46, %v40, 0.0
    %54 = vadd.xlane.f32.xlu0 %v53
    %v55 = vpop.xlane.xlu0 %54
    %v56 = vsel %vm46, %v41, 0.0
    %57 = vadd.xlane.f32.xlu0 %v56
    %v58 = vpop.xlane.xlu0 %57
    %v59 = vsel %vm46, %v42, 0.0
    %60 = vadd.xlane.f32.xlu0 %v59
    %v61 = vpop.xlane.xlu0 %60
    %v62 = vsel %vm46, %v43, 0.0
    %63 = vadd.xlane.f32.xlu0 %v62
    %v64 = vpop.xlane.xlu0 %63
    %v65 = vsel %vm46, %v44, 0.0
    %66 = vadd.xlane.f32.xlu0 %v65
    %v67 = vpop.xlane.xlu0 %66
    %v68 = vsel %vm46, %v45, 0.0
    %69 = vadd.xlane.f32.xlu0 %v68
    %v70 = vpop.xlane.xlu0 %69
    %v71 = vrsqrt.pop %v49
    %v72 = vmul.f32 %v49, %v71
    %vm73 = vcmp.eq.f32.partialorder %v49, inf
    %v74 = vsel %vm73, %v49, %v72
    %vm75 = vcmp.eq.f32.partialorder %v49, 0.0
    %v76 = vand.u32 %v49, 2147483648
    %v77 = vsel %vm75, %v76, %v74
    %v78 = vrsqrt.pop %v52
    %v79 = vmul.f32 %v52, %v78
    %vm80 = vcmp.eq.f32.partialorder %v52, inf
    %v81 = vsel %vm80, %v52, %v79
    %vm82 = vcmp.eq.f32.partialorder %v52, 0.0
    %v83 = vand.u32 %v52, 2147483648
    %v84 = vsel %vm82, %v83, %v81
    %v85 = vrsqrt.pop %v55
    %v86 = vmul.f32 %v55, %v85
    %vm87 = vcmp.eq.f32.partialorder %v55, inf
    %v88 = vsel %vm87, %v55, %v86
    %vm89 = vcmp.eq.f32.partialorder %v55, 0.0
    %v90 = vand.u32 %v55, 2147483648
    %v91 = vsel %vm89, %v90, %v88
    %v92 = vrsqrt.pop %v58
    %v93 = vmul.f32 %v58, %v92
    %vm94 = vcmp.eq.f32.partialorder %v58, inf
    %v95 = vsel %vm94, %v58, %v93
    %vm96 = vcmp.eq.f32.partialorder %v58, 0.0
    %v97 = vand.u32 %v58, 2147483648
    %v98 = vsel %vm96, %v97, %v95
    %v99 = vrsqrt.pop %v61
    %v100 = vmul.f32 %v61, %v99
    %vm101 = vcmp.eq.f32.partialorder %v61, inf
    %v102 = vsel %vm101, %v61, %v100
    %vm103 = vcmp.eq.f32.partialorder %v61, 0.0
    %v104 = vand.u32 %v61, 2147483648
    %v105 = vsel %vm103, %v104, %v102
    %v106 = vrsqrt.pop %v64
    %v107 = vmul.f32 %v64, %v106
    %vm108 = vcmp.eq.f32.partialorder %v64, inf
    %v109 = vsel %vm108, %v64, %v107
    %vm110 = vcmp.eq.f32.partialorder %v64, 0.0
    %v111 = vand.u32 %v64, 2147483648
    %v112 = vsel %vm110, %v111, %v109
    %v113 = vrsqrt.pop %v67
    %v114 = vmul.f32 %v67, %v113
    %vm115 = vcmp.eq.f32.partialorder %v67, inf
    %v116 = vsel %vm115, %v67, %v114
    %vm117 = vcmp.eq.f32.partialorder %v67, 0.0
    %v118 = vand.u32 %v67, 2147483648
    %v119 = vsel %vm117, %v118, %v116
    %v120 = vrsqrt.pop %v70
    %v121 = vmul.f32 %v70, %v120
    %vm122 = vcmp.eq.f32.partialorder %v70, inf
    %v123 = vsel %vm122, %v70, %v121
    %vm124 = vcmp.eq.f32.partialorder %v70, 0.0
    %v125 = vand.u32 %v70, 2147483648
    %v126 = vsel %vm124, %v125, %v123
    %v127 = vadd.f32 %v77, 1e-05
    %v128 = vadd.f32 %v84, 1e-05
    %v129 = vadd.f32 %v91, 1e-05
    %v130 = vadd.f32 %v98, 1e-05
    %v131 = vadd.f32 %v105, 1e-05
    %v132 = vadd.f32 %v112, 1e-05
    %v133 = vadd.f32 %v119, 1e-05
    %v134 = vadd.f32 %v126, 1e-05
    %v135 = vrcp.pop %v127
    %v136 = vmul.f32 1.0, %v135
    %v137 = vrcp.pop %v128
    %v138 = vmul.f32 1.0, %v137
    %v139 = vrcp.pop %v129
    %v140 = vmul.f32 1.0, %v139
    %v141 = vrcp.pop %v130
    %v142 = vmul.f32 1.0, %v141
    %v143 = vrcp.pop %v131
    %v144 = vmul.f32 1.0, %v143
    %v145 = vrcp.pop %v132
    %v146 = vmul.f32 1.0, %v145
    %v147 = vrcp.pop %v133
    %v148 = vmul.f32 1.0, %v147
    %v149 = vrcp.pop %v134
    %v150 = vmul.f32 1.0, %v149
    %v151 = vmul.f32 %v30, %v136
    %v152 = vmul.f32 %v31, %v138
    %v153 = vmul.f32 %v32, %v140
    %v154 = vmul.f32 %v33, %v142
    %v155 = vmul.f32 %v34, %v144
    %v156 = vmul.f32 %v35, %v146
    %v157 = vmul.f32 %v36, %v148
    %v158 = vmul.f32 %v37, %v150
    %159 = vst.msk [vmem:[#allocation3] sm:$0x1] %vm46, %v151
    %160 = vst.msk [vmem:[#allocation3 + $0x1] sm:$0x1] %vm46, %v152
    %161 = vst.msk [vmem:[#allocation3 + $0x2] sm:$0x1] %vm46, %v153
    %162 = vst.msk [vmem:[#allocation3 + $0x3] sm:$0x1] %vm46, %v154
    %163 = vst.msk [vmem:[#allocation3 + $0x4] sm:$0x1] %vm46, %v155
    %164 = vst.msk [vmem:[#allocation3 + $0x5] sm:$0x1] %vm46, %v156
    %165 = vst.msk [vmem:[#allocation3 + $0x6] sm:$0x1] %vm46, %v157
    %166 = vst.msk [vmem:[#allocation3 + $0x7] sm:$0x1] %vm46, %v158
    %v167 = vld [vmem:[%s3] sm:$0x1]
    %v168 = vlaneseq
    %v169 = vand.u32 %v168, 127
    %vm170 = vcmp.eq.s32.totalorder %v169, 0
    %v171 = vsel %vm170, 1, 0
    %v172 = vcvt.s32.f32 %v171
    %vm173 = vcmp.eq.s32.totalorder %v169, 1
    %v174 = vsel %vm173, 1, 0
    %v175 = vcvt.s32.f32 %v174
    %vm176 = vcmp.eq.s32.totalorder %v169, 2
    %v177 = vsel %vm176, 1, 0
    %v178 = vcvt.s32.f32 %v177
    %vm179 = vcmp.eq.s32.totalorder %v169, 3
    %v180 = vsel %vm179, 1, 0
    %v181 = vcvt.s32.f32 %v180
    %s182 = sld [smem:[#allocation4]]
    %p183 = scmp.lt.s32.totalorder %s182, 0
    %p184 = scmp.gt.s32.totalorder %s182, 0
    %s185 = scalar_select %p184, %s182, 0
    %v186 = vld [vmem:[#allocation3] sm:$0x1]
    %v187 = vld [vmem:[%s2] sm:$0x1]
    %p188 = scmp.eq.s32.totalorder %s182, 4294967295
    // Predicated region
    $region22: #{tpu_custom_call.1} parent=1 // pred_check
      %p189 = pneg %p188
    $region23: #{tpu_custom_call.1} parent=1 // pred_check_branch
      %191 = sbr.rel (%p189) target = $region25
    $region24: #{tpu_custom_call.1} parent=1 // pred_region
      _
    $region25: #{tpu_custom_call.1} parent=1 // pred_fallthru
      _
    %p192 = pneg %p188
    // Predicated region
    $region26: #{tpu_custom_call.1} parent=1 // pred_check
      _
    $region27: #{tpu_custom_call.1} parent=1 // pred_check_branch
      %194 = sbr.rel (%p188) target = $region29
    $region28: #{tpu_custom_call.1} parent=1 // pred_region
      %s195 = scalar_lea.vmem [#allocation2], %s185
      %v196 = vld [vmem:[%s195] sm:$0x1]
      %s197 = scalar_lea.vmem %s4, %s185
      %v198 = vld [vmem:[%s197] sm:$0x1]
    $region29: #{tpu_custom_call.1} parent=1 // pred_fallthru
      %v199 = vphi %v181, %v196
      %v200 = vphi %v167, %v198
    %v202 = vlaneseq
    %v203 = vshrl.u32 %v202, 7
    %v204 = vsub.s32 0, %v203
    %v205 = vrot.slane %v186, %v204
    %206 = vrot.lane.b32.xlu0 %v205, 3
    %v207 = vpop.permute.xlu0 %206
    %v209 = vmul.f32 %v199, %v207
    %210 = vrot.lane.b32.xlu0 %v205, 125
    %v211 = vpop.permute.xlu0 %210
    %v213 = vmul.f32 %v199, %v211
    %215 = vrot.lane.b32.xlu0 %v213, 3
    %v216 = vpop.permute.xlu0 %215
    %v218 = vadd.f32 %v209, %v216
    %219 = vrot.lane.b32.xlu0 %v205, 127
    %v220 = vpop.permute.xlu0 %219
    %v222 = vmul.f32 %v199, %v220
    %224 = vrot.lane.b32.xlu0 %v222, 2
    %v225 = vpop.permute.xlu0 %224
    %v227 = vadd.f32 %v218, %v225
    %228 = vrot.lane.b32.xlu0 %v205, 1
    %v229 = vpop.permute.xlu0 %228
    %v231 = vmul.f32 %v199, %v229
    %233 = vrot.lane.b32.xlu0 %v231, 1
    %v234 = vpop.permute.xlu0 %233
    %v236 = vsub.f32 %v227, %v234
    %237 = vrot.lane.b32.xlu0 %v205, 2
    %v238 = vpop.permute.xlu0 %237
    %v240 = vmul.f32 %v199, %v238
    %241 = vrot.lane.b32.xlu0 %v205, 126
    %v242 = vpop.permute.xlu0 %241
    %v244 = vmul.f32 %v199, %v242
    %246 = vrot.lane.b32.xlu0 %v244, 3
    %v247 = vpop.permute.xlu0 %246
    %v249 = vsub.f32 %v240, %v247
    %250 = vrot.lane.b32.xlu0 %v244, 2
    %v251 = vpop.permute.xlu0 %250
    %v253 = vadd.f32 %v249, %v251
    %255 = vrot.lane.b32.xlu0 %v240, 1
    %v256 = vpop.permute.xlu0 %255
    %v258 = vadd.f32 %v253, %v256
    %259 = vrot.lane.b32.xlu0 %v222, 3
    %v260 = vpop.permute.xlu0 %259
    %v262 = vadd.f32 %v231, %v260
    %263 = vrot.lane.b32.xlu0 %v231, 2
    %v264 = vpop.permute.xlu0 %263
    %v266 = vsub.f32 %v262, %v264
    %267 = vrot.lane.b32.xlu0 %v222, 1
    %v268 = vpop.permute.xlu0 %267
    %v270 = vadd.f32 %v266, %v268
    %v271 = vmul.f32 %v199, %v186
    %273 = vrot.lane.b32.xlu0 %v271, 3
    %v274 = vpop.permute.xlu0 %273
    %v276 = vsub.f32 %v271, %v274
    %277 = vrot.lane.b32.xlu0 %v271, 2
    %v278 = vpop.permute.xlu0 %277
    %v280 = vsub.f32 %v276, %v278
    %281 = vrot.lane.b32.xlu0 %v271, 1
    %v282 = vpop.permute.xlu0 %281
    %v284 = vsub.f32 %v280, %v282
    %v285 = vmul.f32 %v236, %v236
    %v286 = vmul.f32 %v258, %v258
    %v287 = vadd.f32 %v285, %v286
    %v288 = vmul.f32 %v270, %v270
    %v289 = vadd.f32 %v287, %v288
    %v290 = vmul.f32 %v284, %v284
    %v291 = vadd.f32 %v289, %v290
    %v292 = vrsqrt.pop %v291
    %v293 = vmul.f32 %v291, %v292
    %vm294 = vcmp.eq.f32.partialorder %v291, inf
    %v295 = vsel %vm294, %v291, %v293
    %vm296 = vcmp.eq.f32.partialorder %v291, 0.0
    %v297 = vand.u32 %v291, 2147483648
    %v298 = vsel %vm296, %v297, %v295
    %v299 = vadd.f32 %v298, 1e-05
    %v300 = vrcp.pop %v299
    %v301 = vmul.f32 1.0, %v300
    %303 = vset.pattern.permute.xlu0 3
    %304 = vperm.xlu0 %303, %v236
    %v305 = vpop.permute.xlu0 %304
    %v307 = vmul.f32 %v305, %v172
    %309 = vset.pattern.permute.xlu0 3
    %310 = vperm.xlu0 %309, %v258
    %v311 = vpop.permute.xlu0 %310
    %v313 = vmul.f32 %v311, %v175
    %v314 = vadd.f32 %v307, %v313
    %316 = vset.pattern.permute.xlu0 3
    %317 = vperm.xlu0 %316, %v270
    %v318 = vpop.permute.xlu0 %317
    %v320 = vmul.f32 %v318, %v178
    %v321 = vadd.f32 %v314, %v320
    %323 = vset.pattern.permute.xlu0 3
    %324 = vperm.xlu0 %323, %v284
    %v325 = vpop.permute.xlu0 %324
    %v327 = vmul.f32 %v325, %v181
    %v328 = vadd.f32 %v321, %v327
    %330 = vset.pattern.permute.xlu0 3
    %331 = vperm.xlu0 %330, %v301
    %v332 = vpop.permute.xlu0 %331
    %v334 = vmul.f32 %v328, %v332
    %s335 = scalar_select %p183, 1, 0
    %v336 = vstv %s335
    %vm337 = vcmp.eq.s32.totalorder %v336, 1
    %v338 = vsel %vm337, %v186, %v334
    %v339 = vmul.f32 %v199, %v199
    %341 = vrot.lane.b32.xlu0 %v199, 127
    %v342 = vpop.permute.xlu0 %341
    %v344 = vmul.f32 %v199, %v342
    %345 = vrot.lane.b32.xlu0 %v199, 126
    %v346 = vpop.permute.xlu0 %345
    %v348 = vmul.f32 %v199, %v346
    %349 = vrot.lane.b32.xlu0 %v199, 125
    %v350 = vpop.permute.xlu0 %349
    %v352 = vmul.f32 %v199, %v350
    %354 = vrot.lane.b32.xlu0 %v339, 127
    %v355 = vpop.permute.xlu0 %354
    %v357 = vsub.f32 %v339, %v355
    %358 = vrot.lane.b32.xlu0 %v339, 126
    %v359 = vpop.permute.xlu0 %358
    %v361 = vsub.f32 %v357, %v359
    %362 = vrot.lane.b32.xlu0 %v339, 125
    %v363 = vpop.permute.xlu0 %362
    %v365 = vadd.f32 %v361, %v363
    %v366 = vmul.f32 %v365, %v187
    %368 = vrot.lane.b32.xlu0 %v344, 126
    %v369 = vpop.permute.xlu0 %368
    %v371 = vsub.f32 %v344, %v369
    %v372 = vmul.f32 %v371, 2.0
    %v374 = vlaneseq
    %v375 = vshrl.u32 %v374, 7
    %v376 = vsub.s32 0, %v375
    %v377 = vrot.slane %v187, %v376
    %378 = vrot.lane.b32.xlu0 %v377, 127
    %v379 = vpop.permute.xlu0 %378
    %v381 = vmul.f32 %v372, %v379
    %v382 = vadd.f32 %v366, %v381
    %384 = vrot.lane.b32.xlu0 %v348, 127
    %v385 = vpop.permute.xlu0 %384
    %v387 = vadd.f32 %v348, %v385
    %v388 = vmul.f32 %v387, 2.0
    %389 = vrot.lane.b32.xlu0 %v377, 126
    %v390 = vpop.permute.xlu0 %389
    %v392 = vmul.f32 %v388, %v390
    %v393 = vadd.f32 %v382, %v392
    %v394 = vadd.f32 %v344, %v369
    %v395 = vmul.f32 %v394, 2.0
    %v396 = vmul.f32 %v395, %v187
    %v397 = vsub.f32 0.0, %v339
    %v398 = vadd.f32 %v397, %v355
    %v399 = vsub.f32 %v398, %v359
    %v400 = vadd.f32 %v399, %v363
    %v401 = vmul.f32 %v400, %v379
    %v402 = vadd.f32 %v396, %v401
    %404 = vrot.lane.b32.xlu0 %v352, 1
    %v405 = vpop.permute.xlu0 %404
    %v407 = vsub.f32 %v344, %v405
    %v408 = vmul.f32 %v407, 2.0
    %v409 = vmul.f32 %v408, %v379
    %411 = vrot.lane.b32.xlu0 %v409, 127
    %v412 = vpop.permute.xlu0 %411
    %v414 = vadd.f32 %v402, %v412
    %v415 = vsub.f32 %v348, %v385
    %v416 = vmul.f32 %v415, 2.0
    %v417 = vmul.f32 %v416, %v187
    %v418 = vadd.f32 %v344, %v405
    %v419 = vmul.f32 %v418, 2.0
    %v420 = vmul.f32 %v419, %v187
    %422 = vrot.lane.b32.xlu0 %v420, 127
    %v423 = vpop.permute.xlu0 %422
    %v425 = vadd.f32 %v417, %v423
    %v426 = vsub.f32 %v397, %v355
    %v427 = vadd.f32 %v426, %v359
    %v428 = vadd.f32 %v427, %v363
    %v429 = vmul.f32 %v428, %v390
    %v430 = vadd.f32 %v425, %v429
    %432 = vset.pattern.permute.xlu0 0
    %433 = vperm.xlu0 %432, %v393
    %v434 = vpop.permute.xlu0 %433
    %v436 = vmul.f32 %v434, %v172
    %438 = vset.pattern.permute.xlu0 0
    %439 = vperm.xlu0 %438, %v414
    %v440 = vpop.permute.xlu0 %439
    %v442 = vmul.f32 %v440, %v175
    %v443 = vadd.f32 %v436, %v442
    %445 = vset.pattern.permute.xlu0 0
    %446 = vperm.xlu0 %445, %v430
    %v447 = vpop.permute.xlu0 %446
    %v449 = vmul.f32 %v447, %v178
    %v450 = vadd.f32 %v443, %v449
    %v451 = vadd.f32 %v450, %v200
    %v452 = vsel %vm337, %v167, %v451
    %453 = vst.msk [vmem:[#allocation2] sm:$0x1] %vm46, %v338
    %vm454 = vcmask 16384
    %455 = vst.msk [vmem:[%s4] sm:$0x1] %vm454, %v452
    %s456 = sld [smem:[#allocation4 + $0x1]]
    %p457 = scmp.lt.s32.totalorder %s456, 0
    %p458 = scmp.gt.s32.totalorder %s456, 0
    %s459 = scalar_select %p458, %s456, 0
    %s460 = scalar_lea.vmem [#allocation3], 1
    %v461 = vld [vmem:[%s460] sm:$0x1]
    %s462 = scalar_lea.vmem %s2, 1
    %v463 = vld [vmem:[%s462] sm:$0x1]
    %p464 = scmp.eq.s32.totalorder %s456, 0
    // Predicated region
    $region30: #{tpu_custom_call.1} parent=1 // pred_check
      %p465 = pneg %p464
    $region31: #{tpu_custom_call.1} parent=1 // pred_check_branch
      %467 = sbr.rel (%p465) target = $region33
    $region32: #{tpu_custom_call.1} parent=1 // pred_region
      _
    $region33: #{tpu_custom_call.1} parent=1 // pred_fallthru
      _
    %p468 = pneg %p464
    // Predicated region
    $region34: #{tpu_custom_call.1} parent=1 // pred_check
      _
    $region35: #{tpu_custom_call.1} parent=1 // pred_check_branch
      %470 = sbr.rel (%p464) target = $region37
    $region36: #{tpu_custom_call.1} parent=1 // pred_region
      %s471 = scalar_lea.vmem [#allocation2], %s459
      %v472 = vld [vmem:[%s471] sm:$0x1]
      %s473 = scalar_lea.vmem %s4, %s459
      %v474 = vld [vmem:[%s473] sm:$0x1]
    $region37: #{tpu_custom_call.1} parent=1 // pred_fallthru
      %v475 = vphi %v338, %v472
      %v476 = vphi %v452, %v474
    %478 = vrot.lane.b32.xlu0 %v461, 3
    %v479 = vpop.permute.xlu0 %478
    %v481 = vmul.f32 %v475, %v479
    %482 = vrot.lane.b32.xlu0 %v461, 125
    %v483 = vpop.permute.xlu0 %482
    %v485 = vmul.f32 %v475, %v483
    %487 = vrot.lane.b32.xlu0 %v485, 3
    %v488 = vpop.permute.xlu0 %487
    %v490 = vadd.f32 %v481, %v488
    %491 = vrot.lane.b32.xlu0 %v461, 127
    %v492 = vpop.permute.xlu0 %491
    %v494 = vmul.f32 %v475, %v492
    %496 = vrot.lane.b32.xlu0 %v494, 2
    %v497 = vpop.permute.xlu0 %496
    %v499 = vadd.f32 %v490, %v497
    %500 = vrot.lane.b32.xlu0 %v461, 1
    %v501 = vpop.permute.xlu0 %500
    %v503 = vmul.f32 %v475, %v501
    %505 = vrot.lane.b32.xlu0 %v503, 1
    %v506 = vpop.permute.xlu0 %505
    %v508 = vsub.f32 %v499, %v506
    %509 = vrot.lane.b32.xlu0 %v461, 2
    %v510 = vpop.permute.xlu0 %509
    %v512 = vmul.f32 %v475, %v510
    %513 = vrot.lane.b32.xlu0 %v461, 126
    %v514 = vpop.permute.xlu0 %513
    %v516 = vmul.f32 %v475, %v514
    %518 = vrot.lane.b32.xlu0 %v516, 3
    %v519 = vpop.permute.xlu0 %518
    %v521 = vsub.f32 %v512, %v519
    %522 = vrot.lane.b32.xlu0 %v516, 2
    %v523 = vpop.permute.xlu0 %522
    %v525 = vadd.f32 %v521, %v523
    %527 = vrot.lane.b32.xlu0 %v512, 1
    %v528 = vpop.permute.xlu0 %527
    %v530 = vadd.f32 %v525, %v528
    %531 = vrot.lane.b32.xlu0 %v494, 3
    %v532 = vpop.permute.xlu0 %531
    %v534 = vadd.f32 %v503, %v532
    %535 = vrot.lane.b32.xlu0 %v503, 2
    %v536 = vpop.permute.xlu0 %535
    %v538 = vsub.f32 %v534, %v536
    %539 = vrot.lane.b32.xlu0 %v494, 1
    %v540 = vpop.permute.xlu0 %539
    %v542 = vadd.f32 %v538, %v540
    %v543 = vmul.f32 %v475, %v461
    %545 = vrot.lane.b32.xlu0 %v543, 3
    %v546 = vpop.permute.xlu0 %545
    %v548 = vsub.f32 %v543, %v546
    %549 = vrot.lane.b32.xlu0 %v543, 2
    %v550 = vpop.permute.xlu0 %549
    %v552 = vsub.f32 %v548, %v550
    %553 = vrot.lane.b32.xlu0 %v543, 1
    %v554 = vpop.permute.xlu0 %553
    %v556 = vsub.f32 %v552, %v554
    %v557 = vmul.f32 %v508, %v508
    %v558 = vmul.f32 %v530, %v530
    %v559 = vadd.f32 %v557, %v558
    %v560 = vmul.f32 %v542, %v542
    %v561 = vadd.f32 %v559, %v560
    %v562 = vmul.f32 %v556, %v556
    %v563 = vadd.f32 %v561, %v562
    %v564 = vrsqrt.pop %v563
    %v565 = vmul.f32 %v563, %v564
    %vm566 = vcmp.eq.f32.partialorder %v563, inf
    %v567 = vsel %vm566, %v563, %v565
    %vm568 = vcmp.eq.f32.partialorder %v563, 0.0
    %v569 = vand.u32 %v563, 2147483648
    %v570 = vsel %vm568, %v569, %v567
    %v571 = vadd.f32 %v570, 1e-05
    %v572 = vrcp.pop %v571
    %v573 = vmul.f32 1.0, %v572
    %575 = vset.pattern.permute.xlu0 3
    %576 = vperm.xlu0 %575, %v508
    %v577 = vpop.permute.xlu0 %576
    %v579 = vlaneseq
    %v580 = vshrl.u32 %v579, 7
    %v581 = vsub.s32 0, %v580
    %v582 = vrot.slane %v577, %v581
    %v583 = vmul.f32 %v582, %v172
    %585 = vset.pattern.permute.xlu0 3
    %586 = vperm.xlu0 %585, %v530
    %v587 = vpop.permute.xlu0 %586
    %v589 = vlaneseq
    %v590 = vshrl.u32 %v589, 7
    %v591 = vsub.s32 0, %v590
    %v592 = vrot.slane %v587, %v591
    %v593 = vmul.f32 %v592, %v175
    %v594 = vadd.f32 %v583, %v593
    %596 = vset.pattern.permute.xlu0 3
    %597 = vperm.xlu0 %596, %v542
    %v598 = vpop.permute.xlu0 %597
    %v600 = vlaneseq
    %v601 = vshrl.u32 %v600, 7
    %v602 = vsub.s32 0, %v601
    %v603 = vrot.slane %v598, %v602
    %v604 = vmul.f32 %v603, %v178
    %v605 = vadd.f32 %v594, %v604
    %607 = vset.pattern.permute.xlu0 3
    %608 = vperm.xlu0 %607, %v556
    %v609 = vpop.permute.xlu0 %608
    %v611 = vlaneseq
    %v612 = vshrl.u32 %v611, 7
    %v613 = vsub.s32 0, %v612
    %v614 = vrot.slane %v609, %v613
    %v615 = vmul.f32 %v614, %v181
    %v616 = vadd.f32 %v605, %v615
    %618 = vset.pattern.permute.xlu0 3
    %619 = vperm.xlu0 %618, %v573
    %v620 = vpop.permute.xlu0 %619
    %v622 = vlaneseq
    %v623 = vshrl.u32 %v622, 7
    %v624 = vsub.s32 0, %v623
    %v625 = vrot.slane %v620, %v624
    %v626 = vmul.f32 %v616, %v625
    %s627 = scalar_select %p457, 1, 0
    %v628 = vstv %s627
    %vm629 = vcmp.eq.s32.totalorder %v628, 1
    %v630 = vsel %vm629, %v461, %v626
    %v631 = vmul.f32 %v475, %v475
    %633 = vrot.lane.b32.xlu0 %v475, 127
    %v634 = vpop.permute.xlu0 %633
    %v636 = vmul.f32 %v475, %v634
    %637 = vrot.lane.b32.xlu0 %v475, 126
    %v638 = vpop.permute.xlu0 %637
    %v640 = vmul.f32 %v475, %v638
    %641 = vrot.lane.b32.xlu0 %v475, 125
    %v642 = vpop.permute.xlu0 %641
    %v644 = vmul.f32 %v475, %v642
    %646 = vrot.lane.b32.xlu0 %v631, 127
    %v647 = vpop.permute.xlu0 %646
    %v649 = vsub.f32 %v631, %v647
    %650 = vrot.lane.b32.xlu0 %v631, 126
    %v651 = vpop.permute.xlu0 %650
    %v653 = vsub.f32 %v649, %v651
    %654 = vrot.lane.b32.xlu0 %v631, 125
    %v655 = vpop.permute.xlu0 %654
    %v657 = vadd.f32 %v653, %v655
    %v658 = vmul.f32 %v657, %v463
    %660 = vrot.lane.b32.xlu0 %v636, 126
    %v661 = vpop.permute.xlu0 %660
    %v663 = vsub.f32 %v636, %v661
    %v664 = vmul.f32 %v663, 2.0
    %666 = vrot.lane.b32.xlu0 %v463, 127
    %v667 = vpop.permute.xlu0 %666
    %v669 = vmul.f32 %v664, %v667
    %v670 = vadd.f32 %v658, %v669
    %672 = vrot.lane.b32.xlu0 %v640, 127
    %v673 = vpop.permute.xlu0 %672
    %v675 = vadd.f32 %v640, %v673
    %v676 = vmul.f32 %v675, 2.0
    %677 = vrot.lane.b32.xlu0 %v463, 126
    %v678 = vpop.permute.xlu0 %677
    %v680 = vmul.f32 %v676, %v678
    %v681 = vadd.f32 %v670, %v680
    %v682 = vadd.f32 %v636, %v661
    %v683 = vmul.f32 %v682, 2.0
    %v684 = vmul.f32 %v683, %v463
    %v685 = vsub.f32 0.0, %v631
    %v686 = vadd.f32 %v685, %v647
    %v687 = vsub.f32 %v686, %v651
    %v688 = vadd.f32 %v687, %v655
    %v689 = vmul.f32 %v688, %v667
    %v690 = vadd.f32 %v684, %v689
    %692 = vrot.lane.b32.xlu0 %v644, 1
    %v693 = vpop.permute.xlu0 %692
    %v695 = vsub.f32 %v636, %v693
    %v696 = vmul.f32 %v695, 2.0
    %v697 = vmul.f32 %v696, %v667
    %699 = vrot.lane.b32.xlu0 %v697, 127
    %v700 = vpop.permute.xlu0 %699
    %v702 = vadd.f32 %v690, %v700
    %v703 = vsub.f32 %v640, %v673
    %v704 = vmul.f32 %v703, 2.0
    %v705 = vmul.f32 %v704, %v463
    %v706 = vadd.f32 %v636, %v693
    %v707 = vmul.f32 %v706, 2.0
    %v708 = vmul.f32 %v707, %v463
    %710 = vrot.lane.b32.xlu0 %v708, 127
    %v711 = vpop.permute.xlu0 %710
    %v713 = vadd.f32 %v705, %v711
    %v714 = vsub.f32 %v685, %v647
    %v715 = vadd.f32 %v714, %v651
    %v716 = vadd.f32 %v715, %v655
    %v717 = vmul.f32 %v716, %v678
    %v718 = vadd.f32 %v713, %v717
    %720 = vset.pattern.permute.xlu0 0
    %721 = vperm.xlu0 %720, %v681
    %v722 = vpop.permute.xlu0 %721
    %v724 = vlaneseq
    %v725 = vshrl.u32 %v724, 7
    %v726 = vsub.s32 0, %v725
    %v727 = vrot.slane %v722, %v726
    %v728 = vmul.f32 %v727, %v172
    %730 = vset.pattern.permute.xlu0 0
    %731 = vperm.xlu0 %730, %v702
    %v732 = vpop.permute.xlu0 %731
    %v734 = vlaneseq
    %v735 = vshrl.u32 %v734, 7
    %v736 = vsub.s32 0, %v735
    %v737 = vrot.slane %v732, %v736
    %v738 = vmul.f32 %v737, %v175
    %v739 = vadd.f32 %v728, %v738
    %741 = vset.pattern.permute.xlu0 0
    %742 = vperm.xlu0 %741, %v718
    %v743 = vpop.permute.xlu0 %742
    %v745 = vlaneseq
    %v746 = vshrl.u32 %v745, 7
    %v747 = vsub.s32 0, %v746
    %v748 = vrot.slane %v743, %v747
    %v749 = vmul.f32 %v748, %v178
    %v750 = vadd.f32 %v739, %v749
    %v751 = vadd.f32 %v750, %v476
    %v752 = vsel %vm629, %v167, %v751
    %s753 = scalar_lea.vmem [#allocation2], 1
    %754 = vst.msk [vmem:[%s753] sm:$0x1] %vm46, %v630
    %s755 = scalar_lea.vmem %s4, 1
    %756 = vst.msk [vmem:[%s755] sm:$0x1] %vm454, %v752
    %s757 = sld [smem:[#allocation4 + $0x2]]
    %p758 = scmp.lt.s32.totalorder %s757, 0
    %p759 = scmp.gt.s32.totalorder %s757, 0
    %s760 = scalar_select %p759, %s757, 0
    %s761 = scalar_lea.vmem [#allocation3], 2
    %v762 = vld [vmem:[%s761] sm:$0x1]
    %s763 = scalar_lea.vmem %s2, 2
    %v764 = vld [vmem:[%s763] sm:$0x1]
    %p765 = scmp.eq.s32.totalorder %s757, 1
    // Predicated region
    $region38: #{tpu_custom_call.1} parent=1 // pred_check
      %p766 = pneg %p765
    $region39: #{tpu_custom_call.1} parent=1 // pred_check_branch
      %768 = sbr.rel (%p766) target = $region41
    $region40: #{tpu_custom_call.1} parent=1 // pred_region
      _
    $region41: #{tpu_custom_call.1} parent=1 // pred_fallthru
      _
    %p769 = pneg %p765
    // Predicated region
    $region42: #{tpu_custom_call.1} parent=1 // pred_check
      _
    $region43: #{tpu_custom_call.1} parent=1 // pred_check_branch
      %771 = sbr.rel (%p765) target = $region45
    $region44: #{tpu_custom_call.1} parent=1 // pred_region
      %s772 = scalar_lea.vmem [#allocation2], %s760
      %v773 = vld [vmem:[%s772] sm:$0x1]
      %s774 = scalar_lea.vmem %s4, %s760
      %v775 = vld [vmem:[%s774] sm:$0x1]
    $region45: #{tpu_custom_call.1} parent=1 // pred_fallthru
      %v776 = vphi %v630, %v773
      %v777 = vphi %v752, %v775
    %779 = vrot.lane.b32.xlu0 %v762, 3
    %v780 = vpop.permute.xlu0 %779
    %v782 = vmul.f32 %v776, %v780
    %783 = vrot.lane.b32.xlu0 %v762, 125
    %v784 = vpop.permute.xlu0 %783
    %v786 = vmul.f32 %v776, %v784
    %788 = vrot.lane.b32.xlu0 %v786, 3
    %v789 = vpop.permute.xlu0 %788
    %v791 = vadd.f32 %v782, %v789
    %792 = vrot.lane.b32.xlu0 %v762, 127
    %v793 = vpop.permute.xlu0 %792
    %v795 = vmul.f32 %v776, %v793
    %797 = vrot.lane.b32.xlu0 %v795, 2
    %v798 = vpop.permute.xlu0 %797
    %v800 = vadd.f32 %v791, %v798
    %801 = vrot.lane.b32.xlu0 %v762, 1
    %v802 = vpop.permute.xlu0 %801
    %v804 = vmul.f32 %v776, %v802
    %806 = vrot.lane.b32.xlu0 %v804, 1
    %v807 = vpop.permute.xlu0 %806
    %v809 = vsub.f32 %v800, %v807
    %810 = vrot.lane.b32.xlu0 %v762, 2
    %v811 = vpop.permute.xlu0 %810
    %v813 = vmul.f32 %v776, %v811
    %814 = vrot.lane.b32.xlu0 %v762, 126
    %v815 = vpop.permute.xlu0 %814
    %v817 = vmul.f32 %v776, %v815
    %819 = vrot.lane.b32.xlu0 %v817, 3
    %v820 = vpop.permute.xlu0 %819
    %v822 = vsub.f32 %v813, %v820
    %823 = vrot.lane.b32.xlu0 %v817, 2
    %v824 = vpop.permute.xlu0 %823
    %v826 = vadd.f32 %v822, %v824
    %828 = vrot.lane.b32.xlu0 %v813, 1
    %v829 = vpop.permute.xlu0 %828
    %v831 = vadd.f32 %v826, %v829
    %832 = vrot.lane.b32.xlu0 %v795, 3
    %v833 = vpop.permute.xlu0 %832
    %v835 = vadd.f32 %v804, %v833
    %836 = vrot.lane.b32.xlu0 %v804, 2
    %v837 = vpop.permute.xlu0 %836
    %v839 = vsub.f32 %v835, %v837
    %840 = vrot.lane.b32.xlu0 %v795, 1
    %v841 = vpop.permute.xlu0 %840
    %v843 = vadd.f32 %v839, %v841
    %v844 = vmul.f32 %v776, %v762
    %846 = vrot.lane.b32.xlu0 %v844, 3
    %v847 = vpop.permute.xlu0 %846
    %v849 = vsub.f32 %v844, %v847
    %850 = vrot.lane.b32.xlu0 %v844, 2
    %v851 = vpop.permute.xlu0 %850
    %v853 = vsub.f32 %v849, %v851
    %854 = vrot.lane.b32.xlu0 %v844, 1
    %v855 = vpop.permute.xlu0 %854
    %v857 = vsub.f32 %v853, %v855
    %v858 = vmul.f32 %v809, %v809
    %v859 = vmul.f32 %v831, %v831
    %v860 = vadd.f32 %v858, %v859
    %v861 = vmul.f32 %v843, %v843
    %v862 = vadd.f32 %v860, %v861
    %v863 = vmul.f32 %v857, %v857
    %v864 = vadd.f32 %v862, %v863
    %v865 = vrsqrt.pop %v864
    %v866 = vmul.f32 %v864, %v865
    %vm867 = vcmp.eq.f32.partialorder %v864, inf
    %v868 = vsel %vm867, %v864, %v866
    %vm869 = vcmp.eq.f32.partialorder %v864, 0.0
    %v870 = vand.u32 %v864, 2147483648
    %v871 = vsel %vm869, %v870, %v868
    %v872 = vadd.f32 %v871, 1e-05
    %v873 = vrcp.pop %v872
    %v874 = vmul.f32 1.0, %v873
    %876 = vset.pattern.permute.xlu0 3
    %877 = vperm.xlu0 %876, %v809
    %v878 = vpop.permute.xlu0 %877
    %v880 = vlaneseq
    %v881 = vshrl.u32 %v880, 7
    %v882 = vsub.s32 0, %v881
    %v883 = vrot.slane %v878, %v882
    %v884 = vmul.f32 %v883, %v172
    %886 = vset.pattern.permute.xlu0 3
    %887 = vperm.xlu0 %886, %v831
    %v888 = vpop.permute.xlu0 %887
    %v890 = vlaneseq
    %v891 = vshrl.u32 %v890, 7
    %v892 = vsub.s32 0, %v891
    %v893 = vrot.slane %v888, %v892
    %v894 = vmul.f32 %v893, %v175
    %v895 = vadd.f32 %v884, %v894
    %897 = vset.pattern.permute.xlu0 3
    %898 = vperm.xlu0 %897, %v843
    %v899 = vpop.permute.xlu0 %898
    %v901 = vlaneseq
    %v902 = vshrl.u32 %v901, 7
    %v903 = vsub.s32 0, %v902
    %v904 = vrot.slane %v899, %v903
    %v905 = vmul.f32 %v904, %v178
    %v906 = vadd.f32 %v895, %v905
    %908 = vset.pattern.permute.xlu0 3
    %909 = vperm.xlu0 %908, %v857
    %v910 = vpop.permute.xlu0 %909
    %v912 = vlaneseq
    %v913 = vshrl.u32 %v912, 7
    %v914 = vsub.s32 0, %v913
    %v915 = vrot.slane %v910, %v914
    %v916 = vmul.f32 %v915, %v181
    %v917 = vadd.f32 %v906, %v916
    %919 = vset.pattern.permute.xlu0 3
    %920 = vperm.xlu0 %919, %v874
    %v921 = vpop.permute.xlu0 %920
    %v923 = vlaneseq
    %v924 = vshrl.u32 %v923, 7
    %v925 = vsub.s32 0, %v924
    %v926 = vrot.slane %v921, %v925
    %v927 = vmul.f32 %v917, %v926
    %s928 = scalar_select %p758, 1, 0
    %v929 = vstv %s928
    %vm930 = vcmp.eq.s32.totalorder %v929, 1
    %v931 = vsel %vm930, %v762, %v927
    %v932 = vmul.f32 %v776, %v776
    %934 = vrot.lane.b32.xlu0 %v776, 127
    %v935 = vpop.permute.xlu0 %934
    %v937 = vmul.f32 %v776, %v935
    %938 = vrot.lane.b32.xlu0 %v776, 126
    %v939 = vpop.permute.xlu0 %938
    %v941 = vmul.f32 %v776, %v939
    %942 = vrot.lane.b32.xlu0 %v776, 125
    %v943 = vpop.permute.xlu0 %942
    %v945 = vmul.f32 %v776, %v943
    %947 = vrot.lane.b32.xlu0 %v932, 127
    %v948 = vpop.permute.xlu0 %947
    %v950 = vsub.f32 %v932, %v948
    %951 = vrot.lane.b32.xlu0 %v932, 126
    %v952 = vpop.permute.xlu0 %951
    %v954 = vsub.f32 %v950, %v952
    %955 = vrot.lane.b32.xlu0 %v932, 125
    %v956 = vpop.permute.xlu0 %955
    %v958 = vadd.f32 %v954, %v956
    %v959 = vmul.f32 %v958, %v764
    %961 = vrot.lane.b32.xlu0 %v937, 126
    %v962 = vpop.permute.xlu0 %961
    %v964 = vsub.f32 %v937, %v962
    %v965 = vmul.f32 %v964, 2.0
    %967 = vrot.lane.b32.xlu0 %v764, 127
    %v968 = vpop.permute.xlu0 %967
    %v970 = vmul.f32 %v965, %v968
    %v971 = vadd.f32 %v959, %v970
    %973 = vrot.lane.b32.xlu0 %v941, 127
    %v974 = vpop.permute.xlu0 %973
    %v976 = vadd.f32 %v941, %v974
    %v977 = vmul.f32 %v976, 2.0
    %978 = vrot.lane.b32.xlu0 %v764, 126
    %v979 = vpop.permute.xlu0 %978
    %v981 = vmul.f32 %v977, %v979
    %v982 = vadd.f32 %v971, %v981
    %v983 = vadd.f32 %v937, %v962
    %v984 = vmul.f32 %v983, 2.0
    %v985 = vmul.f32 %v984, %v764
    %v986 = vsub.f32 0.0, %v932
    %v987 = vadd.f32 %v986, %v948
    %v988 = vsub.f32 %v987, %v952
    %v989 = vadd.f32 %v988, %v956
    %v990 = vmul.f32 %v989, %v968
    %v991 = vadd.f32 %v985, %v990
    %993 = vrot.lane.b32.xlu0 %v945, 1
    %v994 = vpop.permute.xlu0 %993
    %v996 = vsub.f32 %v937, %v994
    %v997 = vmul.f32 %v996, 2.0
    %v998 = vmul.f32 %v997, %v968
    %1000 = vrot.lane.b32.xlu0 %v998, 127
    %v1001 = vpop.permute.xlu0 %1000
    %v1003 = vadd.f32 %v991, %v1001
    %v1004 = vsub.f32 %v941, %v974
    %v1005 = vmul.f32 %v1004, 2.0
    %v1006 = vmul.f32 %v1005, %v764
    %v1007 = vadd.f32 %v937, %v994
    %v1008 = vmul.f32 %v1007, 2.0
    %v1009 = vmul.f32 %v1008, %v764
    %1011 = vrot.lane.b32.xlu0 %v1009, 127
    %v1012 = vpop.permute.xlu0 %1011
    %v1014 = vadd.f32 %v1006, %v1012
    %v1015 = vsub.f32 %v986, %v948
    %v1016 = vadd.f32 %v1015, %v952
    %v1017 = vadd.f32 %v1016, %v956
    %v1018 = vmul.f32 %v1017, %v979
    %v1019 = vadd.f32 %v1014, %v1018
    %1021 = vset.pattern.permute.xlu0 0
    %1022 = vperm.xlu0 %1021, %v982
    %v1023 = vpop.permute.xlu0 %1022
    %v1025 = vlaneseq
    %v1026 = vshrl.u32 %v1025, 7
    %v1027 = vsub.s32 0, %v1026
    %v1028 = vrot.slane %v1023, %v1027
    %v1029 = vmul.f32 %v1028, %v172
    %1031 = vset.pattern.permute.xlu0 0
    %1032 = vperm.xlu0 %1031, %v1003
    %v1033 = vpop.permute.xlu0 %1032
    %v1035 = vlaneseq
    %v1036 = vshrl.u32 %v1035, 7
    %v1037 = vsub.s32 0, %v1036
    %v1038 = vrot.slane %v1033, %v1037
    %v1039 = vmul.f32 %v1038, %v175
    %v1040 = vadd.f32 %v1029, %v1039
    %1042 = vset.pattern.permute.xlu0 0
    %1043 = vperm.xlu0 %1042, %v1019
    %v1044 = vpop.permute.xlu0 %1043
    %v1046 = vlaneseq
    %v1047 = vshrl.u32 %v1046, 7
    %v1048 = vsub.s32 0, %v1047
    %v1049 = vrot.slane %v1044, %v1048
    %v1050 = vmul.f32 %v1049, %v178
    %v1051 = vadd.f32 %v1040, %v1050
    %v1052 = vadd.f32 %v1051, %v777
    %v1053 = vsel %vm930, %v167, %v1052
    %s1054 = scalar_lea.vmem [#allocation2], 2
    %1055 = vst.msk [vmem:[%s1054] sm:$0x1] %vm46, %v931
    %s1056 = scalar_lea.vmem %s4, 2
    %1057 = vst.msk [vmem:[%s1056] sm:$0x1] %vm454, %v1053
    %s1058 = sld [smem:[#allocation4 + $0x3]]
    %p1059 = scmp.lt.s32.totalorder %s1058, 0
    %p1060 = scmp.gt.s32.totalorder %s1058, 0
    %s1061 = scalar_select %p1060, %s1058, 0
    %s1062 = scalar_lea.vmem [#allocation3], 3
    %v1063 = vld [vmem:[%s1062] sm:$0x1]
    %s1064 = scalar_lea.vmem %s2, 3
    %v1065 = vld [vmem:[%s1064] sm:$0x1]
    %p1066 = scmp.eq.s32.totalorder %s1058, 2
    // Predicated region
    $region46: #{tpu_custom_call.1} parent=1 // pred_check
      %p1067 = pneg %p1066
    $region47: #{tpu_custom_call.1} parent=1 // pred_check_branch
      %1069 = sbr.rel (%p1067) target = $region49
    $region48: #{tpu_custom_call.1} parent=1 // pred_region
      _
    $region49: #{tpu_custom_call.1} parent=1 // pred_fallthru
      _
    %p1070 = pneg %p1066
    // Predicated region
    $region50: #{tpu_custom_call.1} parent=1 // pred_check
      _
    $region51: #{tpu_custom_call.1} parent=1 // pred_check_branch
      %1072 = sbr.rel (%p1066) target = $region53
    $region52: #{tpu_custom_call.1} parent=1 // pred_region
      %s1073 = scalar_lea.vmem [#allocation2], %s1061
      %v1074 = vld [vmem:[%s1073] sm:$0x1]
      %s1075 = scalar_lea.vmem %s4, %s1061
      %v1076 = vld [vmem:[%s1075] sm:$0x1]
    $region53: #{tpu_custom_call.1} parent=1 // pred_fallthru
      %v1077 = vphi %v931, %v1074
      %v1078 = vphi %v1053, %v1076
    %1080 = vrot.lane.b32.xlu0 %v1063, 3
    %v1081 = vpop.permute.xlu0 %1080
    %v1083 = vmul.f32 %v1077, %v1081
    %1084 = vrot.lane.b32.xlu0 %v1063, 125
    %v1085 = vpop.permute.xlu0 %1084
    %v1087 = vmul.f32 %v1077, %v1085
    %1089 = vrot.lane.b32.xlu0 %v1087, 3
    %v1090 = vpop.permute.xlu0 %1089
    %v1092 = vadd.f32 %v1083, %v1090
    %1093 = vrot.lane.b32.xlu0 %v1063, 127
    %v1094 = vpop.permute.xlu0 %1093
    %v1096 = vmul.f32 %v1077, %v1094
    %1098 = vrot.lane.b32.xlu0 %v1096, 2
    %v1099 = vpop.permute.xlu0 %1098
    %v1101 = vadd.f32 %v1092, %v1099
    %1102 = vrot.lane.b32.xlu0 %v1063, 1
    %v1103 = vpop.permute.xlu0 %1102
    %v1105 = vmul.f32 %v1077, %v1103
    %1107 = vrot.lane.b32.xlu0 %v1105, 1
    %v1108 = vpop.permute.xlu0 %1107
    %v1110 = vsub.f32 %v1101, %v1108
    %1111 = vrot.lane.b32.xlu0 %v1063, 2
    %v1112 = vpop.permute.xlu0 %1111
    %v1114 = vmul.f32 %v1077, %v1112
    %1115 = vrot.lane.b32.xlu0 %v1063, 126
    %v1116 = vpop.permute.xlu0 %1115
    %v1118 = vmul.f32 %v1077, %v1116
    %1120 = vrot.lane.b32.xlu0 %v1118, 3
    %v1121 = vpop.permute.xlu0 %1120
    %v1123 = vsub.f32 %v1114, %v1121
    %1124 = vrot.lane.b32.xlu0 %v1118, 2
    %v1125 = vpop.permute.xlu0 %1124
    %v1127 = vadd.f32 %v1123, %v1125
    %1129 = vrot.lane.b32.xlu0 %v1114, 1
    %v1130 = vpop.permute.xlu0 %1129
    %v1132 = vadd.f32 %v1127, %v1130
    %1133 = vrot.lane.b32.xlu0 %v1096, 3
    %v1134 = vpop.permute.xlu0 %1133
    %v1136 = vadd.f32 %v1105, %v1134
    %1137 = vrot.lane.b32.xlu0 %v1105, 2
    %v1138 = vpop.permute.xlu0 %1137
    %v1140 = vsub.f32 %v1136, %v1138
    %1141 = vrot.lane.b32.xlu0 %v1096, 1
    %v1142 = vpop.permute.xlu0 %1141
    %v1144 = vadd.f32 %v1140, %v1142
    %v1145 = vmul.f32 %v1077, %v1063
    %1147 = vrot.lane.b32.xlu0 %v1145, 3
    %v1148 = vpop.permute.xlu0 %1147
    %v1150 = vsub.f32 %v1145, %v1148
    %1151 = vrot.lane.b32.xlu0 %v1145, 2
    %v1152 = vpop.permute.xlu0 %1151
    %v1154 = vsub.f32 %v1150, %v1152
    %1155 = vrot.lane.b32.xlu0 %v1145, 1
    %v1156 = vpop.permute.xlu0 %1155
    %v1158 = vsub.f32 %v1154, %v1156
    %v1159 = vmul.f32 %v1110, %v1110
    %v1160 = vmul.f32 %v1132, %v1132
    %v1161 = vadd.f32 %v1159, %v1160
    %v1162 = vmul.f32 %v1144, %v1144
    %v1163 = vadd.f32 %v1161, %v1162
    %v1164 = vmul.f32 %v1158, %v1158
    %v1165 = vadd.f32 %v1163, %v1164
    %v1166 = vrsqrt.pop %v1165
    %v1167 = vmul.f32 %v1165, %v1166
    %vm1168 = vcmp.eq.f32.partialorder %v1165, inf
    %v1169 = vsel %vm1168, %v1165, %v1167
    %vm1170 = vcmp.eq.f32.partialorder %v1165, 0.0
    %v1171 = vand.u32 %v1165, 2147483648
    %v1172 = vsel %vm1170, %v1171, %v1169
    %v1173 = vadd.f32 %v1172, 1e-05
    %v1174 = vrcp.pop %v1173
    %v1175 = vmul.f32 1.0, %v1174
    %1177 = vset.pattern.permute.xlu0 3
    %1178 = vperm.xlu0 %1177, %v1110
    %v1179 = vpop.permute.xlu0 %1178
    %v1181 = vlaneseq
    %v1182 = vshrl.u32 %v1181, 7
    %v1183 = vsub.s32 0, %v1182
    %v1184 = vrot.slane %v1179, %v1183
    %v1185 = vmul.f32 %v1184, %v172
    %1187 = vset.pattern.permute.xlu0 3
    %1188 = vperm.xlu0 %1187, %v1132
    %v1189 = vpop.permute.xlu0 %1188
    %v1191 = vlaneseq
    %v1192 = vshrl.u32 %v1191, 7
    %v1193 = vsub.s32 0, %v1192
    %v1194 = vrot.slane %v1189, %v1193
    %v1195 = vmul.f32 %v1194, %v175
    %v1196 = vadd.f32 %v1185, %v1195
    %1198 = vset.pattern.permute.xlu0 3
    %1199 = vperm.xlu0 %1198, %v1144
    %v1200 = vpop.permute.xlu0 %1199
    %v1202 = vlaneseq
    %v1203 = vshrl.u32 %v1202, 7
    %v1204 = vsub.s32 0, %v1203
    %v1205 = vrot.slane %v1200, %v1204
    %v1206 = vmul.f32 %v1205, %v178
    %v1207 = vadd.f32 %v1196, %v1206
    %1209 = vset.pattern.permute.xlu0 3
    %1210 = vperm.xlu0 %1209, %v1158
    %v1211 = vpop.permute.xlu0 %1210
    %v1213 = vlaneseq
    %v1214 = vshrl.u32 %v1213, 7
    %v1215 = vsub.s32 0, %v1214
    %v1216 = vrot.slane %v1211, %v1215
    %v1217 = vmul.f32 %v1216, %v181
    %v1218 = vadd.f32 %v1207, %v1217
    %1220 = vset.pattern.permute.xlu0 3
    %1221 = vperm.xlu0 %1220, %v1175
    %v1222 = vpop.permute.xlu0 %1221
    %v1224 = vlaneseq
    %v1225 = vshrl.u32 %v1224, 7
    %v1226 = vsub.s32 0, %v1225
    %v1227 = vrot.slane %v1222, %v1226
    %v1228 = vmul.f32 %v1218, %v1227
    %s1229 = scalar_select %p1059, 1, 0
    %v1230 = vstv %s1229
    %vm1231 = vcmp.eq.s32.totalorder %v1230, 1
    %v1232 = vsel %vm1231, %v1063, %v1228
    %v1233 = vmul.f32 %v1077, %v1077
    %1235 = vrot.lane.b32.xlu0 %v1077, 127
    %v1236 = vpop.permute.xlu0 %1235
    %v1238 = vmul.f32 %v1077, %v1236
    %1239 = vrot.lane.b32.xlu0 %v1077, 126
    %v1240 = vpop.permute.xlu0 %1239
    %v1242 = vmul.f32 %v1077, %v1240
    %1243 = vrot.lane.b32.xlu0 %v1077, 125
    %v1244 = vpop.permute.xlu0 %1243
    %v1246 = vmul.f32 %v1077, %v1244
    %1248 = vrot.lane.b32.xlu0 %v1233, 127
    %v1249 = vpop.permute.xlu0 %1248
    %v1251 = vsub.f32 %v1233, %v1249
    %1252 = vrot.lane.b32.xlu0 %v1233, 126
    %v1253 = vpop.permute.xlu0 %1252
    %v1255 = vsub.f32 %v1251, %v1253
    %1256 = vrot.lane.b32.xlu0 %v1233, 125
    %v1257 = vpop.permute.xlu0 %1256
    %v1259 = vadd.f32 %v1255, %v1257
    %v1260 = vmul.f32 %v1259, %v1065
    %1262 = vrot.lane.b32.xlu0 %v1238, 126
    %v1263 = vpop.permute.xlu0 %1262
    %v1265 = vsub.f32 %v1238, %v1263
    %v1266 = vmul.f32 %v1265, 2.0
    %1268 = vrot.lane.b32.xlu0 %v1065, 127
    %v1269 = vpop.permute.xlu0 %1268
    %v1271 = vmul.f32 %v1266, %v1269
    %v1272 = vadd.f32 %v1260, %v1271
    %1274 = vrot.lane.b32.xlu0 %v1242, 127
    %v1275 = vpop.permute.xlu0 %1274
    %v1277 = vadd.f32 %v1242, %v1275
    %v1278 = vmul.f32 %v1277, 2.0
    %1279 = vrot.lane.b32.xlu0 %v1065, 126
    %v1280 = vpop.permute.xlu0 %1279
    %v1282 = vmul.f32 %v1278, %v1280
    %v1283 = vadd.f32 %v1272, %v1282
    %v1284 = vadd.f32 %v1238, %v1263
    %v1285 = vmul.f32 %v1284, 2.0
    %v1286 = vmul.f32 %v1285, %v1065
    %v1287 = vsub.f32 0.0, %v1233
    %v1288 = vadd.f32 %v1287, %v1249
    %v1289 = vsub.f32 %v1288, %v1253
    %v1290 = vadd.f32 %v1289, %v1257
    %v1291 = vmul.f32 %v1290, %v1269
    %v1292 = vadd.f32 %v1286, %v1291
    %1294 = vrot.lane.b32.xlu0 %v1246, 1
    %v1295 = vpop.permute.xlu0 %1294
    %v1297 = vsub.f32 %v1238, %v1295
    %v1298 = vmul.f32 %v1297, 2.0
    %v1299 = vmul.f32 %v1298, %v1269
    %1301 = vrot.lane.b32.xlu0 %v1299, 127
    %v1302 = vpop.permute.xlu0 %1301
    %v1304 = vadd.f32 %v1292, %v1302
    %v1305 = vsub.f32 %v1242, %v1275
    %v1306 = vmul.f32 %v1305, 2.0
    %v1307 = vmul.f32 %v1306, %v1065
    %v1308 = vadd.f32 %v1238, %v1295
    %v1309 = vmul.f32 %v1308, 2.0
    %v1310 = vmul.f32 %v1309, %v1065
    %1312 = vrot.lane.b32.xlu0 %v1310, 127
    %v1313 = vpop.permute.xlu0 %1312
    %v1315 = vadd.f32 %v1307, %v1313
    %v1316 = vsub.f32 %v1287, %v1249
    %v1317 = vadd.f32 %v1316, %v1253
    %v1318 = vadd.f32 %v1317, %v1257
    %v1319 = vmul.f32 %v1318, %v1280
    %v1320 = vadd.f32 %v1315, %v1319
    %1322 = vset.pattern.permute.xlu0 0
    %1323 = vperm.xlu0 %1322, %v1283
    %v1324 = vpop.permute.xlu0 %1323
    %v1326 = vlaneseq
    %v1327 = vshrl.u32 %v1326, 7
    %v1328 = vsub.s32 0, %v1327
    %v1329 = vrot.slane %v1324, %v1328
    %v1330 = vmul.f32 %v1329, %v172
    %1332 = vset.pattern.permute.xlu0 0
    %1333 = vperm.xlu0 %1332, %v1304
    %v1334 = vpop.permute.xlu0 %1333
    %v1336 = vlaneseq
    %v1337 = vshrl.u32 %v1336, 7
    %v1338 = vsub.s32 0, %v1337
    %v1339 = vrot.slane %v1334, %v1338
    %v1340 = vmul.f32 %v1339, %v175
    %v1341 = vadd.f32 %v1330, %v1340
    %1343 = vset.pattern.permute.xlu0 0
    %1344 = vperm.xlu0 %1343, %v1320
    %v1345 = vpop.permute.xlu0 %1344
    %v1347 = vlaneseq
    %v1348 = vshrl.u32 %v1347, 7
    %v1349 = vsub.s32 0, %v1348
    %v1350 = vrot.slane %v1345, %v1349
    %v1351 = vmul.f32 %v1350, %v178
    %v1352 = vadd.f32 %v1341, %v1351
    %v1353 = vadd.f32 %v1352, %v1078
    %v1354 = vsel %vm1231, %v167, %v1353
    %s1355 = scalar_lea.vmem [#allocation2], 3
    %1356 = vst.msk [vmem:[%s1355] sm:$0x1] %vm46, %v1232
    %s1357 = scalar_lea.vmem %s4, 3
    %1358 = vst.msk [vmem:[%s1357] sm:$0x1] %vm454, %v1354
    %s1359 = sld [smem:[#allocation4 + $0x4]]
    %p1360 = scmp.lt.s32.totalorder %s1359, 0
    %p1361 = scmp.gt.s32.totalorder %s1359, 0
    %s1362 = scalar_select %p1361, %s1359, 0
    %s1363 = scalar_lea.vmem [#allocation3], 4
    %v1364 = vld [vmem:[%s1363] sm:$0x1]
    %s1365 = scalar_lea.vmem %s2, 4
    %v1366 = vld [vmem:[%s1365] sm:$0x1]
    %p1367 = scmp.eq.s32.totalorder %s1359, 3
    // Predicated region
    $region54: #{tpu_custom_call.1} parent=1 // pred_check
      %p1368 = pneg %p1367
    $region55: #{tpu_custom_call.1} parent=1 // pred_check_branch
      %1370 = sbr.rel (%p1368) target = $region57
    $region56: #{tpu_custom_call.1} parent=1 // pred_region
      _
    $region57: #{tpu_custom_call.1} parent=1 // pred_fallthru
      _
    %p1371 = pneg %p1367
    // Predicated region
    $region58: #{tpu_custom_call.1} parent=1 // pred_check
      _
    $region59: #{tpu_custom_call.1} parent=1 // pred_check_branch
      %1373 = sbr.rel (%p1367) target = $region61
    $region60: #{tpu_custom_call.1} parent=1 // pred_region
      %s1374 = scalar_lea.vmem [#allocation2], %s1362
      %v1375 = vld [vmem:[%s1374] sm:$0x1]
      %s1376 = scalar_lea.vmem %s4, %s1362
      %v1377 = vld [vmem:[%s1376] sm:$0x1]
    $region61: #{tpu_custom_call.1} parent=1 // pred_fallthru
      %v1378 = vphi %v1232, %v1375
      %v1379 = vphi %v1354, %v1377
    %1381 = vrot.lane.b32.xlu0 %v1364, 3
    %v1382 = vpop.permute.xlu0 %1381
    %v1384 = vmul.f32 %v1378, %v1382
    %1385 = vrot.lane.b32.xlu0 %v1364, 125
    %v1386 = vpop.permute.xlu0 %1385
    %v1388 = vmul.f32 %v1378, %v1386
    %1390 = vrot.lane.b32.xlu0 %v1388, 3
    %v1391 = vpop.permute.xlu0 %1390
    %v1393 = vadd.f32 %v1384, %v1391
    %1394 = vrot.lane.b32.xlu0 %v1364, 127
    %v1395 = vpop.permute.xlu0 %1394
    %v1397 = vmul.f32 %v1378, %v1395
    %1399 = vrot.lane.b32.xlu0 %v1397, 2
    %v1400 = vpop.permute.xlu0 %1399
    %v1402 = vadd.f32 %v1393, %v1400
    %1403 = vrot.lane.b32.xlu0 %v1364, 1
    %v1404 = vpop.permute.xlu0 %1403
    %v1406 = vmul.f32 %v1378, %v1404
    %1408 = vrot.lane.b32.xlu0 %v1406, 1
    %v1409 = vpop.permute.xlu0 %1408
    %v1411 = vsub.f32 %v1402, %v1409
    %1412 = vrot.lane.b32.xlu0 %v1364, 2
    %v1413 = vpop.permute.xlu0 %1412
    %v1415 = vmul.f32 %v1378, %v1413
    %1416 = vrot.lane.b32.xlu0 %v1364, 126
    %v1417 = vpop.permute.xlu0 %1416
    %v1419 = vmul.f32 %v1378, %v1417
    %1421 = vrot.lane.b32.xlu0 %v1419, 3
    %v1422 = vpop.permute.xlu0 %1421
    %v1424 = vsub.f32 %v1415, %v1422
    %1425 = vrot.lane.b32.xlu0 %v1419, 2
    %v1426 = vpop.permute.xlu0 %1425
    %v1428 = vadd.f32 %v1424, %v1426
    %1430 = vrot.lane.b32.xlu0 %v1415, 1
    %v1431 = vpop.permute.xlu0 %1430
    %v1433 = vadd.f32 %v1428, %v1431
    %1434 = vrot.lane.b32.xlu0 %v1397, 3
    %v1435 = vpop.permute.xlu0 %1434
    %v1437 = vadd.f32 %v1406, %v1435
    %1438 = vrot.lane.b32.xlu0 %v1406, 2
    %v1439 = vpop.permute.xlu0 %1438
    %v1441 = vsub.f32 %v1437, %v1439
    %1442 = vrot.lane.b32.xlu0 %v1397, 1
    %v1443 = vpop.permute.xlu0 %1442
    %v1445 = vadd.f32 %v1441, %v1443
    %v1446 = vmul.f32 %v1378, %v1364
    %1448 = vrot.lane.b32.xlu0 %v1446, 3
    %v1449 = vpop.permute.xlu0 %1448
    %v1451 = vsub.f32 %v1446, %v1449
    %1452 = vrot.lane.b32.xlu0 %v1446, 2
    %v1453 = vpop.permute.xlu0 %1452
    %v1455 = vsub.f32 %v1451, %v1453
    %1456 = vrot.lane.b32.xlu0 %v1446, 1
    %v1457 = vpop.permute.xlu0 %1456
    %v1459 = vsub.f32 %v1455, %v1457
    %v1460 = vmul.f32 %v1411, %v1411
    %v1461 = vmul.f32 %v1433, %v1433
    %v1462 = vadd.f32 %v1460, %v1461
    %v1463 = vmul.f32 %v1445, %v1445
    %v1464 = vadd.f32 %v1462, %v1463
    %v1465 = vmul.f32 %v1459, %v1459
    %v1466 = vadd.f32 %v1464, %v1465
    %v1467 = vrsqrt.pop %v1466
    %v1468 = vmul.f32 %v1466, %v1467
    %vm1469 = vcmp.eq.f32.partialorder %v1466, inf
    %v1470 = vsel %vm1469, %v1466, %v1468
    %vm1471 = vcmp.eq.f32.partialorder %v1466, 0.0
    %v1472 = vand.u32 %v1466, 2147483648
    %v1473 = vsel %vm1471, %v1472, %v1470
    %v1474 = vadd.f32 %v1473, 1e-05
    %v1475 = vrcp.pop %v1474
    %v1476 = vmul.f32 1.0, %v1475
    %1478 = vset.pattern.permute.xlu0 3
    %1479 = vperm.xlu0 %1478, %v1411
    %v1480 = vpop.permute.xlu0 %1479
    %v1482 = vlaneseq
    %v1483 = vshrl.u32 %v1482, 7
    %v1484 = vsub.s32 0, %v1483
    %v1485 = vrot.slane %v1480, %v1484
    %v1486 = vmul.f32 %v1485, %v172
    %1488 = vset.pattern.permute.xlu0 3
    %1489 = vperm.xlu0 %1488, %v1433
    %v1490 = vpop.permute.xlu0 %1489
    %v1492 = vlaneseq
    %v1493 = vshrl.u32 %v1492, 7
    %v1494 = vsub.s32 0, %v1493
    %v1495 = vrot.slane %v1490, %v1494
    %v1496 = vmul.f32 %v1495, %v175
    %v1497 = vadd.f32 %v1486, %v1496
    %1499 = vset.pattern.permute.xlu0 3
    %1500 = vperm.xlu0 %1499, %v1445
    %v1501 = vpop.permute.xlu0 %1500
    %v1503 = vlaneseq
    %v1504 = vshrl.u32 %v1503, 7
    %v1505 = vsub.s32 0, %v1504
    %v1506 = vrot.slane %v1501, %v1505
    %v1507 = vmul.f32 %v1506, %v178
    %v1508 = vadd.f32 %v1497, %v1507
    %1510 = vset.pattern.permute.xlu0 3
    %1511 = vperm.xlu0 %1510, %v1459
    %v1512 = vpop.permute.xlu0 %1511
    %v1514 = vlaneseq
    %v1515 = vshrl.u32 %v1514, 7
    %v1516 = vsub.s32 0, %v1515
    %v1517 = vrot.slane %v1512, %v1516
    %v1518 = vmul.f32 %v1517, %v181
    %v1519 = vadd.f32 %v1508, %v1518
    %1521 = vset.pattern.permute.xlu0 3
    %1522 = vperm.xlu0 %1521, %v1476
    %v1523 = vpop.permute.xlu0 %1522
    %v1525 = vlaneseq
    %v1526 = vshrl.u32 %v1525, 7
    %v1527 = vsub.s32 0, %v1526
    %v1528 = vrot.slane %v1523, %v1527
    %v1529 = vmul.f32 %v1519, %v1528
    %s1530 = scalar_select %p1360, 1, 0
    %v1531 = vstv %s1530
    %vm1532 = vcmp.eq.s32.totalorder %v1531, 1
    %v1533 = vsel %vm1532, %v1364, %v1529
    %v1534 = vmul.f32 %v1378, %v1378
    %1536 = vrot.lane.b32.xlu0 %v1378, 127
    %v1537 = vpop.permute.xlu0 %1536
    %v1539 = vmul.f32 %v1378, %v1537
    %1540 = vrot.lane.b32.xlu0 %v1378, 126
    %v1541 = vpop.permute.xlu0 %1540
    %v1543 = vmul.f32 %v1378, %v1541
    %1544 = vrot.lane.b32.xlu0 %v1378, 125
    %v1545 = vpop.permute.xlu0 %1544
    %v1547 = vmul.f32 %v1378, %v1545
    %1549 = vrot.lane.b32.xlu0 %v1534, 127
    %v1550 = vpop.permute.xlu0 %1549
    %v1552 = vsub.f32 %v1534, %v1550
    %1553 = vrot.lane.b32.xlu0 %v1534, 126
    %v1554 = vpop.permute.xlu0 %1553
    %v1556 = vsub.f32 %v1552, %v1554
    %1557 = vrot.lane.b32.xlu0 %v1534, 125
    %v1558 = vpop.permute.xlu0 %1557
    %v1560 = vadd.f32 %v1556, %v1558
    %v1561 = vmul.f32 %v1560, %v1366
    %1563 = vrot.lane.b32.xlu0 %v1539, 126
    %v1564 = vpop.permute.xlu0 %1563
    %v1566 = vsub.f32 %v1539, %v1564
    %v1567 = vmul.f32 %v1566, 2.0
    %1569 = vrot.lane.b32.xlu0 %v1366, 127
    %v1570 = vpop.permute.xlu0 %1569
    %v1572 = vmul.f32 %v1567, %v1570
    %v1573 = vadd.f32 %v1561, %v1572
    %1575 = vrot.lane.b32.xlu0 %v1543, 127
    %v1576 = vpop.permute.xlu0 %1575
    %v1578 = vadd.f32 %v1543, %v1576
    %v1579 = vmul.f32 %v1578, 2.0
    %1580 = vrot.lane.b32.xlu0 %v1366, 126
    %v1581 = vpop.permute.xlu0 %1580
    %v1583 = vmul.f32 %v1579, %v1581
    %v1584 = vadd.f32 %v1573, %v1583
    %v1585 = vadd.f32 %v1539, %v1564
    %v1586 = vmul.f32 %v1585, 2.0
    %v1587 = vmul.f32 %v1586, %v1366
    %v1588 = vsub.f32 0.0, %v1534
    %v1589 = vadd.f32 %v1588, %v1550
    %v1590 = vsub.f32 %v1589, %v1554
    %v1591 = vadd.f32 %v1590, %v1558
    %v1592 = vmul.f32 %v1591, %v1570
    %v1593 = vadd.f32 %v1587, %v1592
    %1595 = vrot.lane.b32.xlu0 %v1547, 1
    %v1596 = vpop.permute.xlu0 %1595
    %v1598 = vsub.f32 %v1539, %v1596
    %v1599 = vmul.f32 %v1598, 2.0
    %v1600 = vmul.f32 %v1599, %v1570
    %1602 = vrot.lane.b32.xlu0 %v1600, 127
    %v1603 = vpop.permute.xlu0 %1602
    %v1605 = vadd.f32 %v1593, %v1603
    %v1606 = vsub.f32 %v1543, %v1576
    %v1607 = vmul.f32 %v1606, 2.0
    %v1608 = vmul.f32 %v1607, %v1366
    %v1609 = vadd.f32 %v1539, %v1596
    %v1610 = vmul.f32 %v1609, 2.0
    %v1611 = vmul.f32 %v1610, %v1366
    %1613 = vrot.lane.b32.xlu0 %v1611, 127
    %v1614 = vpop.permute.xlu0 %1613
    %v1616 = vadd.f32 %v1608, %v1614
    %v1617 = vsub.f32 %v1588, %v1550
    %v1618 = vadd.f32 %v1617, %v1554
    %v1619 = vadd.f32 %v1618, %v1558
    %v1620 = vmul.f32 %v1619, %v1581
    %v1621 = vadd.f32 %v1616, %v1620
    %1623 = vset.pattern.permute.xlu0 0
    %1624 = vperm.xlu0 %1623, %v1584
    %v1625 = vpop.permute.xlu0 %1624
    %v1627 = vlaneseq
    %v1628 = vshrl.u32 %v1627, 7
    %v1629 = vsub.s32 0, %v1628
    %v1630 = vrot.slane %v1625, %v1629
    %v1631 = vmul.f32 %v1630, %v172
    %1633 = vset.pattern.permute.xlu0 0
    %1634 = vperm.xlu0 %1633, %v1605
    %v1635 = vpop.permute.xlu0 %1634
    %v1637 = vlaneseq
    %v1638 = vshrl.u32 %v1637, 7
    %v1639 = vsub.s32 0, %v1638
    %v1640 = vrot.slane %v1635, %v1639
    %v1641 = vmul.f32 %v1640, %v175
    %v1642 = vadd.f32 %v1631, %v1641
    %1644 = vset.pattern.permute.xlu0 0
    %1645 = vperm.xlu0 %1644, %v1621
    %v1646 = vpop.permute.xlu0 %1645
    %v1648 = vlaneseq
    %v1649 = vshrl.u32 %v1648, 7
    %v1650 = vsub.s32 0, %v1649
    %v1651 = vrot.slane %v1646, %v1650
    %v1652 = vmul.f32 %v1651, %v178
    %v1653 = vadd.f32 %v1642, %v1652
    %v1654 = vadd.f32 %v1653, %v1379
    %v1655 = vsel %vm1532, %v167, %v1654
    %s1656 = scalar_lea.vmem [#allocation2], 4
    %1657 = vst.msk [vmem:[%s1656] sm:$0x1] %vm46, %v1533
    %s1658 = scalar_lea.vmem %s4, 4
    %1659 = vst.msk [vmem:[%s1658] sm:$0x1] %vm454, %v1655
    %s1660 = sld [smem:[#allocation4 + $0x5]]
    %p1661 = scmp.lt.s32.totalorder %s1660, 0
    %p1662 = scmp.gt.s32.totalorder %s1660, 0
    %s1663 = scalar_select %p1662, %s1660, 0
    %s1664 = scalar_lea.vmem [#allocation3], 5
    %v1665 = vld [vmem:[%s1664] sm:$0x1]
    %s1666 = scalar_lea.vmem %s2, 5
    %v1667 = vld [vmem:[%s1666] sm:$0x1]
    %p1668 = scmp.eq.s32.totalorder %s1660, 4
    // Predicated region
    $region62: #{tpu_custom_call.1} parent=1 // pred_check
      %p1669 = pneg %p1668
    $region63: #{tpu_custom_call.1} parent=1 // pred_check_branch
      %1671 = sbr.rel (%p1669) target = $region65
    $region64: #{tpu_custom_call.1} parent=1 // pred_region
      _
    $region65: #{tpu_custom_call.1} parent=1 // pred_fallthru
      _
    %p1672 = pneg %p1668
    // Predicated region
    $region66: #{tpu_custom_call.1} parent=1 // pred_check
      _
    $region67: #{tpu_custom_call.1} parent=1 // pred_check_branch
      %1674 = sbr.rel (%p1668) target = $region69
    $region68: #{tpu_custom_call.1} parent=1 // pred_region
      %s1675 = scalar_lea.vmem [#allocation2], %s1663
      %v1676 = vld [vmem:[%s1675] sm:$0x1]
      %s1677 = scalar_lea.vmem %s4, %s1663
      %v1678 = vld [vmem:[%s1677] sm:$0x1]
    $region69: #{tpu_custom_call.1} parent=1 // pred_fallthru
      %v1679 = vphi %v1533, %v1676
      %v1680 = vphi %v1655, %v1678
    %1682 = vrot.lane.b32.xlu0 %v1665, 3
    %v1683 = vpop.permute.xlu0 %1682
    %v1685 = vmul.f32 %v1679, %v1683
    %1686 = vrot.lane.b32.xlu0 %v1665, 125
    %v1687 = vpop.permute.xlu0 %1686
    %v1689 = vmul.f32 %v1679, %v1687
    %1691 = vrot.lane.b32.xlu0 %v1689, 3
    %v1692 = vpop.permute.xlu0 %1691
    %v1694 = vadd.f32 %v1685, %v1692
    %1695 = vrot.lane.b32.xlu0 %v1665, 127
    %v1696 = vpop.permute.xlu0 %1695
    %v1698 = vmul.f32 %v1679, %v1696
    %1700 = vrot.lane.b32.xlu0 %v1698, 2
    %v1701 = vpop.permute.xlu0 %1700
    %v1703 = vadd.f32 %v1694, %v1701
    %1704 = vrot.lane.b32.xlu0 %v1665, 1
    %v1705 = vpop.permute.xlu0 %1704
    %v1707 = vmul.f32 %v1679, %v1705
    %1709 = vrot.lane.b32.xlu0 %v1707, 1
    %v1710 = vpop.permute.xlu0 %1709
    %v1712 = vsub.f32 %v1703, %v1710
    %1713 = vrot.lane.b32.xlu0 %v1665, 2
    %v1714 = vpop.permute.xlu0 %1713
    %v1716 = vmul.f32 %v1679, %v1714
    %1717 = vrot.lane.b32.xlu0 %v1665, 126
    %v1718 = vpop.permute.xlu0 %1717
    %v1720 = vmul.f32 %v1679, %v1718
    %1722 = vrot.lane.b32.xlu0 %v1720, 3
    %v1723 = vpop.permute.xlu0 %1722
    %v1725 = vsub.f32 %v1716, %v1723
    %1726 = vrot.lane.b32.xlu0 %v1720, 2
    %v1727 = vpop.permute.xlu0 %1726
    %v1729 = vadd.f32 %v1725, %v1727
    %1731 = vrot.lane.b32.xlu0 %v1716, 1
    %v1732 = vpop.permute.xlu0 %1731
    %v1734 = vadd.f32 %v1729, %v1732
    %1735 = vrot.lane.b32.xlu0 %v1698, 3
    %v1736 = vpop.permute.xlu0 %1735
    %v1738 = vadd.f32 %v1707, %v1736
    %1739 = vrot.lane.b32.xlu0 %v1707, 2
    %v1740 = vpop.permute.xlu0 %1739
    %v1742 = vsub.f32 %v1738, %v1740
    %1743 = vrot.lane.b32.xlu0 %v1698, 1
    %v1744 = vpop.permute.xlu0 %1743
    %v1746 = vadd.f32 %v1742, %v1744
    %v1747 = vmul.f32 %v1679, %v1665
    %1749 = vrot.lane.b32.xlu0 %v1747, 3
    %v1750 = vpop.permute.xlu0 %1749
    %v1752 = vsub.f32 %v1747, %v1750
    %1753 = vrot.lane.b32.xlu0 %v1747, 2
    %v1754 = vpop.permute.xlu0 %1753
    %v1756 = vsub.f32 %v1752, %v1754
    %1757 = vrot.lane.b32.xlu0 %v1747, 1
    %v1758 = vpop.permute.xlu0 %1757
    %v1760 = vsub.f32 %v1756, %v1758
    %v1761 = vmul.f32 %v1712, %v1712
    %v1762 = vmul.f32 %v1734, %v1734
    %v1763 = vadd.f32 %v1761, %v1762
    %v1764 = vmul.f32 %v1746, %v1746
    %v1765 = vadd.f32 %v1763, %v1764
    %v1766 = vmul.f32 %v1760, %v1760
    %v1767 = vadd.f32 %v1765, %v1766
    %v1768 = vrsqrt.pop %v1767
    %v1769 = vmul.f32 %v1767, %v1768
    %vm1770 = vcmp.eq.f32.partialorder %v1767, inf
    %v1771 = vsel %vm1770, %v1767, %v1769
    %vm1772 = vcmp.eq.f32.partialorder %v1767, 0.0
    %v1773 = vand.u32 %v1767, 2147483648
    %v1774 = vsel %vm1772, %v1773, %v1771
    %v1775 = vadd.f32 %v1774, 1e-05
    %v1776 = vrcp.pop %v1775
    %v1777 = vmul.f32 1.0, %v1776
    %1779 = vset.pattern.permute.xlu0 3
    %1780 = vperm.xlu0 %1779, %v1712
    %v1781 = vpop.permute.xlu0 %1780
    %v1783 = vlaneseq
    %v1784 = vshrl.u32 %v1783, 7
    %v1785 = vsub.s32 0, %v1784
    %v1786 = vrot.slane %v1781, %v1785
    %v1787 = vmul.f32 %v1786, %v172
    %1789 = vset.pattern.permute.xlu0 3
    %1790 = vperm.xlu0 %1789, %v1734
    %v1791 = vpop.permute.xlu0 %1790
    %v1793 = vlaneseq
    %v1794 = vshrl.u32 %v1793, 7
    %v1795 = vsub.s32 0, %v1794
    %v1796 = vrot.slane %v1791, %v1795
    %v1797 = vmul.f32 %v1796, %v175
    %v1798 = vadd.f32 %v1787, %v1797
    %1800 = vset.pattern.permute.xlu0 3
    %1801 = vperm.xlu0 %1800, %v1746
    %v1802 = vpop.permute.xlu0 %1801
    %v1804 = vlaneseq
    %v1805 = vshrl.u32 %v1804, 7
    %v1806 = vsub.s32 0, %v1805
    %v1807 = vrot.slane %v1802, %v1806
    %v1808 = vmul.f32 %v1807, %v178
    %v1809 = vadd.f32 %v1798, %v1808
    %1811 = vset.pattern.permute.xlu0 3
    %1812 = vperm.xlu0 %1811, %v1760
    %v1813 = vpop.permute.xlu0 %1812
    %v1815 = vlaneseq
    %v1816 = vshrl.u32 %v1815, 7
    %v1817 = vsub.s32 0, %v1816
    %v1818 = vrot.slane %v1813, %v1817
    %v1819 = vmul.f32 %v1818, %v181
    %v1820 = vadd.f32 %v1809, %v1819
    %1822 = vset.pattern.permute.xlu0 3
    %1823 = vperm.xlu0 %1822, %v1777
    %v1824 = vpop.permute.xlu0 %1823
    %v1826 = vlaneseq
    %v1827 = vshrl.u32 %v1826, 7
    %v1828 = vsub.s32 0, %v1827
    %v1829 = vrot.slane %v1824, %v1828
    %v1830 = vmul.f32 %v1820, %v1829
    %s1831 = scalar_select %p1661, 1, 0
    %v1832 = vstv %s1831
    %vm1833 = vcmp.eq.s32.totalorder %v1832, 1
    %v1834 = vsel %vm1833, %v1665, %v1830
    %v1835 = vmul.f32 %v1679, %v1679
    %1837 = vrot.lane.b32.xlu0 %v1679, 127
    %v1838 = vpop.permute.xlu0 %1837
    %v1840 = vmul.f32 %v1679, %v1838
    %1841 = vrot.lane.b32.xlu0 %v1679, 126
    %v1842 = vpop.permute.xlu0 %1841
    %v1844 = vmul.f32 %v1679, %v1842
    %1845 = vrot.lane.b32.xlu0 %v1679, 125
    %v1846 = vpop.permute.xlu0 %1845
    %v1848 = vmul.f32 %v1679, %v1846
    %1850 = vrot.lane.b32.xlu0 %v1835, 127
    %v1851 = vpop.permute.xlu0 %1850
    %v1853 = vsub.f32 %v1835, %v1851
    %1854 = vrot.lane.b32.xlu0 %v1835, 126
    %v1855 = vpop.permute.xlu0 %1854
    %v1857 = vsub.f32 %v1853, %v1855
    %1858 = vrot.lane.b32.xlu0 %v1835, 125
    %v1859 = vpop.permute.xlu0 %1858
    %v1861 = vadd.f32 %v1857, %v1859
    %v1862 = vmul.f32 %v1861, %v1667
    %1864 = vrot.lane.b32.xlu0 %v1840, 126
    %v1865 = vpop.permute.xlu0 %1864
    %v1867 = vsub.f32 %v1840, %v1865
    %v1868 = vmul.f32 %v1867, 2.0
    %1870 = vrot.lane.b32.xlu0 %v1667, 127
    %v1871 = vpop.permute.xlu0 %1870
    %v1873 = vmul.f32 %v1868, %v1871
    %v1874 = vadd.f32 %v1862, %v1873
    %1876 = vrot.lane.b32.xlu0 %v1844, 127
    %v1877 = vpop.permute.xlu0 %1876
    %v1879 = vadd.f32 %v1844, %v1877
    %v1880 = vmul.f32 %v1879, 2.0
    %1881 = vrot.lane.b32.xlu0 %v1667, 126
    %v1882 = vpop.permute.xlu0 %1881
    %v1884 = vmul.f32 %v1880, %v1882
    %v1885 = vadd.f32 %v1874, %v1884
    %v1886 = vadd.f32 %v1840, %v1865
    %v1887 = vmul.f32 %v1886, 2.0
    %v1888 = vmul.f32 %v1887, %v1667
    %v1889 = vsub.f32 0.0, %v1835
    %v1890 = vadd.f32 %v1889, %v1851
    %v1891 = vsub.f32 %v1890, %v1855
    %v1892 = vadd.f32 %v1891, %v1859
    %v1893 = vmul.f32 %v1892, %v1871
    %v1894 = vadd.f32 %v1888, %v1893
    %1896 = vrot.lane.b32.xlu0 %v1848, 1
    %v1897 = vpop.permute.xlu0 %1896
    %v1899 = vsub.f32 %v1840, %v1897
    %v1900 = vmul.f32 %v1899, 2.0
    %v1901 = vmul.f32 %v1900, %v1871
    %1903 = vrot.lane.b32.xlu0 %v1901, 127
    %v1904 = vpop.permute.xlu0 %1903
    %v1906 = vadd.f32 %v1894, %v1904
    %v1907 = vsub.f32 %v1844, %v1877
    %v1908 = vmul.f32 %v1907, 2.0
    %v1909 = vmul.f32 %v1908, %v1667
    %v1910 = vadd.f32 %v1840, %v1897
    %v1911 = vmul.f32 %v1910, 2.0
    %v1912 = vmul.f32 %v1911, %v1667
    %1914 = vrot.lane.b32.xlu0 %v1912, 127
    %v1915 = vpop.permute.xlu0 %1914
    %v1917 = vadd.f32 %v1909, %v1915
    %v1918 = vsub.f32 %v1889, %v1851
    %v1919 = vadd.f32 %v1918, %v1855
    %v1920 = vadd.f32 %v1919, %v1859
    %v1921 = vmul.f32 %v1920, %v1882
    %v1922 = vadd.f32 %v1917, %v1921
    %1924 = vset.pattern.permute.xlu0 0
    %1925 = vperm.xlu0 %1924, %v1885
    %v1926 = vpop.permute.xlu0 %1925
    %v1928 = vlaneseq
    %v1929 = vshrl.u32 %v1928, 7
    %v1930 = vsub.s32 0, %v1929
    %v1931 = vrot.slane %v1926, %v1930
    %v1932 = vmul.f32 %v1931, %v172
    %1934 = vset.pattern.permute.xlu0 0
    %1935 = vperm.xlu0 %1934, %v1906
    %v1936 = vpop.permute.xlu0 %1935
    %v1938 = vlaneseq
    %v1939 = vshrl.u32 %v1938, 7
    %v1940 = vsub.s32 0, %v1939
    %v1941 = vrot.slane %v1936, %v1940
    %v1942 = vmul.f32 %v1941, %v175
    %v1943 = vadd.f32 %v1932, %v1942
    %1945 = vset.pattern.permute.xlu0 0
    %1946 = vperm.xlu0 %1945, %v1922
    %v1947 = vpop.permute.xlu0 %1946
    %v1949 = vlaneseq
    %v1950 = vshrl.u32 %v1949, 7
    %v1951 = vsub.s32 0, %v1950
    %v1952 = vrot.slane %v1947, %v1951
    %v1953 = vmul.f32 %v1952, %v178
    %v1954 = vadd.f32 %v1943, %v1953
    %v1955 = vadd.f32 %v1954, %v1680
    %v1956 = vsel %vm1833, %v167, %v1955
    %s1957 = scalar_lea.vmem [#allocation2], 5
    %1958 = vst.msk [vmem:[%s1957] sm:$0x1] %vm46, %v1834
    %s1959 = scalar_lea.vmem %s4, 5
    %1960 = vst.msk [vmem:[%s1959] sm:$0x1] %vm454, %v1956
    %s1961 = sld [smem:[#allocation4 + $0x6]]
    %p1962 = scmp.lt.s32.totalorder %s1961, 0
    %p1963 = scmp.gt.s32.totalorder %s1961, 0
    %s1964 = scalar_select %p1963, %s1961, 0
    %s1965 = scalar_lea.vmem [#allocation3], 6
    %v1966 = vld [vmem:[%s1965] sm:$0x1]
    %s1967 = scalar_lea.vmem %s2, 6
    %v1968 = vld [vmem:[%s1967] sm:$0x1]
    %p1969 = scmp.eq.s32.totalorder %s1961, 5
    // Predicated region
    $region70: #{tpu_custom_call.1} parent=1 // pred_check
      %p1970 = pneg %p1969
    $region71: #{tpu_custom_call.1} parent=1 // pred_check_branch
      %1972 = sbr.rel (%p1970) target = $region73
    $region72: #{tpu_custom_call.1} parent=1 // pred_region
      _
    $region73: #{tpu_custom_call.1} parent=1 // pred_fallthru
      _
    %p1973 = pneg %p1969
    // Predicated region
    $region74: #{tpu_custom_call.1} parent=1 // pred_check
      _
    $region75: #{tpu_custom_call.1} parent=1 // pred_check_branch
      %1975 = sbr.rel (%p1969) target = $region77
    $region76: #{tpu_custom_call.1} parent=1 // pred_region
      %s1976 = scalar_lea.vmem [#allocation2], %s1964
      %v1977 = vld [vmem:[%s1976] sm:$0x1]
      %s1978 = scalar_lea.vmem %s4, %s1964
      %v1979 = vld [vmem:[%s1978] sm:$0x1]
    $region77: #{tpu_custom_call.1} parent=1 // pred_fallthru
      %v1980 = vphi %v1834, %v1977
      %v1981 = vphi %v1956, %v1979
    %1983 = vrot.lane.b32.xlu0 %v1966, 3
    %v1984 = vpop.permute.xlu0 %1983
    %v1986 = vmul.f32 %v1980, %v1984
    %1987 = vrot.lane.b32.xlu0 %v1966, 125
    %v1988 = vpop.permute.xlu0 %1987
    %v1990 = vmul.f32 %v1980, %v1988
    %1992 = vrot.lane.b32.xlu0 %v1990, 3
    %v1993 = vpop.permute.xlu0 %1992
    %v1995 = vadd.f32 %v1986, %v1993
    %1996 = vrot.lane.b32.xlu0 %v1966, 127
    %v1997 = vpop.permute.xlu0 %1996
    %v1999 = vmul.f32 %v1980, %v1997
    %2001 = vrot.lane.b32.xlu0 %v1999, 2
    %v2002 = vpop.permute.xlu0 %2001
    %v2004 = vadd.f32 %v1995, %v2002
    %2005 = vrot.lane.b32.xlu0 %v1966, 1
    %v2006 = vpop.permute.xlu0 %2005
    %v2008 = vmul.f32 %v1980, %v2006
    %2010 = vrot.lane.b32.xlu0 %v2008, 1
    %v2011 = vpop.permute.xlu0 %2010
    %v2013 = vsub.f32 %v2004, %v2011
    %2014 = vrot.lane.b32.xlu0 %v1966, 2
    %v2015 = vpop.permute.xlu0 %2014
    %v2017 = vmul.f32 %v1980, %v2015
    %2018 = vrot.lane.b32.xlu0 %v1966, 126
    %v2019 = vpop.permute.xlu0 %2018
    %v2021 = vmul.f32 %v1980, %v2019
    %2023 = vrot.lane.b32.xlu0 %v2021, 3
    %v2024 = vpop.permute.xlu0 %2023
    %v2026 = vsub.f32 %v2017, %v2024
    %2027 = vrot.lane.b32.xlu0 %v2021, 2
    %v2028 = vpop.permute.xlu0 %2027
    %v2030 = vadd.f32 %v2026, %v2028
    %2032 = vrot.lane.b32.xlu0 %v2017, 1
    %v2033 = vpop.permute.xlu0 %2032
    %v2035 = vadd.f32 %v2030, %v2033
    %2036 = vrot.lane.b32.xlu0 %v1999, 3
    %v2037 = vpop.permute.xlu0 %2036
    %v2039 = vadd.f32 %v2008, %v2037
    %2040 = vrot.lane.b32.xlu0 %v2008, 2
    %v2041 = vpop.permute.xlu0 %2040
    %v2043 = vsub.f32 %v2039, %v2041
    %2044 = vrot.lane.b32.xlu0 %v1999, 1
    %v2045 = vpop.permute.xlu0 %2044
    %v2047 = vadd.f32 %v2043, %v2045
    %v2048 = vmul.f32 %v1980, %v1966
    %2050 = vrot.lane.b32.xlu0 %v2048, 3
    %v2051 = vpop.permute.xlu0 %2050
    %v2053 = vsub.f32 %v2048, %v2051
    %2054 = vrot.lane.b32.xlu0 %v2048, 2
    %v2055 = vpop.permute.xlu0 %2054
    %v2057 = vsub.f32 %v2053, %v2055
    %2058 = vrot.lane.b32.xlu0 %v2048, 1
    %v2059 = vpop.permute.xlu0 %2058
    %v2061 = vsub.f32 %v2057, %v2059
    %v2062 = vmul.f32 %v2013, %v2013
    %v2063 = vmul.f32 %v2035, %v2035
    %v2064 = vadd.f32 %v2062, %v2063
    %v2065 = vmul.f32 %v2047, %v2047
    %v2066 = vadd.f32 %v2064, %v2065
    %v2067 = vmul.f32 %v2061, %v2061
    %v2068 = vadd.f32 %v2066, %v2067
    %v2069 = vrsqrt.pop %v2068
    %v2070 = vmul.f32 %v2068, %v2069
    %vm2071 = vcmp.eq.f32.partialorder %v2068, inf
    %v2072 = vsel %vm2071, %v2068, %v2070
    %vm2073 = vcmp.eq.f32.partialorder %v2068, 0.0
    %v2074 = vand.u32 %v2068, 2147483648
    %v2075 = vsel %vm2073, %v2074, %v2072
    %v2076 = vadd.f32 %v2075, 1e-05
    %v2077 = vrcp.pop %v2076
    %v2078 = vmul.f32 1.0, %v2077
    %2080 = vset.pattern.permute.xlu0 3
    %2081 = vperm.xlu0 %2080, %v2013
    %v2082 = vpop.permute.xlu0 %2081
    %v2084 = vlaneseq
    %v2085 = vshrl.u32 %v2084, 7
    %v2086 = vsub.s32 0, %v2085
    %v2087 = vrot.slane %v2082, %v2086
    %v2088 = vmul.f32 %v2087, %v172
    %2090 = vset.pattern.permute.xlu0 3
    %2091 = vperm.xlu0 %2090, %v2035
    %v2092 = vpop.permute.xlu0 %2091
    %v2094 = vlaneseq
    %v2095 = vshrl.u32 %v2094, 7
    %v2096 = vsub.s32 0, %v2095
    %v2097 = vrot.slane %v2092, %v2096
    %v2098 = vmul.f32 %v2097, %v175
    %v2099 = vadd.f32 %v2088, %v2098
    %2101 = vset.pattern.permute.xlu0 3
    %2102 = vperm.xlu0 %2101, %v2047
    %v2103 = vpop.permute.xlu0 %2102
    %v2105 = vlaneseq
    %v2106 = vshrl.u32 %v2105, 7
    %v2107 = vsub.s32 0, %v2106
    %v2108 = vrot.slane %v2103, %v2107
    %v2109 = vmul.f32 %v2108, %v178
    %v2110 = vadd.f32 %v2099, %v2109
    %2112 = vset.pattern.permute.xlu0 3
    %2113 = vperm.xlu0 %2112, %v2061
    %v2114 = vpop.permute.xlu0 %2113
    %v2116 = vlaneseq
    %v2117 = vshrl.u32 %v2116, 7
    %v2118 = vsub.s32 0, %v2117
    %v2119 = vrot.slane %v2114, %v2118
    %v2120 = vmul.f32 %v2119, %v181
    %v2121 = vadd.f32 %v2110, %v2120
    %2123 = vset.pattern.permute.xlu0 3
    %2124 = vperm.xlu0 %2123, %v2078
    %v2125 = vpop.permute.xlu0 %2124
    %v2127 = vlaneseq
    %v2128 = vshrl.u32 %v2127, 7
    %v2129 = vsub.s32 0, %v2128
    %v2130 = vrot.slane %v2125, %v2129
    %v2131 = vmul.f32 %v2121, %v2130
    %s2132 = scalar_select %p1962, 1, 0
    %v2133 = vstv %s2132
    %vm2134 = vcmp.eq.s32.totalorder %v2133, 1
    %v2135 = vsel %vm2134, %v1966, %v2131
    %v2136 = vmul.f32 %v1980, %v1980
    %2138 = vrot.lane.b32.xlu0 %v1980, 127
    %v2139 = vpop.permute.xlu0 %2138
    %v2141 = vmul.f32 %v1980, %v2139
    %2142 = vrot.lane.b32.xlu0 %v1980, 126
    %v2143 = vpop.permute.xlu0 %2142
    %v2145 = vmul.f32 %v1980, %v2143
    %2146 = vrot.lane.b32.xlu0 %v1980, 125
    %v2147 = vpop.permute.xlu0 %2146
    %v2149 = vmul.f32 %v1980, %v2147
    %2151 = vrot.lane.b32.xlu0 %v2136, 127
    %v2152 = vpop.permute.xlu0 %2151
    %v2154 = vsub.f32 %v2136, %v2152
    %2155 = vrot.lane.b32.xlu0 %v2136, 126
    %v2156 = vpop.permute.xlu0 %2155
    %v2158 = vsub.f32 %v2154, %v2156
    %2159 = vrot.lane.b32.xlu0 %v2136, 125
    %v2160 = vpop.permute.xlu0 %2159
    %v2162 = vadd.f32 %v2158, %v2160
    %v2163 = vmul.f32 %v2162, %v1968
    %2165 = vrot.lane.b32.xlu0 %v2141, 126
    %v2166 = vpop.permute.xlu0 %2165
    %v2168 = vsub.f32 %v2141, %v2166
    %v2169 = vmul.f32 %v2168, 2.0
    %2171 = vrot.lane.b32.xlu0 %v1968, 127
    %v2172 = vpop.permute.xlu0 %2171
    %v2174 = vmul.f32 %v2169, %v2172
    %v2175 = vadd.f32 %v2163, %v2174
    %2177 = vrot.lane.b32.xlu0 %v2145, 127
    %v2178 = vpop.permute.xlu0 %2177
    %v2180 = vadd.f32 %v2145, %v2178
    %v2181 = vmul.f32 %v2180, 2.0
    %2182 = vrot.lane.b32.xlu0 %v1968, 126
    %v2183 = vpop.permute.xlu0 %2182
    %v2185 = vmul.f32 %v2181, %v2183
    %v2186 = vadd.f32 %v2175, %v2185
    %v2187 = vadd.f32 %v2141, %v2166
    %v2188 = vmul.f32 %v2187, 2.0
    %v2189 = vmul.f32 %v2188, %v1968
    %v2190 = vsub.f32 0.0, %v2136
    %v2191 = vadd.f32 %v2190, %v2152
    %v2192 = vsub.f32 %v2191, %v2156
    %v2193 = vadd.f32 %v2192, %v2160
    %v2194 = vmul.f32 %v2193, %v2172
    %v2195 = vadd.f32 %v2189, %v2194
    %2197 = vrot.lane.b32.xlu0 %v2149, 1
    %v2198 = vpop.permute.xlu0 %2197
    %v2200 = vsub.f32 %v2141, %v2198
    %v2201 = vmul.f32 %v2200, 2.0
    %v2202 = vmul.f32 %v2201, %v2172
    %2204 = vrot.lane.b32.xlu0 %v2202, 127
    %v2205 = vpop.permute.xlu0 %2204
    %v2207 = vadd.f32 %v2195, %v2205
    %v2208 = vsub.f32 %v2145, %v2178
    %v2209 = vmul.f32 %v2208, 2.0
    %v2210 = vmul.f32 %v2209, %v1968
    %v2211 = vadd.f32 %v2141, %v2198
    %v2212 = vmul.f32 %v2211, 2.0
    %v2213 = vmul.f32 %v2212, %v1968
    %2215 = vrot.lane.b32.xlu0 %v2213, 127
    %v2216 = vpop.permute.xlu0 %2215
    %v2218 = vadd.f32 %v2210, %v2216
    %v2219 = vsub.f32 %v2190, %v2152
    %v2220 = vadd.f32 %v2219, %v2156
    %v2221 = vadd.f32 %v2220, %v2160
    %v2222 = vmul.f32 %v2221, %v2183
    %v2223 = vadd.f32 %v2218, %v2222
    %2225 = vset.pattern.permute.xlu0 0
    %2226 = vperm.xlu0 %2225, %v2186
    %v2227 = vpop.permute.xlu0 %2226
    %v2229 = vlaneseq
    %v2230 = vshrl.u32 %v2229, 7
    %v2231 = vsub.s32 0, %v2230
    %v2232 = vrot.slane %v2227, %v2231
    %v2233 = vmul.f32 %v2232, %v172
    %2235 = vset.pattern.permute.xlu0 0
    %2236 = vperm.xlu0 %2235, %v2207
    %v2237 = vpop.permute.xlu0 %2236
    %v2239 = vlaneseq
    %v2240 = vshrl.u32 %v2239, 7
    %v2241 = vsub.s32 0, %v2240
    %v2242 = vrot.slane %v2237, %v2241
    %v2243 = vmul.f32 %v2242, %v175
    %v2244 = vadd.f32 %v2233, %v2243
    %2246 = vset.pattern.permute.xlu0 0
    %2247 = vperm.xlu0 %2246, %v2223
    %v2248 = vpop.permute.xlu0 %2247
    %v2250 = vlaneseq
    %v2251 = vshrl.u32 %v2250, 7
    %v2252 = vsub.s32 0, %v2251
    %v2253 = vrot.slane %v2248, %v2252
    %v2254 = vmul.f32 %v2253, %v178
    %v2255 = vadd.f32 %v2244, %v2254
    %v2256 = vadd.f32 %v2255, %v1981
    %v2257 = vsel %vm2134, %v167, %v2256
    %s2258 = scalar_lea.vmem [#allocation2], 6
    %2259 = vst.msk [vmem:[%s2258] sm:$0x1] %vm46, %v2135
    %s2260 = scalar_lea.vmem %s4, 6
    %2261 = vst.msk [vmem:[%s2260] sm:$0x1] %vm454, %v2257
    %s2262 = sld [smem:[#allocation4 + $0x7]]
    %p2263 = scmp.lt.s32.totalorder %s2262, 0
    %p2264 = scmp.gt.s32.totalorder %s2262, 0
    %s2265 = scalar_select %p2264, %s2262, 0
    %s2266 = scalar_lea.vmem [#allocation3], 7
    %v2267 = vld [vmem:[%s2266] sm:$0x1]
    %s2268 = scalar_lea.vmem %s2, 7
    %v2269 = vld [vmem:[%s2268] sm:$0x1]
    %p2270 = scmp.eq.s32.totalorder %s2262, 6
    // Predicated region
    $region78: #{tpu_custom_call.1} parent=1 // pred_check
      %p2271 = pneg %p2270
    $region79: #{tpu_custom_call.1} parent=1 // pred_check_branch
      %2273 = sbr.rel (%p2271) target = $region81
    $region80: #{tpu_custom_call.1} parent=1 // pred_region
      _
    $region81: #{tpu_custom_call.1} parent=1 // pred_fallthru
      _
    %p2274 = pneg %p2270
    // Predicated region
    $region82: #{tpu_custom_call.1} parent=1 // pred_check
      _
    $region83: #{tpu_custom_call.1} parent=1 // pred_check_branch
      %2276 = sbr.rel (%p2270) target = $region85
    $region84: #{tpu_custom_call.1} parent=1 // pred_region
      %s2277 = scalar_lea.vmem [#allocation2], %s2265
      %v2278 = vld [vmem:[%s2277] sm:$0x1]
      %s2279 = scalar_lea.vmem %s4, %s2265
      %v2280 = vld [vmem:[%s2279] sm:$0x1]
    $region85: #{tpu_custom_call.1} parent=1 // pred_fallthru
      %v2281 = vphi %v2135, %v2278
      %v2282 = vphi %v2257, %v2280
    %2284 = vrot.lane.b32.xlu0 %v2267, 3
    %v2285 = vpop.permute.xlu0 %2284
    %v2287 = vmul.f32 %v2281, %v2285
    %2288 = vrot.lane.b32.xlu0 %v2267, 125
    %v2289 = vpop.permute.xlu0 %2288
    %v2291 = vmul.f32 %v2281, %v2289
    %2293 = vrot.lane.b32.xlu0 %v2291, 3
    %v2294 = vpop.permute.xlu0 %2293
    %v2296 = vadd.f32 %v2287, %v2294
    %2297 = vrot.lane.b32.xlu0 %v2267, 127
    %v2298 = vpop.permute.xlu0 %2297
    %v2300 = vmul.f32 %v2281, %v2298
    %2302 = vrot.lane.b32.xlu0 %v2300, 2
    %v2303 = vpop.permute.xlu0 %2302
    %v2305 = vadd.f32 %v2296, %v2303
    %2306 = vrot.lane.b32.xlu0 %v2267, 1
    %v2307 = vpop.permute.xlu0 %2306
    %v2309 = vmul.f32 %v2281, %v2307
    %2311 = vrot.lane.b32.xlu0 %v2309, 1
    %v2312 = vpop.permute.xlu0 %2311
    %v2314 = vsub.f32 %v2305, %v2312
    %2315 = vrot.lane.b32.xlu0 %v2267, 2
    %v2316 = vpop.permute.xlu0 %2315
    %v2318 = vmul.f32 %v2281, %v2316
    %2319 = vrot.lane.b32.xlu0 %v2267, 126
    %v2320 = vpop.permute.xlu0 %2319
    %v2322 = vmul.f32 %v2281, %v2320
    %2324 = vrot.lane.b32.xlu0 %v2322, 3
    %v2325 = vpop.permute.xlu0 %2324
    %v2327 = vsub.f32 %v2318, %v2325
    %2328 = vrot.lane.b32.xlu0 %v2322, 2
    %v2329 = vpop.permute.xlu0 %2328
    %v2331 = vadd.f32 %v2327, %v2329
    %2333 = vrot.lane.b32.xlu0 %v2318, 1
    %v2334 = vpop.permute.xlu0 %2333
    %v2336 = vadd.f32 %v2331, %v2334
    %2337 = vrot.lane.b32.xlu0 %v2300, 3
    %v2338 = vpop.permute.xlu0 %2337
    %v2340 = vadd.f32 %v2309, %v2338
    %2341 = vrot.lane.b32.xlu0 %v2309, 2
    %v2342 = vpop.permute.xlu0 %2341
    %v2344 = vsub.f32 %v2340, %v2342
    %2345 = vrot.lane.b32.xlu0 %v2300, 1
    %v2346 = vpop.permute.xlu0 %2345
    %v2348 = vadd.f32 %v2344, %v2346
    %v2349 = vmul.f32 %v2281, %v2267
    %2351 = vrot.lane.b32.xlu0 %v2349, 3
    %v2352 = vpop.permute.xlu0 %2351
    %v2354 = vsub.f32 %v2349, %v2352
    %2355 = vrot.lane.b32.xlu0 %v2349, 2
    %v2356 = vpop.permute.xlu0 %2355
    %v2358 = vsub.f32 %v2354, %v2356
    %2359 = vrot.lane.b32.xlu0 %v2349, 1
    %v2360 = vpop.permute.xlu0 %2359
    %v2362 = vsub.f32 %v2358, %v2360
    %v2363 = vmul.f32 %v2314, %v2314
    %v2364 = vmul.f32 %v2336, %v2336
    %v2365 = vadd.f32 %v2363, %v2364
    %v2366 = vmul.f32 %v2348, %v2348
    %v2367 = vadd.f32 %v2365, %v2366
    %v2368 = vmul.f32 %v2362, %v2362
    %v2369 = vadd.f32 %v2367, %v2368
    %v2370 = vrsqrt.pop %v2369
    %v2371 = vmul.f32 %v2369, %v2370
    %vm2372 = vcmp.eq.f32.partialorder %v2369, inf
    %v2373 = vsel %vm2372, %v2369, %v2371
    %vm2374 = vcmp.eq.f32.partialorder %v2369, 0.0
    %v2375 = vand.u32 %v2369, 2147483648
    %v2376 = vsel %vm2374, %v2375, %v2373
    %v2377 = vadd.f32 %v2376, 1e-05
    %v2378 = vrcp.pop %v2377
    %v2379 = vmul.f32 1.0, %v2378
    %2381 = vset.pattern.permute.xlu0 3
    %2382 = vperm.xlu0 %2381, %v2314
    %v2383 = vpop.permute.xlu0 %2382
    %v2385 = vlaneseq
    %v2386 = vshrl.u32 %v2385, 7
    %v2387 = vsub.s32 0, %v2386
    %v2388 = vrot.slane %v2383, %v2387
    %v2389 = vmul.f32 %v2388, %v172
    %2391 = vset.pattern.permute.xlu0 3
    %2392 = vperm.xlu0 %2391, %v2336
    %v2393 = vpop.permute.xlu0 %2392
    %v2395 = vlaneseq
    %v2396 = vshrl.u32 %v2395, 7
    %v2397 = vsub.s32 0, %v2396
    %v2398 = vrot.slane %v2393, %v2397
    %v2399 = vmul.f32 %v2398, %v175
    %v2400 = vadd.f32 %v2389, %v2399
    %2402 = vset.pattern.permute.xlu0 3
    %2403 = vperm.xlu0 %2402, %v2348
    %v2404 = vpop.permute.xlu0 %2403
    %v2406 = vlaneseq
    %v2407 = vshrl.u32 %v2406, 7
    %v2408 = vsub.s32 0, %v2407
    %v2409 = vrot.slane %v2404, %v2408
    %v2410 = vmul.f32 %v2409, %v178
    %v2411 = vadd.f32 %v2400, %v2410
    %2413 = vset.pattern.permute.xlu0 3
    %2414 = vperm.xlu0 %2413, %v2362
    %v2415 = vpop.permute.xlu0 %2414
    %v2417 = vlaneseq
    %v2418 = vshrl.u32 %v2417, 7
    %v2419 = vsub.s32 0, %v2418
    %v2420 = vrot.slane %v2415, %v2419
    %v2421 = vmul.f32 %v2420, %v181
    %v2422 = vadd.f32 %v2411, %v2421
    %2424 = vset.pattern.permute.xlu0 3
    %2425 = vperm.xlu0 %2424, %v2379
    %v2426 = vpop.permute.xlu0 %2425
    %v2428 = vlaneseq
    %v2429 = vshrl.u32 %v2428, 7
    %v2430 = vsub.s32 0, %v2429
    %v2431 = vrot.slane %v2426, %v2430
    %v2432 = vmul.f32 %v2422, %v2431
    %s2433 = scalar_select %p2263, 1, 0
    %v2434 = vstv %s2433
    %vm2435 = vcmp.eq.s32.totalorder %v2434, 1
    %v2436 = vsel %vm2435, %v2267, %v2432
    %v2437 = vmul.f32 %v2281, %v2281
    %2439 = vrot.lane.b32.xlu0 %v2281, 127
    %v2440 = vpop.permute.xlu0 %2439
    %v2442 = vmul.f32 %v2281, %v2440
    %2443 = vrot.lane.b32.xlu0 %v2281, 126
    %v2444 = vpop.permute.xlu0 %2443
    %v2446 = vmul.f32 %v2281, %v2444
    %2447 = vrot.lane.b32.xlu0 %v2281, 125
    %v2448 = vpop.permute.xlu0 %2447
    %v2450 = vmul.f32 %v2281, %v2448
    %2452 = vrot.lane.b32.xlu0 %v2437, 127
    %v2453 = vpop.permute.xlu0 %2452
    %v2455 = vsub.f32 %v2437, %v2453
    %2456 = vrot.lane.b32.xlu0 %v2437, 126
    %v2457 = vpop.permute.xlu0 %2456
    %v2459 = vsub.f32 %v2455, %v2457
    %2460 = vrot.lane.b32.xlu0 %v2437, 125
    %v2461 = vpop.permute.xlu0 %2460
    %v2463 = vadd.f32 %v2459, %v2461
    %v2464 = vmul.f32 %v2463, %v2269
    %2466 = vrot.lane.b32.xlu0 %v2442, 126
    %v2467 = vpop.permute.xlu0 %2466
    %v2469 = vsub.f32 %v2442, %v2467
    %v2470 = vmul.f32 %v2469, 2.0
    %2472 = vrot.lane.b32.xlu0 %v2269, 127
    %v2473 = vpop.permute.xlu0 %2472
    %v2475 = vmul.f32 %v2470, %v2473
    %v2476 = vadd.f32 %v2464, %v2475
    %2478 = vrot.lane.b32.xlu0 %v2446, 127
    %v2479 = vpop.permute.xlu0 %2478
    %v2481 = vadd.f32 %v2446, %v2479
    %v2482 = vmul.f32 %v2481, 2.0
    %2483 = vrot.lane.b32.xlu0 %v2269, 126
    %v2484 = vpop.permute.xlu0 %2483
    %v2486 = vmul.f32 %v2482, %v2484
    %v2487 = vadd.f32 %v2476, %v2486
    %v2488 = vadd.f32 %v2442, %v2467
    %v2489 = vmul.f32 %v2488, 2.0
    %v2490 = vmul.f32 %v2489, %v2269
    %v2491 = vsub.f32 0.0, %v2437
    %v2492 = vadd.f32 %v2491, %v2453
    %v2493 = vsub.f32 %v2492, %v2457
    %v2494 = vadd.f32 %v2493, %v2461
    %v2495 = vmul.f32 %v2494, %v2473
    %v2496 = vadd.f32 %v2490, %v2495
    %2498 = vrot.lane.b32.xlu0 %v2450, 1
    %v2499 = vpop.permute.xlu0 %2498
    %v2501 = vsub.f32 %v2442, %v2499
    %v2502 = vmul.f32 %v2501, 2.0
    %v2503 = vmul.f32 %v2502, %v2473
    %2505 = vrot.lane.b32.xlu0 %v2503, 127
    %v2506 = vpop.permute.xlu0 %2505
    %v2508 = vadd.f32 %v2496, %v2506
    %v2509 = vsub.f32 %v2446, %v2479
    %v2510 = vmul.f32 %v2509, 2.0
    %v2511 = vmul.f32 %v2510, %v2269
    %v2512 = vadd.f32 %v2442, %v2499
    %v2513 = vmul.f32 %v2512, 2.0
    %v2514 = vmul.f32 %v2513, %v2269
    %2516 = vrot.lane.b32.xlu0 %v2514, 127
    %v2517 = vpop.permute.xlu0 %2516
    %v2519 = vadd.f32 %v2511, %v2517
    %v2520 = vsub.f32 %v2491, %v2453
    %v2521 = vadd.f32 %v2520, %v2457
    %v2522 = vadd.f32 %v2521, %v2461
    %v2523 = vmul.f32 %v2522, %v2484
    %v2524 = vadd.f32 %v2519, %v2523
    %2526 = vset.pattern.permute.xlu0 0
    %2527 = vperm.xlu0 %2526, %v2487
    %v2528 = vpop.permute.xlu0 %2527
    %v2530 = vlaneseq
    %v2531 = vshrl.u32 %v2530, 7
    %v2532 = vsub.s32 0, %v2531
    %v2533 = vrot.slane %v2528, %v2532
    %v2534 = vmul.f32 %v2533, %v172
    %2536 = vset.pattern.permute.xlu0 0
    %2537 = vperm.xlu0 %2536, %v2508
    %v2538 = vpop.permute.xlu0 %2537
    %v2540 = vlaneseq
    %v2541 = vshrl.u32 %v2540, 7
    %v2542 = vsub.s32 0, %v2541
    %v2543 = vrot.slane %v2538, %v2542
    %v2544 = vmul.f32 %v2543, %v175
    %v2545 = vadd.f32 %v2534, %v2544
    %2547 = vset.pattern.permute.xlu0 0
    %2548 = vperm.xlu0 %2547, %v2524
    %v2549 = vpop.permute.xlu0 %2548
    %v2551 = vlaneseq
    %v2552 = vshrl.u32 %v2551, 7
    %v2553 = vsub.s32 0, %v2552
    %v2554 = vrot.slane %v2549, %v2553
    %v2555 = vmul.f32 %v2554, %v178
    %v2556 = vadd.f32 %v2545, %v2555
    %v2557 = vadd.f32 %v2556, %v2282
    %v2558 = vsel %vm2435, %v167, %v2557
    %s2559 = scalar_lea.vmem [#allocation2], 7
    %2560 = vst.msk [vmem:[%s2559] sm:$0x1] %vm46, %v2436
    %s2561 = scalar_lea.vmem %s4, 7
    %2562 = vst.msk [vmem:[%s2561] sm:$0x1] %vm454, %v2558
    // Predicated region
    $region86: #{tpu_custom_call.1} parent=1 // pred_check
      _
    $region87: #{tpu_custom_call.1} parent=1 // pred_check_branch
      %2564 = sbr.rel (0) target = $region89
    $region88: #{tpu_custom_call.1} parent=1 // pred_region
      _
    $region89: #{tpu_custom_call.1} parent=1 // pred_fallthru
      _
    // Predicated region
    $region90: #{tpu_custom_call.1} parent=1 // pred_check
      _
    $region91: #{tpu_custom_call.1} parent=1 // pred_check_branch
      %2566 = sbr.rel (0) target = $region93
    $region92: #{tpu_custom_call.1} parent=1 // pred_region
      _
    $region93: #{tpu_custom_call.1} parent=1 // pred_fallthru
      _
    %2567 = vsyncpa [#allocation5], 1

</llo_original>
